<compile_context>
chip_gen: v7x
topology: tpu7x:2x2x1
jax: 0.10.0
libtpu: 0.0.40
codegen_flags: <defaults>
</compile_context>

<pallas_src>
import functools
import numpy as np
import jax
import jax.numpy as jnp
from jax import lax
from jax.experimental import pallas as pl
from jax.experimental.pallas import tpu as pltpu

# ---------------- module hyper-parameters (NDALoss defaults) -----------------
SAMPLE_RATE = 16000
N_FFT = 512
HOP = 256                         # n_fft // 2 -> frame f = chunk f ++ chunk f+1
N_MELS = 80
GAMMA = 5.0
MU = 20.0
OMEGA = 20.0
ETA = 3.0
TAU = 2

N_FREQ = N_FFT // 2 + 1           # 257 one-sided frequency bins
FREQ_PAD = 384                    # 257 padded up to 3*128 lanes
MEL_PAD = 128                     # 80 mel bins padded up to 128 lanes
TM = 256                          # row tile (fills v6e/v7x 256-wide MXU passes)
FRAME_PAD = 8                     # extra zero frames so shifted slices stay in-bounds

ALPHA = (0.25, 0.5, 0.75, 1.0)
BETA = (-0.357193, -0.607143, -0.285714, 0.25, 1.0)


# ---------------- deterministic "parameters" (windows / filterbanks) ---------
def _hann_window_periodic(n):
    k = np.arange(n)
    return 0.5 - 0.5 * np.cos(2.0 * np.pi * k / n)


def _dft_window_matrix():
    # Hann window folded into a single [n_fft, 2*FREQ_PAD] = [512, 768] matrix:
    # columns [0:384) -> windowed cos DFT, [384:768) -> windowed sin DFT.
    n = np.arange(N_FFT)[:, None].astype(np.float64)
    k = np.arange(N_FREQ)[None, :].astype(np.float64)
    ang = 2.0 * np.pi * n * k / N_FFT
    w = _hann_window_periodic(N_FFT)[:, None]
    m = np.zeros((N_FFT, 2 * FREQ_PAD), np.float32)
    m[:, :N_FREQ] = (w * np.cos(ang)).astype(np.float32)
    m[:, FREQ_PAD:FREQ_PAD + N_FREQ] = (w * np.sin(ang)).astype(np.float32)
    return m


def _mel_filterbank():
    # torchaudio MelScale defaults: htk mel scale, norm=None, f_min=0, f_max=sr/2
    def hz_to_mel(f):
        return 2595.0 * np.log10(1.0 + f / 700.0)

    def mel_to_hz(m):
        return 700.0 * (10.0 ** (m / 2595.0) - 1.0)

    all_freqs = np.linspace(0, SAMPLE_RATE // 2, N_FREQ)
    m_pts = np.linspace(hz_to_mel(0.0), hz_to_mel(SAMPLE_RATE / 2.0), N_MELS + 2)
    f_pts = mel_to_hz(m_pts)
    f_diff = f_pts[1:] - f_pts[:-1]
    slopes = f_pts[None, :] - all_freqs[:, None]
    down = -slopes[:, :-2] / f_diff[:-1]
    up = slopes[:, 2:] / f_diff[1:]
    fb = np.maximum(0.0, np.minimum(down, up))
    fb_pad = np.zeros((FREQ_PAD, MEL_PAD), np.float32)
    fb_pad[:N_FREQ, :N_MELS] = fb
    return fb_pad


# ---------------- Pallas kernel 1: STFT mag -> mel -> cube root ---------------
def melspec_kernel(fr_ref, w_ref, fb_ref, o_ref):
    fr = fr_ref[...]                                              # [TM, n_fft] bf16
    cs = jnp.dot(fr, w_ref[...], preferred_element_type=jnp.float32)  # [TM, 768]
    re = cs[:, :FREQ_PAD]
    im = cs[:, FREQ_PAD:]
    mag = jnp.sqrt(re * re + im * im)                             # power=1 spectrogram
    mel = jnp.maximum(
        jnp.dot(mag.astype(jnp.bfloat16), fb_ref[...],
                preferred_element_type=jnp.float32), 0.0)
    # cube-root compression: pow(mel, 1/3), with pow(0, 1/3) = 0
    o_ref[...] = jnp.where(
        mel > 0.0, jnp.exp(jnp.log(jnp.maximum(mel, 1e-30)) * (1.0 / 3.0)), 0.0)


def _chunks(wav):
    """Reflect-pad (center=True) and view as hop-sized chunks [B, Fn+1, HOP]."""
    B, T = wav.shape
    nf = T // HOP + 1                                             # torchaudio frame count
    x = jnp.pad(wav, ((0, 0), (HOP, HOP)), mode="reflect")        # pad = n_fft // 2
    x2 = x[:, :(nf + 1) * HOP].reshape(B, nf + 1, HOP)
    return x2, nf


def _frames_bf16(x2):
    """frame f = chunk f ++ chunk f+1 (hop == n_fft/2) — no gather needed."""
    xb = x2.astype(jnp.bfloat16)
    return jnp.concatenate([xb[:, :-1], xb[:, 1:]], axis=-1)      # [B, Fn, n_fft]


def mel_cbrt_pair(enhancedwav, cleanwav, w_mat, fb):
    """One pallas_call computing both cube-root mel spectra, lane-dense layout.
    Also returns a per-frame energy of the clean signal (for the VAD substitute)."""
    B, T = enhancedwav.shape
    x2_e, Fn = _chunks(enhancedwav)
    x2_c, _ = _chunks(cleanwav)
    fr_e = _frames_bf16(x2_e)
    fr_c = _frames_bf16(x2_c)
    R = B * Fn
    rows = jnp.concatenate(
        [fr_e.reshape(R, N_FFT), fr_c.reshape(R, N_FFT)], axis=0)
    R2 = 2 * R
    Rp = pl.cdiv(R2, TM) * TM
    rows = jnp.pad(rows, ((0, Rp - R2), (0, 0)))

    out = pl.pallas_call(
        melspec_kernel,
        out_shape=jax.ShapeDtypeStruct((Rp, MEL_PAD), jnp.float32),
        grid=(Rp // TM,),
        in_specs=[
            pl.BlockSpec((TM, N_FFT), lambda i: (i, 0)),
            pl.BlockSpec((N_FFT, 2 * FREQ_PAD), lambda i: (0, 0)),
            pl.BlockSpec((FREQ_PAD, MEL_PAD), lambda i: (0, 0)),
        ],
        out_specs=pl.BlockSpec((TM, MEL_PAD), lambda i: (i, 0)),
        compiler_params=pltpu.CompilerParams(dimension_semantics=("parallel",)),
    )(rows, w_mat, fb)

    bc = out[:R].reshape(B, Fn, MEL_PAD)                          # enhanced
    bs = out[R:R2].reshape(B, Fn, MEL_PAD)                        # clean
    # per-frame mean energy of the clean frames, from the f32 chunks
    ce = jnp.sum(x2_c * x2_c, axis=-1)                            # [B, Fn+1]
    frame_e = (ce[:, :-1] + ce[:, 1:]) * (1.0 / N_FFT)            # [B, Fn]
    return bc, bs, frame_e


# ---------------- Pallas kernel 2: all NDA loss reductions (per batch) --------
def nda_loss_kernel(bc_ref, bs_ref, vd_ref, enh_ref, cln_ref, o_ref, *, fn, t_true):
    # bc/bs: [1, fn+FRAME_PAD, 128] (zero-padded frames); vd: [1, fn+FRAME_PAD, 1]
    # enh/cln: [1, Tp/128, 128] lane-dense waveform tiles (zero-padded tail).
    bc = bc_ref[0, pl.ds(0, fn), :]                               # [fn, 128]
    bs = bs_ref[0, pl.ds(0, fn), :]
    vd = vd_ref[0, pl.ds(0, fn), :]                               # [fn, 1]
    dm = bc - bs
    row = lax.broadcasted_iota(jnp.int32, (fn, 1), 0)

    # ---- envelope loss (asymmetric, VAD-weighted) -> per-lane partial sums
    asym = jnp.where(dm > 0.0, dm, ETA * dm)
    env_row = jnp.sum(jnp.abs(asym * vd), axis=0, keepdims=True)  # [1, 128]

    # ---- speech-continuity differentials: O(F) shifted slices + boundary masks
    #   vel[f] = sum_k alpha_k * (m[f+k] - m[f]) for f < F-k ;
    #   acc[f] = beta_0*m[f] + sum_k beta_k * (m[f+k] - m[f]) for f < F-k ;
    #   (vel_c - vel_s) and (acc_c - acc_s) are linear in dm = m_c - m_s.
    vel_d = jnp.zeros_like(dm)
    acc_d = BETA[0] * dm
    for k in range(1, 5):
        dm_k = (bc_ref[0, pl.ds(k, fn), :]
                - bs_ref[0, pl.ds(k, fn), :])                     # dm[f+k] (zero past end)
        mask_k = (row < fn - k).astype(jnp.float32)
        term = (dm_k - dm) * mask_k
        vel_d = vel_d + ALPHA[k - 1] * term
        acc_d = acc_d + BETA[k] * term
    vel_row = jnp.sum(jnp.abs(vel_d) * vd, axis=0, keepdims=True)
    acc_row = jnp.sum(jnp.abs(acc_d) * vd, axis=0, keepdims=True)

    # ---- non-speech continuity: sum over tau in {-2,-1,1,2} of
    #   sum_f Vs[f] * |B_c[f] - B_c[(f-tau) mod F]|.
    # Folding +s and -s together gives an interior term weighted by
    # (Vs[g]+Vs[g+s]) plus s wrap-around rows (torch.roll is circular).
    vs = 1.0 - vd
    sil_row = jnp.zeros((1, MEL_PAD), jnp.float32)
    for s in (1, 2):
        bc_s = bc_ref[0, pl.ds(s, fn), :]                         # B_c[g+s]
        vs_s = 1.0 - vd_ref[0, pl.ds(s, fn), :]
        mask_s = (row < fn - s).astype(jnp.float32)
        interior = jnp.abs(bc_s - bc) * (vs_s + vs) * mask_s
        sil_row = sil_row + jnp.sum(interior, axis=0, keepdims=True)
        a = bc_ref[0, pl.ds(0, s), :]                             # wrap rows j < s
        b = bc_ref[0, pl.ds(fn - s, s), :]
        va = 1.0 - vd_ref[0, pl.ds(0, s), :]
        vb = 1.0 - vd_ref[0, pl.ds(fn - s, s), :]
        sil_row = sil_row + jnp.sum(jnp.abs(a - b) * (va + vb),
                                    axis=0, keepdims=True)

    # ---- SI-SNR denoising loss (sum-form, lane-dense tiles; padded zeros drop out)
    e = enh_ref[0]                                                # [Tp/128, 128]
    c = cln_ref[0]
    n = float(t_true)
    se = jnp.sum(e)
    sc = jnp.sum(c)
    see = jnp.sum(e * e)
    scc = jnp.sum(c * c)
    sec = jnp.sum(e * c)
    dot = sec - se * sc / n                                       # <e0, c0>
    te = scc - sc * sc / n                                        # ||c0||^2
    ee = see - se * se / n                                        # ||e0||^2
    a_coef = dot / (te + 1e-8)
    st_e = a_coef * a_coef * te                                   # ||s_target||^2
    en_e = jnp.maximum(ee - 2.0 * a_coef * dot + a_coef * a_coef * te, 0.0)
    si_val = 10.0 * jnp.log(jnp.maximum(st_e, 1e-30) / (en_e + 1e-8)) / np.log(10.0)

    # ---- pack per-lane partials into a lane-dense [8, 128] output block
    rsel = lax.broadcasted_iota(jnp.int32, (8, 1), 0)
    out = (jnp.where(rsel == 0, env_row, 0.0)
           + jnp.where(rsel == 1, vel_row, 0.0)
           + jnp.where(rsel == 2, acc_row, 0.0)
           + jnp.where(rsel == 3, sil_row, 0.0)
           + jnp.where(rsel == 4, si_val, 0.0))
    o_ref[0] = out


# ---------------- full NDALoss forward ----------------------------------------
def nda_loss(enhancedwav, cleanwav, w_mat, fb):
    B, T = enhancedwav.shape
    bc, bs, frame_e = mel_cbrt_pair(enhancedwav, cleanwav, w_mat, fb)
    Fn = bc.shape[1]
    Fp = Fn + FRAME_PAD

    # TODO(synk): v_activlev (ITU-T P.56 VAD from voicebox) has no JAX/Pallas
    # equivalent; substitute a deterministic frame-energy VAD at frame
    # resolution (this also replaces the F.avg_pool1d downsampling).
    thr = 0.5 * jnp.mean(frame_e, axis=-1, keepdims=True)
    vd = (frame_e > thr).astype(jnp.float32)[..., None]           # [B, Fn, 1]

    # zero-pad the frame axis so in-kernel shifted slices stay in-bounds
    bc_p = jnp.pad(bc, ((0, 0), (0, Fp - Fn), (0, 0)))
    bs_p = jnp.pad(bs, ((0, 0), (0, Fp - Fn), (0, 0)))
    vd_p = jnp.pad(vd, ((0, 0), (0, Fp - Fn), (0, 0)))

    # lane-dense waveform tiles for SI-SNR (zero-padded tail; sum-form is exact)
    Tp = pl.cdiv(T, 1024) * 1024
    enh2 = jnp.pad(enhancedwav, ((0, 0), (0, Tp - T))).reshape(B, Tp // 128, 128)
    cln2 = jnp.pad(cleanwav, ((0, 0), (0, Tp - T))).reshape(B, Tp // 128, 128)

    kernel = functools.partial(nda_loss_kernel, fn=Fn, t_true=T)
    partial = pl.pallas_call(
        kernel,
        out_shape=jax.ShapeDtypeStruct((B, 8, MEL_PAD), jnp.float32),
        grid=(B,),
        in_specs=[
            pl.BlockSpec((1, Fp, MEL_PAD), lambda b: (b, 0, 0)),
            pl.BlockSpec((1, Fp, MEL_PAD), lambda b: (b, 0, 0)),
            pl.BlockSpec((1, Fp, 1), lambda b: (b, 0, 0)),
            pl.BlockSpec((1, Tp // 128, 128), lambda b: (b, 0, 0)),
            pl.BlockSpec((1, Tp // 128, 128), lambda b: (b, 0, 0)),
        ],
        out_specs=pl.BlockSpec((1, 8, MEL_PAD), lambda b: (b, 0, 0)),
        compiler_params=pltpu.CompilerParams(dimension_semantics=("parallel",)),
    )(bc_p, bs_p, vd_p, enh2, cln2)

    # Final combination: trivial scalar math in JAX (means over B*80*F elements
    # match torch.mean over [B, n_mels, F]; padded lanes/rows contribute zero).
    n_el = float(B * N_MELS * Fn)
    env_sum = jnp.sum(partial[:, 0, :])
    vel_sum = jnp.sum(partial[:, 1, :])
    acc_sum = jnp.sum(partial[:, 2, :])
    sil_sum = jnp.sum(partial[:, 3, :])
    si_per_batch = partial[:, 4, 0]

    l_env = env_sum / n_el
    l_sp = (vel_sum + acc_sum) / n_el
    l_sil = sil_sum / n_el
    sisnr_loss = -jnp.mean(si_per_batch)
    return sisnr_loss + GAMMA * l_env + MU * l_sp + OMEGA * l_sil


if __name__ == "__main__":
    key = jax.random.PRNGKey(0)
    k1, k2 = jax.random.split(key)
    B, T = 2, 4096                                                # small test shapes
    cleanwav = 0.1 * jax.random.normal(k1, (B, T), dtype=jnp.float32)
    enhancedwav = cleanwav + 0.03 * jax.random.normal(k2, (B, T), dtype=jnp.float32)

    # bf16 constants -> native MXU path (f32 accumulation inside the kernel)
    w_mat = jnp.asarray(_dft_window_matrix(), dtype=jnp.bfloat16)  # [512, 768]
    fb = jnp.asarray(_mel_filterbank(), dtype=jnp.bfloat16)        # [384, 128]

    loss = jax.jit(nda_loss)(enhancedwav, cleanwav, w_mat, fb)
    jax.block_until_ready(loss)
    print("KERNEL_OK")
</pallas_src>

<mosaic_0001>
module attributes {stable_mosaic.version = 11 : i64} {
  func.func @melspec_kernel(%arg0: i32, %arg1: memref<256x512xbf16, #tpu.memory_space<vmem>>, %arg2: memref<512x768xbf16, #tpu.memory_space<vmem>>, %arg3: memref<384x128xbf16, #tpu.memory_space<vmem>>, %arg4: memref<256x128xf32, #tpu.memory_space<vmem>>) attributes {dimension_semantics = [#tpu.dimension_semantics<parallel>], iteration_bounds = array<i64: 1>, scalar_prefetch = 0 : i64, scratch_operands = 0 : i64, tpu.core_type = #tpu.core_type<tc>, window_params = [{transform_indices = @transform_0, window_bounds = array<i64: 256, 512>}, {pipeline_mode = #tpu.pipeline_mode<synchronous>, transform_indices = @transform_1, window_bounds = array<i64: 512, 768>}, {pipeline_mode = #tpu.pipeline_mode<synchronous>, transform_indices = @transform_2, window_bounds = array<i64: 384, 128>}, {transform_indices = @transform_3, window_bounds = array<i64: 256, 128>}]} {
    %c0 = arith.constant 0 : index
    %c0_0 = arith.constant 0 : index
    %0 = vector.load %arg1[%c0, %c0_0] : memref<256x512xbf16, #tpu.memory_space<vmem>>, vector<256x512xbf16>
    %c0_1 = arith.constant 0 : index
    %c0_2 = arith.constant 0 : index
    %1 = vector.load %arg2[%c0_1, %c0_2] : memref<512x768xbf16, #tpu.memory_space<vmem>>, vector<512x768xbf16>
    %cst = arith.constant dense<0.000000e+00> : vector<256x768xf32>
    %2 = tpu.matmul %0, %1, %cst {dimension_numbers = #tpu.dot_dimension_numbers<[1], [0], [0], [1], [0, 0, 1, 1], [], []>} : vector<256x512xbf16>, vector<512x768xbf16>, vector<256x768xf32> -> vector<256x768xf32>
    %3 = vector.extract_strided_slice %2 {offsets = [0, 0], sizes = [256, 384], strides = [1, 1]} : vector<256x768xf32> to vector<256x384xf32>
    %4 = vector.extract_strided_slice %2 {offsets = [0, 384], sizes = [256, 384], strides = [1, 1]} : vector<256x768xf32> to vector<256x384xf32>
    %5 = arith.mulf %3, %3 : vector<256x384xf32>
    %6 = arith.mulf %4, %4 : vector<256x384xf32>
    %7 = arith.addf %5, %6 : vector<256x384xf32>
    %8 = math.sqrt %7 : vector<256x384xf32>
    %9 = arith.truncf %8 : vector<256x384xf32> to vector<256x384xbf16>
    %c0_3 = arith.constant 0 : index
    %c0_4 = arith.constant 0 : index
    %10 = vector.load %arg3[%c0_3, %c0_4] : memref<384x128xbf16, #tpu.memory_space<vmem>>, vector<384x128xbf16>
    %cst_5 = arith.constant dense<0.000000e+00> : vector<256x128xf32>
    %11 = tpu.matmul %9, %10, %cst_5 {dimension_numbers = #tpu.dot_dimension_numbers<[1], [0], [0], [1], [0, 0, 1, 1], [], []>} : vector<256x384xbf16>, vector<384x128xbf16>, vector<256x128xf32> -> vector<256x128xf32>
    %cst_6 = arith.constant 0.000000e+00 : f32
    %12 = vector.broadcast %cst_6 : f32 to vector<256x128xf32>
    %13 = arith.maximumf %11, %12 : vector<256x128xf32>
    %cst_7 = arith.constant 0.000000e+00 : f32
    %14 = vector.broadcast %cst_7 : f32 to vector<256x128xf32>
    %15 = arith.cmpf ogt, %13, %14 : vector<256x128xf32>
    %cst_8 = arith.constant 1.000000e-30 : f32
    %16 = vector.broadcast %cst_8 : f32 to vector<256x128xf32>
    %17 = arith.maximumf %13, %16 : vector<256x128xf32>
    %18 = math.log %17 : vector<256x128xf32>
    %cst_9 = arith.constant 0.333333343 : f32
    %19 = vector.broadcast %cst_9 : f32 to vector<256x128xf32>
    %20 = arith.mulf %18, %19 : vector<256x128xf32>
    %21 = math.exp %20 : vector<256x128xf32>
    %cst_10 = arith.constant 0.000000e+00 : f32
    %22 = vector.broadcast %cst_10 : f32 to vector<256x128xf32>
    %23 = arith.select %15, %21, %22 : vector<256x128xi1>, vector<256x128xf32>
    %c0_11 = arith.constant 0 : index
    %c0_12 = arith.constant 0 : index
    %24 = vector.load %arg4[%c0_11, %c0_12] : memref<256x128xf32, #tpu.memory_space<vmem>>, vector<256x128xf32>
    tpu.vector_store %arg4[%c0_11, %c0_12], %23 {strides = array<i32>} : memref<256x128xf32, #tpu.memory_space<vmem>>, vector<256x128xf32>,
    return
  }
  func.func @transform_0(%arg0: i32) -> (i32, i32) {
    %c0_i32 = arith.constant 0 : i32
    %c0_i32_0 = arith.constant 0 : i32
    return %arg0, %c0_i32 : i32, i32
  }
  func.func @transform_1(%arg0: i32) -> (i32, i32) {
    %c0_i32 = arith.constant 0 : i32
    %c0_i32_0 = arith.constant 0 : i32
    %c0_i32_1 = arith.constant 0 : i32
    return %c0_i32, %c0_i32_0 : i32, i32
  }
  func.func @transform_2(%arg0: i32) -> (i32, i32) {
    %c0_i32 = arith.constant 0 : i32
    %c0_i32_0 = arith.constant 0 : i32
    %c0_i32_1 = arith.constant 0 : i32
    return %c0_i32, %c0_i32_0 : i32, i32
  }
  func.func @transform_3(%arg0: i32) -> (i32, i32) {
    %c0_i32 = arith.constant 0 : i32
    %c0_i32_0 = arith.constant 0 : i32
    return %arg0, %c0_i32 : i32, i32
  }
}

module attributes {stable_mosaic.version = 11 : i64} {
  func.func @nda_loss_kernel(%arg0: i32, %arg1: memref<1x25x128xf32, #tpu.memory_space<vmem>>, %arg2: memref<1x25x128xf32, #tpu.memory_space<vmem>>, %arg3: memref<1x25x1xf32, #tpu.memory_space<vmem>>, %arg4: memref<1x32x128xf32, #tpu.memory_space<vmem>>, %arg5: memref<1x32x128xf32, #tpu.memory_space<vmem>>, %arg6: memref<1x8x128xf32, #tpu.memory_space<vmem>>) attributes {dimension_semantics = [#tpu.dimension_semantics<parallel>], iteration_bounds = array<i64: 2>, scalar_prefetch = 0 : i64, scratch_operands = 0 : i64, tpu.core_type = #tpu.core_type<tc>, window_params = [{transform_indices = @transform_0, window_bounds = array<i64: 1, 25, 128>}, {transform_indices = @transform_1, window_bounds = array<i64: 1, 25, 128>}, {transform_indices = @transform_2, window_bounds = array<i64: 1, 25, 1>}, {transform_indices = @transform_3, window_bounds = array<i64: 1, 32, 128>}, {transform_indices = @transform_4, window_bounds = array<i64: 1, 32, 128>}, {transform_indices = @transform_5, window_bounds = array<i64: 1, 8, 128>}]} {
    %c0 = arith.constant 0 : index
    %c0_0 = arith.constant 0 : index
    %c0_1 = arith.constant 0 : index
    %0 = vector.load %arg1[%c0, %c0_0, %c0_1] : memref<1x25x128xf32, #tpu.memory_space<vmem>>, vector<1x17x128xf32>
    %1 = vector.shape_cast %0 : vector<1x17x128xf32> to vector<17x128xf32>
    %c0_2 = arith.constant 0 : index
    %c0_3 = arith.constant 0 : index
    %c0_4 = arith.constant 0 : index
    %2 = vector.load %arg2[%c0_2, %c0_3, %c0_4] : memref<1x25x128xf32, #tpu.memory_space<vmem>>, vector<1x17x128xf32>
    %3 = vector.shape_cast %2 : vector<1x17x128xf32> to vector<17x128xf32>
    %c0_5 = arith.constant 0 : index
    %c0_6 = arith.constant 0 : index
    %c0_7 = arith.constant 0 : index
    %4 = vector.load %arg3[%c0_5, %c0_6, %c0_7] : memref<1x25x1xf32, #tpu.memory_space<vmem>>, vector<1x17x1xf32>
    %5 = vector.shape_cast %4 : vector<1x17x1xf32> to vector<17x1xf32>
    %6 = arith.subf %1, %3 : vector<17x128xf32>
    %7 = tpu.iota {dimensions = array<i32: 0>} : vector<17x1xi32>
    %cst = arith.constant 0.000000e+00 : f32
    %8 = vector.broadcast %cst : f32 to vector<17x128xf32>
    %9 = arith.cmpf ogt, %6, %8 : vector<17x128xf32>
    %cst_8 = arith.constant 3.000000e+00 : f32
    %10 = vector.broadcast %cst_8 : f32 to vector<17x128xf32>
    %11 = arith.mulf %10, %6 : vector<17x128xf32>
    %12 = arith.select %9, %6, %11 : vector<17x128xi1>, vector<17x128xf32>
    %13 = vector.broadcast %5 : vector<17x1xf32> to vector<17x128xf32>
    %14 = arith.mulf %12, %13 : vector<17x128xf32>
    %15 = math.absf %14 : vector<17x128xf32>
    %cst_9 = arith.constant dense<0.000000e+00> : vector<128xf32>
    %16 = vector.multi_reduction <add>, %15, %cst_9 [0] : vector<17x128xf32> to vector<128xf32>
    %17 = vector.shape_cast %16 : vector<128xf32> to vector<1x128xf32>
    %cst_10 = arith.constant 0.000000e+00 : f32
    %18 = vector.broadcast %cst_10 : f32 to vector<17x128xf32>
    %cst_11 = arith.constant -3.571930e-01 : f32
    %19 = vector.broadcast %cst_11 : f32 to vector<17x128xf32>
    %20 = arith.mulf %19, %6 : vector<17x128xf32>
    %c0_12 = arith.constant 0 : index
    %c1 = arith.constant 1 : index
    %c0_13 = arith.constant 0 : index
    %21 = vector.load %arg1[%c0_12, %c1, %c0_13] : memref<1x25x128xf32, #tpu.memory_space<vmem>>, vector<1x17x128xf32>
    %22 = vector.shape_cast %21 : vector<1x17x128xf32> to vector<17x128xf32>
    %c0_14 = arith.constant 0 : index
    %c1_15 = arith.constant 1 : index
    %c0_16 = arith.constant 0 : index
    %23 = vector.load %arg2[%c0_14, %c1_15, %c0_16] : memref<1x25x128xf32, #tpu.memory_space<vmem>>, vector<1x17x128xf32>
    %24 = vector.shape_cast %23 : vector<1x17x128xf32> to vector<17x128xf32>
    %25 = arith.subf %22, %24 : vector<17x128xf32>
    %c16_i32 = arith.constant 16 : i32
    %26 = vector.broadcast %c16_i32 : i32 to vector<17x1xi32>
    %27 = arith.cmpi slt, %7, %26 : vector<17x1xi32>
    %28 = arith.extui %27 : vector<17x1xi1> to vector<17x1xi32>
    %29 = arith.sitofp %28 : vector<17x1xi32> to vector<17x1xf32>
    %30 = arith.subf %25, %6 : vector<17x128xf32>
    %31 = vector.broadcast %29 : vector<17x1xf32> to vector<17x128xf32>
    %32 = arith.mulf %30, %31 : vector<17x128xf32>
    %cst_17 = arith.constant 2.500000e-01 : f32
    %33 = vector.broadcast %cst_17 : f32 to vector<17x128xf32>
    %34 = arith.mulf %33, %32 : vector<17x128xf32>
    %35 = arith.addf %18, %34 : vector<17x128xf32>
    %cst_18 = arith.constant -0.607142984 : f32
    %36 = vector.broadcast %cst_18 : f32 to vector<17x128xf32>
    %37 = arith.mulf %36, %32 : vector<17x128xf32>
    %38 = arith.addf %20, %37 : vector<17x128xf32>
    %c0_19 = arith.constant 0 : index
    %c2 = arith.constant 2 : index
    %c0_20 = arith.constant 0 : index
    %39 = vector.load %arg1[%c0_19, %c2, %c0_20] : memref<1x25x128xf32, #tpu.memory_space<vmem>>, vector<1x17x128xf32>
    %40 = vector.shape_cast %39 : vector<1x17x128xf32> to vector<17x128xf32>
    %c0_21 = arith.constant 0 : index
    %c2_22 = arith.constant 2 : index
    %c0_23 = arith.constant 0 : index
    %41 = vector.load %arg2[%c0_21, %c2_22, %c0_23] : memref<1x25x128xf32, #tpu.memory_space<vmem>>, vector<1x17x128xf32>
    %42 = vector.shape_cast %41 : vector<1x17x128xf32> to vector<17x128xf32>
    %43 = arith.subf %40, %42 : vector<17x128xf32>
    %c15_i32 = arith.constant 15 : i32
    %44 = vector.broadcast %c15_i32 : i32 to vector<17x1xi32>
    %45 = arith.cmpi slt, %7, %44 : vector<17x1xi32>
    %46 = arith.extui %45 : vector<17x1xi1> to vector<17x1xi32>
    %47 = arith.sitofp %46 : vector<17x1xi32> to vector<17x1xf32>
    %48 = arith.subf %43, %6 : vector<17x128xf32>
    %49 = vector.broadcast %47 : vector<17x1xf32> to vector<17x128xf32>
    %50 = arith.mulf %48, %49 : vector<17x128xf32>
    %cst_24 = arith.constant 5.000000e-01 : f32
    %51 = vector.broadcast %cst_24 : f32 to vector<17x128xf32>
    %52 = arith.mulf %51, %50 : vector<17x128xf32>
    %53 = arith.addf %35, %52 : vector<17x128xf32>
    %cst_25 = arith.constant -2.857140e-01 : f32
    %54 = vector.broadcast %cst_25 : f32 to vector<17x128xf32>
    %55 = arith.mulf %54, %50 : vector<17x128xf32>
    %56 = arith.addf %38, %55 : vector<17x128xf32>
    %c0_26 = arith.constant 0 : index
    %c3 = arith.constant 3 : index
    %c0_27 = arith.constant 0 : index
    %57 = vector.load %arg1[%c0_26, %c3, %c0_27] : memref<1x25x128xf32, #tpu.memory_space<vmem>>, vector<1x17x128xf32>
    %58 = vector.shape_cast %57 : vector<1x17x128xf32> to vector<17x128xf32>
    %c0_28 = arith.constant 0 : index
    %c3_29 = arith.constant 3 : index
    %c0_30 = arith.constant 0 : index
    %59 = vector.load %arg2[%c0_28, %c3_29, %c0_30] : memref<1x25x128xf32, #tpu.memory_space<vmem>>, vector<1x17x128xf32>
    %60 = vector.shape_cast %59 : vector<1x17x128xf32> to vector<17x128xf32>
    %61 = arith.subf %58, %60 : vector<17x128xf32>
    %c14_i32 = arith.constant 14 : i32
    %62 = vector.broadcast %c14_i32 : i32 to vector<17x1xi32>
    %63 = arith.cmpi slt, %7, %62 : vector<17x1xi32>
    %64 = arith.extui %63 : vector<17x1xi1> to vector<17x1xi32>
    %65 = arith.sitofp %64 : vector<17x1xi32> to vector<17x1xf32>
    %66 = arith.subf %61, %6 : vector<17x128xf32>
    %67 = vector.broadcast %65 : vector<17x1xf32> to vector<17x128xf32>
    %68 = arith.mulf %66, %67 : vector<17x128xf32>
    %cst_31 = arith.constant 7.500000e-01 : f32
    %69 = vector.broadcast %cst_31 : f32 to vector<17x128xf32>
    %70 = arith.mulf %69, %68 : vector<17x128xf32>
    %71 = arith.addf %53, %70 : vector<17x128xf32>
    %cst_32 = arith.constant 2.500000e-01 : f32
    %72 = vector.broadcast %cst_32 : f32 to vector<17x128xf32>
    %73 = arith.mulf %72, %68 : vector<17x128xf32>
    %74 = arith.addf %56, %73 : vector<17x128xf32>
    %c0_33 = arith.constant 0 : index
    %c4 = arith.constant 4 : index
    %c0_34 = arith.constant 0 : index
    %75 = vector.load %arg1[%c0_33, %c4, %c0_34] : memref<1x25x128xf32, #tpu.memory_space<vmem>>, vector<1x17x128xf32>
    %76 = vector.shape_cast %75 : vector<1x17x128xf32> to vector<17x128xf32>
    %c0_35 = arith.constant 0 : index
    %c4_36 = arith.constant 4 : index
    %c0_37 = arith.constant 0 : index
    %77 = vector.load %arg2[%c0_35, %c4_36, %c0_37] : memref<1x25x128xf32, #tpu.memory_space<vmem>>, vector<1x17x128xf32>
    %78 = vector.shape_cast %77 : vector<1x17x128xf32> to vector<17x128xf32>
    %79 = arith.subf %76, %78 : vector<17x128xf32>
    %c13_i32 = arith.constant 13 : i32
    %80 = vector.broadcast %c13_i32 : i32 to vector<17x1xi32>
    %81 = arith.cmpi slt, %7, %80 : vector<17x1xi32>
    %82 = arith.extui %81 : vector<17x1xi1> to vector<17x1xi32>
    %83 = arith.sitofp %82 : vector<17x1xi32> to vector<17x1xf32>
    %84 = arith.subf %79, %6 : vector<17x128xf32>
    %85 = vector.broadcast %83 : vector<17x1xf32> to vector<17x128xf32>
    %86 = arith.mulf %84, %85 : vector<17x128xf32>
    %cst_38 = arith.constant 1.000000e+00 : f32
    %87 = vector.broadcast %cst_38 : f32 to vector<17x128xf32>
    %88 = arith.mulf %87, %86 : vector<17x128xf32>
    %89 = arith.addf %71, %88 : vector<17x128xf32>
    %cst_39 = arith.constant 1.000000e+00 : f32
    %90 = vector.broadcast %cst_39 : f32 to vector<17x128xf32>
    %91 = arith.mulf %90, %86 : vector<17x128xf32>
    %92 = arith.addf %74, %91 : vector<17x128xf32>
    %93 = math.absf %89 : vector<17x128xf32>
    %94 = vector.broadcast %5 : vector<17x1xf32> to vector<17x128xf32>
    %95 = arith.mulf %93, %94 : vector<17x128xf32>
    %cst_40 = arith.constant dense<0.000000e+00> : vector<128xf32>
    %96 = vector.multi_reduction <add>, %95, %cst_40 [0] : vector<17x128xf32> to vector<128xf32>
    %97 = vector.shape_cast %96 : vector<128xf32> to vector<1x128xf32>
    %98 = math.absf %92 : vector<17x128xf32>
    %99 = vector.broadcast %5 : vector<17x1xf32> to vector<17x128xf32>
    %100 = arith.mulf %98, %99 : vector<17x128xf32>
    %cst_41 = arith.constant dense<0.000000e+00> : vector<128xf32>
    %101 = vector.multi_reduction <add>, %100, %cst_41 [0] : vector<17x128xf32> to vector<128xf32>
    %102 = vector.shape_cast %101 : vector<128xf32> to vector<1x128xf32>
    %cst_42 = arith.constant 1.000000e+00 : f32
    %103 = vector.broadcast %cst_42 : f32 to vector<17x1xf32>
    %104 = arith.subf %103, %5 : vector<17x1xf32>
    %cst_43 = arith.constant 0.000000e+00 : f32
    %105 = vector.broadcast %cst_43 : f32 to vector<1x128xf32>
    %c0_44 = arith.constant 0 : index
    %c1_45 = arith.constant 1 : index
    %c0_46 = arith.constant 0 : index
    %106 = vector.load %arg1[%c0_44, %c1_45, %c0_46] : memref<1x25x128xf32, #tpu.memory_space<vmem>>, vector<1x17x128xf32>
    %107 = vector.shape_cast %106 : vector<1x17x128xf32> to vector<17x128xf32>
    %c0_47 = arith.constant 0 : index
    %c1_48 = arith.constant 1 : index
    %c0_49 = arith.constant 0 : index
    %108 = vector.load %arg3[%c0_47, %c1_48, %c0_49] : memref<1x25x1xf32, #tpu.memory_space<vmem>>, vector<1x17x1xf32>
    %109 = vector.shape_cast %108 : vector<1x17x1xf32> to vector<17x1xf32>
    %cst_50 = arith.constant 1.000000e+00 : f32
    %110 = vector.broadcast %cst_50 : f32 to vector<17x1xf32>
    %111 = arith.subf %110, %109 : vector<17x1xf32>
    %c16_i32_51 = arith.constant 16 : i32
    %112 = vector.broadcast %c16_i32_51 : i32 to vector<17x1xi32>
    %113 = arith.cmpi slt, %7, %112 : vector<17x1xi32>
    %114 = arith.extui %113 : vector<17x1xi1> to vector<17x1xi32>
    %115 = arith.sitofp %114 : vector<17x1xi32> to vector<17x1xf32>
    %116 = arith.subf %107, %1 : vector<17x128xf32>
    %117 = math.absf %116 : vector<17x128xf32>
    %118 = arith.addf %111, %104 : vector<17x1xf32>
    %119 = vector.broadcast %118 : vector<17x1xf32> to vector<17x128xf32>
    %120 = arith.mulf %117, %119 : vector<17x128xf32>
    %121 = vector.broadcast %115 : vector<17x1xf32> to vector<17x128xf32>
    %122 = arith.mulf %120, %121 : vector<17x128xf32>
    %cst_52 = arith.constant dense<0.000000e+00> : vector<128xf32>
    %123 = vector.multi_reduction <add>, %122, %cst_52 [0] : vector<17x128xf32> to vector<128xf32>
    %124 = vector.shape_cast %123 : vector<128xf32> to vector<1x128xf32>
    %125 = arith.addf %105, %124 : vector<1x128xf32>
    %c0_53 = arith.constant 0 : index
    %c0_54 = arith.constant 0 : index
    %c0_55 = arith.constant 0 : index
    %126 = vector.load %arg1[%c0_53, %c0_54, %c0_55] : memref<1x25x128xf32, #tpu.memory_space<vmem>>, vector<1x1x128xf32>
    %127 = vector.shape_cast %126 : vector<1x1x128xf32> to vector<1x128xf32>
    %c0_56 = arith.constant 0 : index
    %c16 = arith.constant 16 : index
    %c0_57 = arith.constant 0 : index
    %128 = vector.load %arg1[%c0_56, %c16, %c0_57] : memref<1x25x128xf32, #tpu.memory_space<vmem>>, vector<1x1x128xf32>
    %129 = vector.shape_cast %128 : vector<1x1x128xf32> to vector<1x128xf32>
    %c0_58 = arith.constant 0 : index
    %c0_59 = arith.constant 0 : index
    %c0_60 = arith.constant 0 : index
    %130 = vector.load %arg3[%c0_58, %c0_59, %c0_60] : memref<1x25x1xf32, #tpu.memory_space<vmem>>, vector<1x1x1xf32>
    %131 = vector.shape_cast %130 : vector<1x1x1xf32> to vector<1x1xf32>
    %cst_61 = arith.constant 1.000000e+00 : f32
    %132 = vector.broadcast %cst_61 : f32 to vector<1x1xf32>
    %133 = arith.subf %132, %131 : vector<1x1xf32>
    %c0_62 = arith.constant 0 : index
    %c16_63 = arith.constant 16 : index
    %c0_64 = arith.constant 0 : index
    %134 = vector.load %arg3[%c0_62, %c16_63, %c0_64] : memref<1x25x1xf32, #tpu.memory_space<vmem>>, vector<1x1x1xf32>
    %135 = vector.shape_cast %134 : vector<1x1x1xf32> to vector<1x1xf32>
    %cst_65 = arith.constant 1.000000e+00 : f32
    %136 = vector.broadcast %cst_65 : f32 to vector<1x1xf32>
    %137 = arith.subf %136, %135 : vector<1x1xf32>
    %138 = arith.subf %127, %129 : vector<1x128xf32>
    %139 = math.absf %138 : vector<1x128xf32>
    %140 = arith.addf %133, %137 : vector<1x1xf32>
    %141 = vector.broadcast %140 : vector<1x1xf32> to vector<1x128xf32>
    %142 = arith.mulf %139, %141 : vector<1x128xf32>
    %cst_66 = arith.constant dense<0.000000e+00> : vector<128xf32>
    %143 = vector.multi_reduction <add>, %142, %cst_66 [0] : vector<1x128xf32> to vector<128xf32>
    %144 = vector.shape_cast %143 : vector<128xf32> to vector<1x128xf32>
    %145 = arith.addf %125, %144 : vector<1x128xf32>
    %c0_67 = arith.constant 0 : index
    %c2_68 = arith.constant 2 : index
    %c0_69 = arith.constant 0 : index
    %146 = vector.load %arg1[%c0_67, %c2_68, %c0_69] : memref<1x25x128xf32, #tpu.memory_space<vmem>>, vector<1x17x128xf32>
    %147 = vector.shape_cast %146 : vector<1x17x128xf32> to vector<17x128xf32>
    %c0_70 = arith.constant 0 : index
    %c2_71 = arith.constant 2 : index
    %c0_72 = arith.constant 0 : index
    %148 = vector.load %arg3[%c0_70, %c2_71, %c0_72] : memref<1x25x1xf32, #tpu.memory_space<vmem>>, vector<1x17x1xf32>
    %149 = vector.shape_cast %148 : vector<1x17x1xf32> to vector<17x1xf32>
    %cst_73 = arith.constant 1.000000e+00 : f32
    %150 = vector.broadcast %cst_73 : f32 to vector<17x1xf32>
    %151 = arith.subf %150, %149 : vector<17x1xf32>
    %c15_i32_74 = arith.constant 15 : i32
    %152 = vector.broadcast %c15_i32_74 : i32 to vector<17x1xi32>
    %153 = arith.cmpi slt, %7, %152 : vector<17x1xi32>
    %154 = arith.extui %153 : vector<17x1xi1> to vector<17x1xi32>
    %155 = arith.sitofp %154 : vector<17x1xi32> to vector<17x1xf32>
    %156 = arith.subf %147, %1 : vector<17x128xf32>
    %157 = math.absf %156 : vector<17x128xf32>
    %158 = arith.addf %151, %104 : vector<17x1xf32>
    %159 = vector.broadcast %158 : vector<17x1xf32> to vector<17x128xf32>
    %160 = arith.mulf %157, %159 : vector<17x128xf32>
    %161 = vector.broadcast %155 : vector<17x1xf32> to vector<17x128xf32>
    %162 = arith.mulf %160, %161 : vector<17x128xf32>
    %cst_75 = arith.constant dense<0.000000e+00> : vector<128xf32>
    %163 = vector.multi_reduction <add>, %162, %cst_75 [0] : vector<17x128xf32> to vector<128xf32>
    %164 = vector.shape_cast %163 : vector<128xf32> to vector<1x128xf32>
    %165 = arith.addf %145, %164 : vector<1x128xf32>
    %c0_76 = arith.constant 0 : index
    %c0_77 = arith.constant 0 : index
    %c0_78 = arith.constant 0 : index
    %166 = vector.load %arg1[%c0_76, %c0_77, %c0_78] : memref<1x25x128xf32, #tpu.memory_space<vmem>>, vector<1x2x128xf32>
    %167 = vector.shape_cast %166 : vector<1x2x128xf32> to vector<2x128xf32>
    %c0_79 = arith.constant 0 : index
    %c15 = arith.constant 15 : index
    %c0_80 = arith.constant 0 : index
    %168 = vector.load %arg1[%c0_79, %c15, %c0_80] : memref<1x25x128xf32, #tpu.memory_space<vmem>>, vector<1x2x128xf32>
    %169 = vector.shape_cast %168 : vector<1x2x128xf32> to vector<2x128xf32>
    %c0_81 = arith.constant 0 : index
    %c0_82 = arith.constant 0 : index
    %c0_83 = arith.constant 0 : index
    %170 = vector.load %arg3[%c0_81, %c0_82, %c0_83] : memref<1x25x1xf32, #tpu.memory_space<vmem>>, vector<1x2x1xf32>
    %171 = vector.shape_cast %170 : vector<1x2x1xf32> to vector<2x1xf32>
    %cst_84 = arith.constant 1.000000e+00 : f32
    %172 = vector.broadcast %cst_84 : f32 to vector<2x1xf32>
    %173 = arith.subf %172, %171 : vector<2x1xf32>
    %c0_85 = arith.constant 0 : index
    %c15_86 = arith.constant 15 : index
    %c0_87 = arith.constant 0 : index
    %174 = vector.load %arg3[%c0_85, %c15_86, %c0_87] : memref<1x25x1xf32, #tpu.memory_space<vmem>>, vector<1x2x1xf32>
    %175 = vector.shape_cast %174 : vector<1x2x1xf32> to vector<2x1xf32>
    %cst_88 = arith.constant 1.000000e+00 : f32
    %176 = vector.broadcast %cst_88 : f32 to vector<2x1xf32>
    %177 = arith.subf %176, %175 : vector<2x1xf32>
    %178 = arith.subf %167, %169 : vector<2x128xf32>
    %179 = math.absf %178 : vector<2x128xf32>
    %180 = arith.addf %173, %177 : vector<2x1xf32>
    %181 = vector.broadcast %180 : vector<2x1xf32> to vector<2x128xf32>
    %182 = arith.mulf %179, %181 : vector<2x128xf32>
    %cst_89 = arith.constant dense<0.000000e+00> : vector<128xf32>
    %183 = vector.multi_reduction <add>, %182, %cst_89 [0] : vector<2x128xf32> to vector<128xf32>
    %184 = vector.shape_cast %183 : vector<128xf32> to vector<1x128xf32>
    %185 = arith.addf %165, %184 : vector<1x128xf32>
    %c0_90 = arith.constant 0 : index
    %c0_91 = arith.constant 0 : index
    %c0_92 = arith.constant 0 : index
    %186 = vector.load %arg4[%c0_90, %c0_91, %c0_92] : memref<1x32x128xf32, #tpu.memory_space<vmem>>, vector<1x32x128xf32>
    %187 = vector.shape_cast %186 : vector<1x32x128xf32> to vector<32x128xf32>
    %c0_93 = arith.constant 0 : index
    %c0_94 = arith.constant 0 : index
    %c0_95 = arith.constant 0 : index
    %188 = vector.load %arg5[%c0_93, %c0_94, %c0_95] : memref<1x32x128xf32, #tpu.memory_space<vmem>>, vector<1x32x128xf32>
    %189 = vector.shape_cast %188 : vector<1x32x128xf32> to vector<32x128xf32>
    %190 = vector.shape_cast %187 : vector<32x128xf32> to vector<1x32x128xf32>
    %cst_96 = arith.constant dense<0.000000e+00> : vector<1xf32>
    %191 = vector.multi_reduction <add>, %190, %cst_96 [1, 2] : vector<1x32x128xf32> to vector<1xf32>
    %192 = vector.shape_cast %191 : vector<1xf32> to vector<1x1x1xf32>
    %193 = vector.extract %192[0, 0, 0] : f32 from vector<1x1x1xf32>
    %194 = vector.shape_cast %189 : vector<32x128xf32> to vector<1x32x128xf32>
    %cst_97 = arith.constant dense<0.000000e+00> : vector<1xf32>
    %195 = vector.multi_reduction <add>, %194, %cst_97 [1, 2] : vector<1x32x128xf32> to vector<1xf32>
    %196 = vector.shape_cast %195 : vector<1xf32> to vector<1x1x1xf32>
    %197 = vector.extract %196[0, 0, 0] : f32 from vector<1x1x1xf32>
    %198 = arith.mulf %187, %187 : vector<32x128xf32>
    %199 = vector.shape_cast %198 : vector<32x128xf32> to vector<1x32x128xf32>
    %cst_98 = arith.constant dense<0.000000e+00> : vector<1xf32>
    %200 = vector.multi_reduction <add>, %199, %cst_98 [1, 2] : vector<1x32x128xf32> to vector<1xf32>
    %201 = vector.shape_cast %200 : vector<1xf32> to vector<1x1x1xf32>
    %202 = vector.extract %201[0, 0, 0] : f32 from vector<1x1x1xf32>
    %203 = arith.mulf %189, %189 : vector<32x128xf32>
    %204 = vector.shape_cast %203 : vector<32x128xf32> to vector<1x32x128xf32>
    %cst_99 = arith.constant dense<0.000000e+00> : vector<1xf32>
    %205 = vector.multi_reduction <add>, %204, %cst_99 [1, 2] : vector<1x32x128xf32> to vector<1xf32>
    %206 = vector.shape_cast %205 : vector<1xf32> to vector<1x1x1xf32>
    %207 = vector.extract %206[0, 0, 0] : f32 from vector<1x1x1xf32>
    %208 = arith.mulf %187, %189 : vector<32x128xf32>
    %209 = vector.shape_cast %208 : vector<32x128xf32> to vector<1x32x128xf32>
    %cst_100 = arith.constant dense<0.000000e+00> : vector<1xf32>
    %210 = vector.multi_reduction <add>, %209, %cst_100 [1, 2] : vector<1x32x128xf32> to vector<1xf32>
    %211 = vector.shape_cast %210 : vector<1xf32> to vector<1x1x1xf32>
    %212 = vector.extract %211[0, 0, 0] : f32 from vector<1x1x1xf32>
    %213 = arith.mulf %193, %197 : f32
    %cst_101 = arith.constant 4.096000e+03 : f32
    %214 = arith.divf %213, %cst_101 : f32
    %215 = arith.subf %212, %214 : f32
    %216 = arith.mulf %197, %197 : f32
    %cst_102 = arith.constant 4.096000e+03 : f32
    %217 = arith.divf %216, %cst_102 : f32
    %218 = arith.subf %207, %217 : f32
    %219 = arith.mulf %193, %193 : f32
    %cst_103 = arith.constant 4.096000e+03 : f32
    %220 = arith.divf %219, %cst_103 : f32
    %221 = arith.subf %202, %220 : f32
    %cst_104 = arith.constant 9.99999993E-9 : f32
    %222 = arith.addf %218, %cst_104 : f32
    %223 = arith.divf %215, %222 : f32
    %224 = arith.mulf %223, %223 : f32
    %225 = arith.mulf %224, %218 : f32
    %cst_105 = arith.constant 2.000000e+00 : f32
    %226 = arith.mulf %cst_105, %223 : f32
    %227 = arith.mulf %226, %215 : f32
    %228 = arith.subf %221, %227 : f32
    %229 = arith.mulf %223, %223 : f32
    %230 = arith.mulf %229, %218 : f32
    %231 = arith.addf %228, %230 : f32
    %cst_106 = arith.constant 0.000000e+00 : f32
    %232 = arith.maximumf %231, %cst_106 : f32
    %cst_107 = arith.constant 1.000000e-30 : f32
    %233 = arith.maximumf %225, %cst_107 : f32
    %cst_108 = arith.constant 9.99999993E-9 : f32
    %234 = arith.addf %232, %cst_108 : f32
    %235 = arith.divf %233, %234 : f32
    %236 = math.log %235 : f32
    %cst_109 = arith.constant 1.000000e+01 : f32
    %237 = arith.mulf %cst_109, %236 : f32
    %cst_110 = arith.constant 2.30258512 : f32
    %238 = arith.divf %237, %cst_110 : f32
    %239 = tpu.iota {dimensions = array<i32: 0>} : vector<8x1xi32>
    %c0_i32 = arith.constant 0 : i32
    %240 = vector.broadcast %c0_i32 : i32 to vector<8x1xi32>
    %241 = arith.cmpi eq, %239, %240 : vector<8x1xi32>
    %cst_111 = arith.constant 0.000000e+00 : f32
    %242 = vector.shape_cast %241 : vector<8x1xi1> to vector<8x1xi1>
    %243 = vector.broadcast %242 : vector<8x1xi1> to vector<8x128xi1>
    %244 = vector.shape_cast %17 : vector<1x128xf32> to vector<1x128xf32>
    %245 = vector.broadcast %244 : vector<1x128xf32> to vector<8x128xf32>
    %246 = vector.broadcast %cst_111 : f32 to vector<8x128xf32>
    %247 = arith.select %243, %245, %246 : vector<8x128xi1>, vector<8x128xf32>
    %c1_i32 = arith.constant 1 : i32
    %248 = vector.broadcast %c1_i32 : i32 to vector<8x1xi32>
    %249 = arith.cmpi eq, %239, %248 : vector<8x1xi32>
    %cst_112 = arith.constant 0.000000e+00 : f32
    %250 = vector.shape_cast %249 : vector<8x1xi1> to vector<8x1xi1>
    %251 = vector.broadcast %250 : vector<8x1xi1> to vector<8x128xi1>
    %252 = vector.shape_cast %97 : vector<1x128xf32> to vector<1x128xf32>
    %253 = vector.broadcast %252 : vector<1x128xf32> to vector<8x128xf32>
    %254 = vector.broadcast %cst_112 : f32 to vector<8x128xf32>
    %255 = arith.select %251, %253, %254 : vector<8x128xi1>, vector<8x128xf32>
    %256 = arith.addf %247, %255 : vector<8x128xf32>
    %c2_i32 = arith.constant 2 : i32
    %257 = vector.broadcast %c2_i32 : i32 to vector<8x1xi32>
    %258 = arith.cmpi eq, %239, %257 : vector<8x1xi32>
    %cst_113 = arith.constant 0.000000e+00 : f32
    %259 = vector.shape_cast %258 : vector<8x1xi1> to vector<8x1xi1>
    %260 = vector.broadcast %259 : vector<8x1xi1> to vector<8x128xi1>
    %261 = vector.shape_cast %102 : vector<1x128xf32> to vector<1x128xf32>
    %262 = vector.broadcast %261 : vector<1x128xf32> to vector<8x128xf32>
    %263 = vector.broadcast %cst_113 : f32 to vector<8x128xf32>
    %264 = arith.select %260, %262, %263 : vector<8x128xi1>, vector<8x128xf32>
    %265 = arith.addf %256, %264 : vector<8x128xf32>
    %c3_i32 = arith.constant 3 : i32
    %266 = vector.broadcast %c3_i32 : i32 to vector<8x1xi32>
    %267 = arith.cmpi eq, %239, %266 : vector<8x1xi32>
    %cst_114 = arith.constant 0.000000e+00 : f32
    %268 = vector.shape_cast %267 : vector<8x1xi1> to vector<8x1xi1>
    %269 = vector.broadcast %268 : vector<8x1xi1> to vector<8x128xi1>
    %270 = vector.shape_cast %185 : vector<1x128xf32> to vector<1x128xf32>
    %271 = vector.broadcast %270 : vector<1x128xf32> to vector<8x128xf32>
    %272 = vector.broadcast %cst_114 : f32 to vector<8x128xf32>
    %273 = arith.select %269, %271, %272 : vector<8x128xi1>, vector<8x128xf32>
    %274 = arith.addf %265, %273 : vector<8x128xf32>
    %c4_i32 = arith.constant 4 : i32
    %275 = vector.broadcast %c4_i32 : i32 to vector<8x1xi32>
    %276 = arith.cmpi eq, %239, %275 : vector<8x1xi32>
    %cst_115 = arith.constant 0.000000e+00 : f32
    %277 = vector.broadcast %238 : f32 to vector<8x1xf32>
    %278 = vector.broadcast %cst_115 : f32 to vector<8x1xf32>
    %279 = arith.select %276, %277, %278 : vector<8x1xi1>, vector<8x1xf32>
    %280 = vector.broadcast %279 : vector<8x1xf32> to vector<8x128xf32>
    %281 = arith.addf %274, %280 : vector<8x128xf32>
    %c0_116 = arith.constant 0 : index
    %c0_117 = arith.constant 0 : index
    %c0_118 = arith.constant 0 : index
    %282 = vector.load %arg6[%c0_116, %c0_117, %c0_118] : memref<1x8x128xf32, #tpu.memory_space<vmem>>, vector<1x8x128xf32>
    %283 = vector.shape_cast %282 : vector<1x8x128xf32> to vector<8x128xf32>
    %284 = vector.shape_cast %281 : vector<8x128xf32> to vector<1x8x128xf32>
    tpu.vector_store %arg6[%c0_116, %c0_117, %c0_118], %284 {strides = array<i32>} : memref<1x8x128xf32, #tpu.memory_space<vmem>>, vector<1x8x128xf32>,
    return
  }
  func.func @transform_0(%arg0: i32) -> (i32, i32, i32) {
    %c0_i32 = arith.constant 0 : i32
    %c0_i32_0 = arith.constant 0 : i32
    %c0_i32_1 = arith.constant 0 : i32
    return %arg0, %c0_i32, %c0_i32_0 : i32, i32, i32
  }
  func.func @transform_1(%arg0: i32) -> (i32, i32, i32) {
    %c0_i32 = arith.constant 0 : i32
    %c0_i32_0 = arith.constant 0 : i32
    %c0_i32_1 = arith.constant 0 : i32
    return %arg0, %c0_i32, %c0_i32_0 : i32, i32, i32
  }
  func.func @transform_2(%arg0: i32) -> (i32, i32, i32) {
    %c0_i32 = arith.constant 0 : i32
    %c0_i32_0 = arith.constant 0 : i32
    %c0_i32_1 = arith.constant 0 : i32
    return %arg0, %c0_i32, %c0_i32_0 : i32, i32, i32
  }
  func.func @transform_3(%arg0: i32) -> (i32, i32, i32) {
    %c0_i32 = arith.constant 0 : i32
    %c0_i32_0 = arith.constant 0 : i32
    %c0_i32_1 = arith.constant 0 : i32
    return %arg0, %c0_i32, %c0_i32_0 : i32, i32, i32
  }
  func.func @transform_4(%arg0: i32) -> (i32, i32, i32) {
    %c0_i32 = arith.constant 0 : i32
    %c0_i32_0 = arith.constant 0 : i32
    %c0_i32_1 = arith.constant 0 : i32
    return %arg0, %c0_i32, %c0_i32_0 : i32, i32, i32
  }
  func.func @transform_5(%arg0: i32) -> (i32, i32, i32) {
    %c0_i32 = arith.constant 0 : i32
    %c0_i32_0 = arith.constant 0 : i32
    %c0_i32_1 = arith.constant 0 : i32
    return %arg0, %c0_i32, %c0_i32_0 : i32, i32, i32
  }
}

</mosaic_0001>

<llo_original>
// kernel: nda_loss.3
$region0: #{nda_loss.3}
  #allocation0 [shape = 'u32[]', space=smem, size = 0x4, offset = 0x4, fixed_abs, tag = 'smem constant byte address 0x4 - core index']
  #allocation1 [shape = 'u32[144,128]{1,0:T(1,128)}', space=vmem, size = 0x12000, scoped, tag = 'internal scratch']
  %s0 = inlined_call_operand.vmem [shape: f32[2,25,128], index: 0, kind: input, shape index: {}]
  %s1 = inlined_call_operand.vmem [shape: f32[2,25,128], index: 1, kind: input, shape index: {}]
  %s2 = inlined_call_operand.vmem [shape: f32[2,25,1], index: 2, kind: input, shape index: {}]
  %s3 = inlined_call_operand.vmem [shape: f32[2,32,128], index: 3, kind: input, shape index: {}]
  %s4 = inlined_call_operand.vmem [shape: f32[2,32,128], index: 4, kind: input, shape index: {}]
  %s5 = inlined_call_operand.vmem [shape: f32[2,8,128], index: 5, kind: output, shape index: {}]
  %s6 = sld [smem:[#allocation0]]
  $region53: #{nda_loss.3} parent=0
    _
  %s8 = ssub.s32 1, %s6
  %s9 = scalar_select 0, %s8, %s6
  loop: start=0, step=1, limit=4
  $region2: #{nda_loss.3} parent=0 // loop_pre_header
    _
  $region3: #{nda_loss.3} parent=0 // loop_header
    %s11 = sphi 0, %s15
    %p12 = scmp.ge.s32.totalorder %s11, 4
    %s21 = sphi 0, %s23
    %s24 = sphi 0, %s21
    %s25 = sphi 0, %s24
    %s41 = sphi 0, %s25
    %s47 = sphi 0, %s49
    %s50 = sphi 0, %s47
    %s51 = sphi 0, %s50
    %s67 = sphi 0, %s51
    %s73 = sphi 0, %s75
    %s76 = sphi 0, %s73
    %s77 = sphi 0, %s76
    %s93 = sphi 0, %s77
    %s99 = sphi 0, %s101
    %s102 = sphi 0, %s99
    %s103 = sphi 0, %s102
    %s119 = sphi 0, %s103
    %s125 = sphi 0, %s127
    %s128 = sphi 0, %s125
    %s129 = sphi 0, %s128
    %s145 = sphi 0, %s129
    %s151 = sphi 0, %s153
    %s154 = sphi 0, %s151
    %s155 = sphi 0, %s154
    %s171 = sphi 0, %s155
  $region4: #{nda_loss.3} parent=0 // loop_header_branch
    %14 = sbr.rel (%p12) target = $region8
  $region5: #{nda_loss.3} parent=0 // loop_body
    %s16 = ssub.s32 %s11, 1
    %s17 = ssub.s32 %s11, 2
    %s18 = sadd.s32 %s11, 1
    %s19 = ssub.s32 %s11, %s18
    %p20 = scmp.eq.s32.totalorder %s19, 0
    %s22 = sadd.s32 %s21, 1
    %s23 = scalar_select %p20, %s21, %s22
    %p26 = pneg %p20
    %p27 = scmp.eq.s32.totalorder %s11, 1
    %p28 = por %p26, %p27
    %p29 = scmp.ne.s32.totalorder %s21, %s24
    %p30 = scmp.eq.s32.totalorder %s11, 0
    %p31 = por %p29, %p30
    %p32 = scmp.ne.s32.totalorder %s21, %s24
    %p33 = scmp.eq.s32.totalorder %s16, 1
    %p34 = por %p32, %p33
    %p35 = scmp.ne.s32.totalorder %s24, %s25
    %p36 = scmp.eq.s32.totalorder %s16, 0
    %p37 = por %p35, %p36
    %p38 = scmp.ne.s32.totalorder %s24, %s25
    %p39 = scmp.eq.s32.totalorder %s17, 1
    %p40 = por %p38, %p39
    %p42 = scmp.ne.s32.totalorder %s25, %s41
    %p43 = scmp.eq.s32.totalorder %s17, 0
    %p44 = por %p42, %p43
    %s45 = ssub.s32 %s11, %s18
    %p46 = scmp.eq.s32.totalorder %s45, 0
    %s48 = sadd.s32 %s47, 1
    %s49 = scalar_select %p46, %s47, %s48
    %p52 = pneg %p46
    %p53 = scmp.eq.s32.totalorder %s11, 1
    %p54 = por %p52, %p53
    %p55 = scmp.ne.s32.totalorder %s47, %s50
    %p56 = scmp.eq.s32.totalorder %s11, 0
    %p57 = por %p55, %p56
    %p58 = scmp.ne.s32.totalorder %s47, %s50
    %p59 = scmp.eq.s32.totalorder %s16, 1
    %p60 = por %p58, %p59
    %p61 = scmp.ne.s32.totalorder %s50, %s51
    %p62 = scmp.eq.s32.totalorder %s16, 0
    %p63 = por %p61, %p62
    %p64 = scmp.ne.s32.totalorder %s50, %s51
    %p65 = scmp.eq.s32.totalorder %s17, 1
    %p66 = por %p64, %p65
    %p68 = scmp.ne.s32.totalorder %s51, %s67
    %p69 = scmp.eq.s32.totalorder %s17, 0
    %p70 = por %p68, %p69
    %s71 = ssub.s32 %s11, %s18
    %p72 = scmp.eq.s32.totalorder %s71, 0
    %s74 = sadd.s32 %s73, 1
    %s75 = scalar_select %p72, %s73, %s74
    %p78 = pneg %p72
    %p79 = scmp.eq.s32.totalorder %s11, 1
    %p80 = por %p78, %p79
    %p81 = scmp.ne.s32.totalorder %s73, %s76
    %p82 = scmp.eq.s32.totalorder %s11, 0
    %p83 = por %p81, %p82
    %p84 = scmp.ne.s32.totalorder %s73, %s76
    %p85 = scmp.eq.s32.totalorder %s16, 1
    %p86 = por %p84, %p85
    %p87 = scmp.ne.s32.totalorder %s76, %s77
    %p88 = scmp.eq.s32.totalorder %s16, 0
    %p89 = por %p87, %p88
    %p90 = scmp.ne.s32.totalorder %s76, %s77
    %p91 = scmp.eq.s32.totalorder %s17, 1
    %p92 = por %p90, %p91
    %p94 = scmp.ne.s32.totalorder %s77, %s93
    %p95 = scmp.eq.s32.totalorder %s17, 0
    %p96 = por %p94, %p95
    %s97 = ssub.s32 %s11, %s18
    %p98 = scmp.eq.s32.totalorder %s97, 0
    %s100 = sadd.s32 %s99, 1
    %s101 = scalar_select %p98, %s99, %s100
    %p104 = pneg %p98
    %p105 = scmp.eq.s32.totalorder %s11, 1
    %p106 = por %p104, %p105
    %p107 = scmp.ne.s32.totalorder %s99, %s102
    %p108 = scmp.eq.s32.totalorder %s11, 0
    %p109 = por %p107, %p108
    %p110 = scmp.ne.s32.totalorder %s99, %s102
    %p111 = scmp.eq.s32.totalorder %s16, 1
    %p112 = por %p110, %p111
    %p113 = scmp.ne.s32.totalorder %s102, %s103
    %p114 = scmp.eq.s32.totalorder %s16, 0
    %p115 = por %p113, %p114
    %p116 = scmp.ne.s32.totalorder %s102, %s103
    %p117 = scmp.eq.s32.totalorder %s17, 1
    %p118 = por %p116, %p117
    %p120 = scmp.ne.s32.totalorder %s103, %s119
    %p121 = scmp.eq.s32.totalorder %s17, 0
    %p122 = por %p120, %p121
    %s123 = ssub.s32 %s11, %s18
    %p124 = scmp.eq.s32.totalorder %s123, 0
    %s126 = sadd.s32 %s125, 1
    %s127 = scalar_select %p124, %s125, %s126
    %p130 = pneg %p124
    %p131 = scmp.eq.s32.totalorder %s11, 1
    %p132 = por %p130, %p131
    %p133 = scmp.ne.s32.totalorder %s125, %s128
    %p134 = scmp.eq.s32.totalorder %s11, 0
    %p135 = por %p133, %p134
    %p136 = scmp.ne.s32.totalorder %s125, %s128
    %p137 = scmp.eq.s32.totalorder %s16, 1
    %p138 = por %p136, %p137
    %p139 = scmp.ne.s32.totalorder %s128, %s129
    %p140 = scmp.eq.s32.totalorder %s16, 0
    %p141 = por %p139, %p140
    %p142 = scmp.ne.s32.totalorder %s128, %s129
    %p143 = scmp.eq.s32.totalorder %s17, 1
    %p144 = por %p142, %p143
    %p146 = scmp.ne.s32.totalorder %s129, %s145
    %p147 = scmp.eq.s32.totalorder %s17, 0
    %p148 = por %p146, %p147
    %s149 = ssub.s32 %s11, %s18
    %p150 = scmp.eq.s32.totalorder %s149, 0
    %s152 = sadd.s32 %s151, 1
    %s153 = scalar_select %p150, %s151, %s152
    %p156 = pneg %p150
    %p157 = scmp.eq.s32.totalorder %s11, 1
    %p158 = por %p156, %p157
    %p159 = scmp.ne.s32.totalorder %s151, %s154
    %p160 = scmp.eq.s32.totalorder %s11, 0
    %p161 = por %p159, %p160
    %p162 = scmp.ne.s32.totalorder %s151, %s154
    %p163 = scmp.eq.s32.totalorder %s16, 1
    %p164 = por %p162, %p163
    %p165 = scmp.ne.s32.totalorder %s154, %s155
    %p166 = scmp.eq.s32.totalorder %s16, 0
    %p167 = por %p165, %p166
    %p168 = scmp.ne.s32.totalorder %s154, %s155
    %p169 = scmp.eq.s32.totalorder %s17, 1
    %p170 = por %p168, %p169
    %p172 = scmp.ne.s32.totalorder %s155, %s171
    %p173 = scmp.eq.s32.totalorder %s17, 0
    %p174 = por %p172, %p173
    %p175 = scmp.le.s32.totalorder 1, %s11
    %p176 = scmp.lt.s32.totalorder %s11, 3
    %p177 = pnand %p175, %p176
    %p178 = pneg %p177
    // Predicated region
    $region9: #{nda_loss.3} parent=5 // pred_check
      _
    $region10: #{nda_loss.3} parent=5 // pred_check_branch
      %180 = sbr.rel (%p177) target = $region12
    $region11: #{nda_loss.3} parent=5 // pred_region
      %s181 = ssub.s32 %s11, 1
    $region12: #{nda_loss.3} parent=5 // pred_fallthru
      _
    %p182 = scmp.lt.s32.totalorder %s11, 2
    // Predicated region
    $region13: #{nda_loss.3} parent=5 // pred_check
      %p183 = pneg %p182
    $region14: #{nda_loss.3} parent=5 // pred_check_branch
      %185 = sbr.rel (%p183) target = $region16
    $region15: #{nda_loss.3} parent=5 // pred_region
      // Predicated region
      $region17: #{nda_loss.3} parent=15 // pred_check
        %p186 = pneg %p31
      $region18: #{nda_loss.3} parent=15 // pred_check_branch
        %188 = sbr.rel (%p186) target = $region20
      $region19: #{nda_loss.3} parent=15 // pred_region
        %p189 = scmp.lt.s32.totalorder %s11, 1
        %s190 = scalar_select %p189, %s11, 1
        %s191 = smul.addr %s190, 4
        %s192 = smul.addr %s191, 8
        %s193 = scalar_lea.vmem %s0, %s192
      $region20: #{nda_loss.3} parent=15 // pred_fallthru
        _
      // Predicated region
      $region21: #{nda_loss.3} parent=15 // pred_check
        %p194 = pneg %p57
      $region22: #{nda_loss.3} parent=15 // pred_check_branch
        %196 = sbr.rel (%p194) target = $region24
      $region23: #{nda_loss.3} parent=15 // pred_region
        %p197 = scmp.lt.s32.totalorder %s11, 1
        %s198 = scalar_select %p197, %s11, 1
        %s199 = smul.addr %s198, 4
        %s200 = smul.addr %s199, 8
        %s201 = scalar_lea.vmem %s1, %s200
      $region24: #{nda_loss.3} parent=15 // pred_fallthru
        _
      // Predicated region
      $region25: #{nda_loss.3} parent=15 // pred_check
        %p202 = pneg %p83
      $region26: #{nda_loss.3} parent=15 // pred_check_branch
        %204 = sbr.rel (%p202) target = $region28
      $region27: #{nda_loss.3} parent=15 // pred_region
        %p205 = scmp.lt.s32.totalorder %s11, 1
        %s206 = scalar_select %p205, %s11, 1
        %s207 = smul.addr %s206, 4
        %s208 = smul.addr %s207, 8
        %s209 = scalar_lea.vmem %s2, %s208
      $region28: #{nda_loss.3} parent=15 // pred_fallthru
        _
      // Predicated region
      $region29: #{nda_loss.3} parent=15 // pred_check
        %p210 = pneg %p109
      $region30: #{nda_loss.3} parent=15 // pred_check_branch
        %212 = sbr.rel (%p210) target = $region32
      $region31: #{nda_loss.3} parent=15 // pred_region
        %p213 = scmp.lt.s32.totalorder %s11, 1
        %s214 = scalar_select %p213, %s11, 1
        %s215 = smul.addr %s214, 4
        %s216 = smul.addr %s215, 8
        %s217 = scalar_lea.vmem %s3, %s216
      $region32: #{nda_loss.3} parent=15 // pred_fallthru
        _
      // Predicated region
      $region33: #{nda_loss.3} parent=15 // pred_check
        %p218 = pneg %p135
      $region34: #{nda_loss.3} parent=15 // pred_check_branch
        %220 = sbr.rel (%p218) target = $region36
      $region35: #{nda_loss.3} parent=15 // pred_region
        %p221 = scmp.lt.s32.totalorder %s11, 1
        %s222 = scalar_select %p221, %s11, 1
        %s223 = smul.addr %s222, 4
        %s224 = smul.addr %s223, 8
        %s225 = scalar_lea.vmem %s4, %s224
      $region36: #{nda_loss.3} parent=15 // pred_fallthru
        _
    $region16: #{nda_loss.3} parent=5 // pred_fallthru
      _
    %p226 = scmp.le.s32.totalorder 1, %s11
    %p227 = scmp.lt.s32.totalorder %s11, 3
    %p228 = pnand %p226, %p227
    %p229 = pneg %p228
    // Predicated region
    $region37: #{nda_loss.3} parent=5 // pred_check
      _
    $region38: #{nda_loss.3} parent=5 // pred_check_branch
      %231 = sbr.rel (%p228) target = $region40
    $region39: #{nda_loss.3} parent=5 // pred_region
      %s232 = ssub.s32 %s11, 1
      %p233 = scmp.lt.s32.totalorder %s16, 1
      %s234 = scalar_select %p233, %s16, 1
      %s235 = smul.addr %s234, 4
      %s236 = smul.addr %s235, 8
      %s237 = scalar_lea.vmem %s0, %s236
      %p238 = pneg %p37
      %p239 = pneg %p34
      %p240 = scmp.lt.s32.totalorder %s16, 1
      %s241 = scalar_select %p240, %s16, 1
      %s242 = smul.addr %s241, 4
      %s243 = smul.addr %s242, 8
      %s244 = scalar_lea.vmem %s1, %s243
      %p245 = pneg %p63
      %p246 = pneg %p60
      %p247 = scmp.lt.s32.totalorder %s16, 1
      %s248 = scalar_select %p247, %s16, 1
      %s249 = smul.addr %s248, 4
      %s250 = smul.addr %s249, 8
      %s251 = scalar_lea.vmem %s2, %s250
      %p252 = pneg %p89
      %p253 = pneg %p86
      %p254 = scmp.lt.s32.totalorder %s16, 1
      %s255 = scalar_select %p254, %s16, 1
      %s256 = smul.addr %s255, 4
      %s257 = smul.addr %s256, 8
      %s258 = scalar_lea.vmem %s3, %s257
      %p259 = pneg %p115
      %p260 = pneg %p112
      %p261 = scmp.lt.s32.totalorder %s16, 1
      %s262 = scalar_select %p261, %s16, 1
      %s263 = smul.addr %s262, 4
      %s264 = smul.addr %s263, 8
      %s265 = scalar_lea.vmem %s4, %s264
      %p266 = pneg %p141
      %p267 = pneg %p138
      %p268 = pneg %p167
      %p269 = pneg %p164
      %p270 = scmp.lt.s32.totalorder %s16, 1
      %s271 = scalar_select %p270, %s16, 1
      %s272 = smul.addr %s271, 8
      %s273 = scalar_lea.vmem %s5, %s272
      %p274 = scmp.lt.s32.totalorder %s16, 1
      %s275 = scalar_select %p274, %s16, 1
      %s276 = smul.addr %s275, 4
      %s277 = smul.addr %s276, 8
      %s278 = scalar_lea.vmem %s0, %s277
      %p279 = scmp.lt.s32.totalorder %s16, 1
      %s280 = scalar_select %p279, %s16, 1
      %s281 = smul.addr %s280, 4
      %s282 = smul.addr %s281, 8
      %s283 = scalar_lea.vmem %s1, %s282
      %p284 = scmp.lt.s32.totalorder %s16, 1
      %s285 = scalar_select %p284, %s16, 1
      %s286 = smul.addr %s285, 4
      %s287 = smul.addr %s286, 8
      %s288 = scalar_lea.vmem %s2, %s287
      %p289 = scmp.lt.s32.totalorder %s16, 1
      %s290 = scalar_select %p289, %s16, 1
      %s291 = smul.addr %s290, 4
      %s292 = smul.addr %s291, 8
      %s293 = scalar_lea.vmem %s3, %s292
      %p294 = scmp.lt.s32.totalorder %s16, 1
      %s295 = scalar_select %p294, %s16, 1
      %s296 = smul.addr %s295, 4
      %s297 = smul.addr %s296, 8
      %s298 = scalar_lea.vmem %s4, %s297
      %p299 = scmp.lt.s32.totalorder %s16, 1
      %s300 = scalar_select %p299, %s16, 1
      %s301 = smul.addr %s300, 8
      %s302 = scalar_lea.vmem %s5, %s301
      %v303 = vld [vmem:[%s278] sm:$0xff]
      %v304 = vld [vmem:[%s278 + $0x8] sm:$0xff]
      %v305 = vld [vmem:[%s278 + $0x10] sm:$0x1]
      %v306 = vld [vmem:[%s283] sm:$0xff]
      %v307 = vld [vmem:[%s283 + $0x8] sm:$0xff]
      %v308 = vld [vmem:[%s283 + $0x10] sm:$0x1]
      %v309 = vld [vmem:[%s288] sm:$0xff]
      %v310 = vld [vmem:[%s288 + $0x8] sm:$0xff]
      %v311 = vld [vmem:[%s288 + $0x10] sm:$0x1]
      %v312 = vsub.f32 %v303, %v306
      %v313 = vsub.f32 %v304, %v307
      %v314 = vsub.f32 %v305, %v308
      %v315 = vlaneseq
      %v316 = vshrl.u32 %v315, 7
      %v317 = vadd.s32 %v316, 8
      %v318 = vadd.s32 %v316, 16
      %vm319 = vcmp.gt.f32.partialorder %v312, 0.0
      %vm320 = vcmp.gt.f32.partialorder %v313, 0.0
      %vm321 = vcmp.gt.f32.partialorder %v314, 0.0
      %v322 = vmul.f32 %v312, 3.0
      %v323 = vmul.f32 %v313, 3.0
      %v324 = vmul.f32 %v314, 3.0
      %v325 = vsel %vm319, %v312, %v322
      %v326 = vsel %vm320, %v313, %v323
      %v327 = vsel %vm321, %v314, %v324
      %329 = vset.pattern.permute.xlu0 0
      %330 = vperm.xlu0 %329, %v309
      %v331 = vpop.permute.xlu0 %330
      %334 = vset.pattern.permute.xlu0 0
      %335 = vperm.xlu0 %334, %v310
      %v336 = vpop.permute.xlu0 %335
      %339 = vset.pattern.permute.xlu0 0
      %340 = vperm.xlu0 %339, %v311
      %v341 = vpop.permute.xlu0 %340
      %v343 = vmul.f32 %v325, %v331
      %v344 = vmul.f32 %v326, %v336
      %v345 = vmul.f32 %v327, %v341
      %v346 = vand.u32 2147483647, %v343
      %v347 = vand.u32 2147483647, %v344
      %v348 = vand.u32 2147483647, %v345
      %v349 = vadd.f32 %v346, %v347
      %vm350 = vcmask 1040384
      %v351 = vsel %vm350, %v348, 0.0
      %v352 = vadd.f32 %v349, %v351
      %v353 = vrot.slane %v352, 4
      %v354 = vadd.f32 %v352, %v353
      %v355 = vrot.slane %v354, 2
      %v356 = vadd.f32 %v354, %v355
      %v357 = vrot.slane %v356, 1
      %v358 = vadd.f32 %v356, %v357
      %v359 = vmul.f32 %v312, -0.357193
      %v360 = vmul.f32 %v313, -0.357193
      %v361 = vmul.f32 %v314, -0.357193
      %v362 = vld [vmem:[%s278 + $0x1] sm:$0xff]
      %v363 = vld [vmem:[%s278 + $0x9] sm:$0xff]
      %v364 = vld [vmem:[%s278 + $0x11] sm:$0x1]
      %v365 = vld [vmem:[%s283 + $0x1] sm:$0xff]
      %v366 = vld [vmem:[%s283 + $0x9] sm:$0xff]
      %v367 = vld [vmem:[%s283 + $0x11] sm:$0x1]
      %v368 = vsub.f32 %v362, %v365
      %v369 = vsub.f32 %v363, %v366
      %v370 = vsub.f32 %v364, %v367
      %vm371 = vcmp.lt.s32.totalorder %v316, 16
      %vm372 = vcmp.lt.s32.totalorder %v317, 16
      %vm373 = vcmp.lt.s32.totalorder %v318, 16
      %v374 = vsel %vm371, 1, 0
      %v375 = vsel %vm372, 1, 0
      %v376 = vsel %vm373, 1, 0
      %v377 = vcvt.s32.f32 %v374
      %v378 = vcvt.s32.f32 %v375
      %v379 = vcvt.s32.f32 %v376
      %v380 = vsub.f32 %v368, %v312
      %v381 = vsub.f32 %v369, %v313
      %v382 = vsub.f32 %v370, %v314
      %v383 = vmul.f32 %v380, %v377
      %v384 = vmul.f32 %v381, %v378
      %v385 = vmul.f32 %v382, %v379
      %v386 = vmul.f32 %v383, 0.25
      %v387 = vmul.f32 %v384, 0.25
      %v388 = vmul.f32 %v385, 0.25
      %v389 = vadd.f32 %v386, 0.0
      %v390 = vadd.f32 %v387, 0.0
      %v391 = vadd.f32 %v388, 0.0
      %v392 = vmul.f32 %v383, -0.607143
      %v393 = vmul.f32 %v384, -0.607143
      %v394 = vmul.f32 %v385, -0.607143
      %v395 = vadd.f32 %v359, %v392
      %v396 = vadd.f32 %v360, %v393
      %v397 = vadd.f32 %v361, %v394
      %v398 = vld [vmem:[%s278 + $0x2] sm:$0xff]
      %v399 = vld [vmem:[%s278 + $0xa] sm:$0xff]
      %v400 = vld [vmem:[%s278 + $0x12] sm:$0x1]
      %v401 = vld [vmem:[%s283 + $0x2] sm:$0xff]
      %v402 = vld [vmem:[%s283 + $0xa] sm:$0xff]
      %v403 = vld [vmem:[%s283 + $0x12] sm:$0x1]
      %v404 = vsub.f32 %v398, %v401
      %v405 = vsub.f32 %v399, %v402
      %v406 = vsub.f32 %v400, %v403
      %vm407 = vcmp.lt.s32.totalorder %v316, 15
      %vm408 = vcmp.lt.s32.totalorder %v317, 15
      %vm409 = vcmp.lt.s32.totalorder %v318, 15
      %v410 = vsel %vm407, 1, 0
      %v411 = vsel %vm408, 1, 0
      %v412 = vsel %vm409, 1, 0
      %v413 = vcvt.s32.f32 %v410
      %v414 = vcvt.s32.f32 %v411
      %v415 = vcvt.s32.f32 %v412
      %v416 = vsub.f32 %v404, %v312
      %v417 = vsub.f32 %v405, %v313
      %v418 = vsub.f32 %v406, %v314
      %v419 = vmul.f32 %v416, %v413
      %v420 = vmul.f32 %v417, %v414
      %v421 = vmul.f32 %v418, %v415
      %v422 = vmul.f32 %v419, 0.5
      %v423 = vmul.f32 %v420, 0.5
      %v424 = vmul.f32 %v421, 0.5
      %v425 = vadd.f32 %v389, %v422
      %v426 = vadd.f32 %v390, %v423
      %v427 = vadd.f32 %v391, %v424
      %v428 = vmul.f32 %v419, -0.285714
      %v429 = vmul.f32 %v420, -0.285714
      %v430 = vmul.f32 %v421, -0.285714
      %v431 = vadd.f32 %v395, %v428
      %v432 = vadd.f32 %v396, %v429
      %v433 = vadd.f32 %v397, %v430
      %v434 = vld [vmem:[%s278 + $0x3] sm:$0xff]
      %v435 = vld [vmem:[%s278 + $0xb] sm:$0xff]
      %v436 = vld [vmem:[%s278 + $0x13] sm:$0x1]
      %v437 = vld [vmem:[%s283 + $0x3] sm:$0xff]
      %v438 = vld [vmem:[%s283 + $0xb] sm:$0xff]
      %v439 = vld [vmem:[%s283 + $0x13] sm:$0x1]
      %v440 = vsub.f32 %v434, %v437
      %v441 = vsub.f32 %v435, %v438
      %v442 = vsub.f32 %v436, %v439
      %vm443 = vcmp.lt.s32.totalorder %v316, 14
      %vm444 = vcmp.lt.s32.totalorder %v317, 14
      %vm445 = vcmp.lt.s32.totalorder %v318, 14
      %v446 = vsel %vm443, 1, 0
      %v447 = vsel %vm444, 1, 0
      %v448 = vsel %vm445, 1, 0
      %v449 = vcvt.s32.f32 %v446
      %v450 = vcvt.s32.f32 %v447
      %v451 = vcvt.s32.f32 %v448
      %v452 = vsub.f32 %v440, %v312
      %v453 = vsub.f32 %v441, %v313
      %v454 = vsub.f32 %v442, %v314
      %v455 = vmul.f32 %v452, %v449
      %v456 = vmul.f32 %v453, %v450
      %v457 = vmul.f32 %v454, %v451
      %v458 = vmul.f32 %v455, 0.75
      %v459 = vmul.f32 %v456, 0.75
      %v460 = vmul.f32 %v457, 0.75
      %v461 = vadd.f32 %v425, %v458
      %v462 = vadd.f32 %v426, %v459
      %v463 = vadd.f32 %v427, %v460
      %v464 = vmul.f32 %v455, 0.25
      %v465 = vmul.f32 %v456, 0.25
      %v466 = vmul.f32 %v457, 0.25
      %v467 = vadd.f32 %v431, %v464
      %v468 = vadd.f32 %v432, %v465
      %v469 = vadd.f32 %v433, %v466
      %v470 = vld [vmem:[%s278 + $0x4] sm:$0xff]
      %v471 = vld [vmem:[%s278 + $0xc] sm:$0xff]
      %v472 = vld [vmem:[%s278 + $0x14] sm:$0x1]
      %v473 = vld [vmem:[%s283 + $0x4] sm:$0xff]
      %v474 = vld [vmem:[%s283 + $0xc] sm:$0xff]
      %v475 = vld [vmem:[%s283 + $0x14] sm:$0x1]
      %v476 = vsub.f32 %v470, %v473
      %v477 = vsub.f32 %v471, %v474
      %v478 = vsub.f32 %v472, %v475
      %vm479 = vcmp.lt.s32.totalorder %v316, 13
      %vm480 = vcmp.lt.s32.totalorder %v317, 13
      %vm481 = vcmp.lt.s32.totalorder %v318, 13
      %v482 = vsel %vm479, 1, 0
      %v483 = vsel %vm480, 1, 0
      %v484 = vsel %vm481, 1, 0
      %v485 = vcvt.s32.f32 %v482
      %v486 = vcvt.s32.f32 %v483
      %v487 = vcvt.s32.f32 %v484
      %v488 = vsub.f32 %v476, %v312
      %v489 = vsub.f32 %v477, %v313
      %v490 = vsub.f32 %v478, %v314
      %v491 = vmul.f32 %v488, %v485
      %v492 = vmul.f32 %v489, %v486
      %v493 = vmul.f32 %v490, %v487
      %v494 = vadd.f32 %v461, %v491
      %v495 = vadd.f32 %v462, %v492
      %v496 = vadd.f32 %v463, %v493
      %v497 = vadd.f32 %v467, %v491
      %v498 = vadd.f32 %v468, %v492
      %v499 = vadd.f32 %v469, %v493
      %v500 = vand.u32 2147483647, %v494
      %v501 = vand.u32 2147483647, %v495
      %v502 = vand.u32 2147483647, %v496
      %v503 = vmul.f32 %v500, %v331
      %v504 = vmul.f32 %v501, %v336
      %v505 = vmul.f32 %v502, %v341
      %v506 = vadd.f32 %v503, %v504
      %v507 = vsel %vm350, %v505, 0.0
      %v508 = vadd.f32 %v506, %v507
      %v509 = vrot.slane %v508, 4
      %v510 = vadd.f32 %v508, %v509
      %v511 = vrot.slane %v510, 2
      %v512 = vadd.f32 %v510, %v511
      %v513 = vrot.slane %v512, 1
      %v514 = vadd.f32 %v512, %v513
      %v515 = vand.u32 2147483647, %v497
      %v516 = vand.u32 2147483647, %v498
      %v517 = vand.u32 2147483647, %v499
      %v518 = vmul.f32 %v515, %v331
      %v519 = vmul.f32 %v516, %v336
      %v520 = vmul.f32 %v517, %v341
      %v521 = vadd.f32 %v518, %v519
      %v522 = vsel %vm350, %v520, 0.0
      %v523 = vadd.f32 %v521, %v522
      %v524 = vrot.slane %v523, 4
      %v525 = vadd.f32 %v523, %v524
      %v526 = vrot.slane %v525, 2
      %v527 = vadd.f32 %v525, %v526
      %v528 = vrot.slane %v527, 1
      %v529 = vadd.f32 %v527, %v528
      %v530 = vsub.f32 1.0, %v309
      %v531 = vsub.f32 1.0, %v310
      %v532 = vsub.f32 1.0, %v311
      %v533 = vld [vmem:[%s288 + $0x1] sm:$0xff]
      %v534 = vld [vmem:[%s288 + $0x9] sm:$0xff]
      %v535 = vld [vmem:[%s288 + $0x11] sm:$0x1]
      %v536 = vsub.f32 1.0, %v533
      %v537 = vsub.f32 1.0, %v534
      %v538 = vsub.f32 1.0, %v535
      %v539 = vsub.f32 %v362, %v303
      %v540 = vsub.f32 %v363, %v304
      %v541 = vsub.f32 %v364, %v305
      %v542 = vand.u32 2147483647, %v539
      %v543 = vand.u32 2147483647, %v540
      %v544 = vand.u32 2147483647, %v541
      %v545 = vadd.f32 %v536, %v530
      %v546 = vadd.f32 %v537, %v531
      %v547 = vadd.f32 %v538, %v532
      %549 = vset.pattern.permute.xlu0 0
      %550 = vperm.xlu0 %549, %v545
      %v551 = vpop.permute.xlu0 %550
      %554 = vset.pattern.permute.xlu0 0
      %555 = vperm.xlu0 %554, %v546
      %v556 = vpop.permute.xlu0 %555
      %559 = vset.pattern.permute.xlu0 0
      %560 = vperm.xlu0 %559, %v547
      %v561 = vpop.permute.xlu0 %560
      %v563 = vmul.f32 %v542, %v551
      %v564 = vmul.f32 %v543, %v556
      %v565 = vmul.f32 %v544, %v561
      %v566 = vmul.f32 %v563, %v377
      %v567 = vmul.f32 %v564, %v378
      %v568 = vmul.f32 %v565, %v379
      %v569 = vadd.f32 %v566, %v567
      %v570 = vsel %vm350, %v568, 0.0
      %v571 = vadd.f32 %v569, %v570
      %v572 = vrot.slane %v571, 4
      %v573 = vadd.f32 %v571, %v572
      %v574 = vrot.slane %v573, 2
      %v575 = vadd.f32 %v573, %v574
      %v576 = vrot.slane %v575, 1
      %v577 = vadd.f32 %v575, %v576
      %v578 = vadd.f32 %v577, 0.0
      %v579 = vld [vmem:[%s278] sm:$0x1]
      %v580 = vld [vmem:[%s288] sm:$0x1]
      %v581 = vsub.f32 1.0, %v580
      %v582 = vsub.f32 %v579, %v305
      %v583 = vand.u32 2147483647, %v582
      %v584 = vadd.f32 %v581, %v532
      %586 = vset.pattern.permute.xlu0 0
      %587 = vperm.xlu0 %586, %v584
      %v588 = vpop.permute.xlu0 %587
      %v590 = vmul.f32 %v583, %v588
      %v591 = vadd.f32 %v590, 0.0
      %v592 = vadd.f32 %v578, %v591
      %v593 = vld [vmem:[%s288 + $0x2] sm:$0xff]
      %v594 = vld [vmem:[%s288 + $0xa] sm:$0xff]
      %v595 = vld [vmem:[%s288 + $0x12] sm:$0x1]
      %v596 = vsub.f32 1.0, %v593
      %v597 = vsub.f32 1.0, %v594
      %v598 = vsub.f32 1.0, %v595
      %v599 = vsub.f32 %v398, %v303
      %v600 = vsub.f32 %v399, %v304
      %v601 = vsub.f32 %v400, %v305
      %v602 = vand.u32 2147483647, %v599
      %v603 = vand.u32 2147483647, %v600
      %v604 = vand.u32 2147483647, %v601
      %v605 = vadd.f32 %v596, %v530
      %v606 = vadd.f32 %v597, %v531
      %v607 = vadd.f32 %v598, %v532
      %609 = vset.pattern.permute.xlu0 0
      %610 = vperm.xlu0 %609, %v605
      %v611 = vpop.permute.xlu0 %610
      %614 = vset.pattern.permute.xlu0 0
      %615 = vperm.xlu0 %614, %v606
      %v616 = vpop.permute.xlu0 %615
      %619 = vset.pattern.permute.xlu0 0
      %620 = vperm.xlu0 %619, %v607
      %v621 = vpop.permute.xlu0 %620
      %v623 = vmul.f32 %v602, %v611
      %v624 = vmul.f32 %v603, %v616
      %v625 = vmul.f32 %v604, %v621
      %v626 = vmul.f32 %v623, %v413
      %v627 = vmul.f32 %v624, %v414
      %v628 = vmul.f32 %v625, %v415
      %v629 = vadd.f32 %v626, %v627
      %v630 = vsel %vm350, %v628, 0.0
      %v631 = vadd.f32 %v629, %v630
      %v632 = vrot.slane %v631, 4
      %v633 = vadd.f32 %v631, %v632
      %v634 = vrot.slane %v633, 2
      %v635 = vadd.f32 %v633, %v634
      %v636 = vrot.slane %v635, 1
      %v637 = vadd.f32 %v635, %v636
      %v638 = vadd.f32 %v592, %v637
      %v639 = vld [vmem:[%s278] sm:$0x3]
      %v640 = vld [vmem:[%s278 + $0xf] sm:$0x3]
      %v641 = vld [vmem:[%s288] sm:$0x3]
      %v642 = vsub.f32 1.0, %v641
      %v643 = vld [vmem:[%s288 + $0xf] sm:$0x3]
      %v644 = vsub.f32 1.0, %v643
      %v645 = vsub.f32 %v639, %v640
      %v646 = vand.u32 2147483647, %v645
      %v647 = vadd.f32 %v642, %v644
      %649 = vset.pattern.permute.xlu0 0
      %650 = vperm.xlu0 %649, %v647
      %v651 = vpop.permute.xlu0 %650
      %v653 = vmul.f32 %v646, %v651
      %vm654 = vcmask 1041408
      %v655 = vsel %vm654, %v653, 0.0
      %v656 = vrot.slane %v655, 4
      %v657 = vadd.f32 %v655, %v656
      %v658 = vrot.slane %v657, 2
      %v659 = vadd.f32 %v657, %v658
      %v660 = vrot.slane %v659, 1
      %v661 = vadd.f32 %v659, %v660
      %v662 = vadd.f32 %v638, %v661
      %v663 = vld [vmem:[%s293] sm:$0xff]
      %v664 = vld [vmem:[%s293 + $0x8] sm:$0xff]
      %v665 = vld [vmem:[%s293 + $0x10] sm:$0xff]
      %v666 = vld [vmem:[%s293 + $0x18] sm:$0xff]
      %v667 = vld [vmem:[%s298] sm:$0xff]
      %v668 = vld [vmem:[%s298 + $0x8] sm:$0xff]
      %v669 = vld [vmem:[%s298 + $0x10] sm:$0xff]
      %v670 = vld [vmem:[%s298 + $0x18] sm:$0xff]
      %v671 = vadd.f32 %v663, %v664
      %v672 = vadd.f32 %v671, %v665
      %v673 = vadd.f32 %v672, %v666
      %674 = vadd.xlane.f32.xlu0 %v673
      %v675 = vpop.xlane.xlu0 %674
      %v676 = vrot.slane %v675, 4
      %v677 = vadd.f32 %v675, %v676
      %v678 = vrot.slane %v677, 2
      %v679 = vadd.f32 %v677, %v678
      %v680 = vrot.slane %v679, 1
      %v681 = vadd.f32 %v679, %v680
      %s682 = vtos %v681
      %v683 = vadd.f32 %v667, %v668
      %v684 = vadd.f32 %v683, %v669
      %v685 = vadd.f32 %v684, %v670
      %686 = vadd.xlane.f32.xlu0 %v685
      %v687 = vpop.xlane.xlu0 %686
      %v688 = vrot.slane %v687, 4
      %v689 = vadd.f32 %v687, %v688
      %v690 = vrot.slane %v689, 2
      %v691 = vadd.f32 %v689, %v690
      %v692 = vrot.slane %v691, 1
      %v693 = vadd.f32 %v691, %v692
      %s694 = vtos %v693
      %v695 = vmul.f32 %v663, %v663
      %v696 = vmul.f32 %v664, %v664
      %v697 = vmul.f32 %v665, %v665
      %v698 = vmul.f32 %v666, %v666
      %v699 = vadd.f32 %v695, %v696
      %v700 = vadd.f32 %v699, %v697
      %v701 = vadd.f32 %v700, %v698
      %702 = vadd.xlane.f32.xlu0 %v701
      %v703 = vpop.xlane.xlu0 %702
      %v704 = vrot.slane %v703, 4
      %v705 = vadd.f32 %v703, %v704
      %v706 = vrot.slane %v705, 2
      %v707 = vadd.f32 %v705, %v706
      %v708 = vrot.slane %v707, 1
      %v709 = vadd.f32 %v707, %v708
      %s710 = vtos %v709
      %v711 = vmul.f32 %v667, %v667
      %v712 = vmul.f32 %v668, %v668
      %v713 = vmul.f32 %v669, %v669
      %v714 = vmul.f32 %v670, %v670
      %v715 = vadd.f32 %v711, %v712
      %v716 = vadd.f32 %v715, %v713
      %v717 = vadd.f32 %v716, %v714
      %718 = vadd.xlane.f32.xlu0 %v717
      %v719 = vpop.xlane.xlu0 %718
      %v720 = vrot.slane %v719, 4
      %v721 = vadd.f32 %v719, %v720
      %v722 = vrot.slane %v721, 2
      %v723 = vadd.f32 %v721, %v722
      %v724 = vrot.slane %v723, 1
      %v725 = vadd.f32 %v723, %v724
      %s726 = vtos %v725
      %v727 = vmul.f32 %v663, %v667
      %v728 = vmul.f32 %v664, %v668
      %v729 = vmul.f32 %v665, %v669
      %v730 = vmul.f32 %v666, %v670
      %v731 = vadd.f32 %v727, %v728
      %v732 = vadd.f32 %v731, %v729
      %v733 = vadd.f32 %v732, %v730
      %734 = vadd.xlane.f32.xlu0 %v733
      %v735 = vpop.xlane.xlu0 %734
      %v736 = vrot.slane %v735, 4
      %v737 = vadd.f32 %v735, %v736
      %v738 = vrot.slane %v737, 2
      %v739 = vadd.f32 %v737, %v738
      %v740 = vrot.slane %v739, 1
      %v741 = vadd.f32 %v739, %v740
      %s742 = vtos %v741
      %s743 = smul.f32 %s682, %s694
      %v744 = vrcp.pop 4096.0
      %s745 = vtos %v744
      %s746 = smul.f32 %s743, %s745
      %s747 = ssub.f32 %s742, %s746
      %s748 = smul.f32 %s694, %s694
      %v749 = vrcp.pop 4096.0
      %s750 = vtos %v749
      %s751 = smul.f32 %s748, %s750
      %s752 = ssub.f32 %s726, %s751
      %s753 = smul.f32 %s682, %s682
      %v754 = vrcp.pop 4096.0
      %s755 = vtos %v754
      %s756 = smul.f32 %s753, %s755
      %s757 = ssub.f32 %s710, %s756
      %s758 = sadd.f32 %s752, 1e-08
      %v759 = vstv %s758
      %v760 = vrcp.pop %v759
      %s761 = vtos %v760
      %s762 = smul.f32 %s747, %s761
      %s763 = smul.f32 %s762, %s762
      %s764 = smul.f32 %s763, %s752
      %s765 = smul.f32 %s762, 2.0
      %s766 = smul.f32 %s765, %s747
      %s767 = ssub.f32 %s757, %s766
      %s768 = sadd.f32 %s767, %s764
      %s769 = smax.f32 %s768, 0.0
      %s770 = smax.f32 %s764, 1e-30
      %s771 = sadd.f32 %s769, 1e-08
      %v772 = vstv %s771
      %v773 = vrcp.pop %v772
      %s774 = vtos %v773
      %s775 = smul.f32 %s770, %s774
      %v776 = vstv %s775
      %v777 = vlog2.pop %v776
      %v778 = vmul.f32 %v777, 0.6931472
      %s779 = vtos %v778
      %s780 = smul.f32 %s779, 10.0
      %v781 = vrcp.pop 2.3025851
      %s782 = vtos %v781
      %s783 = smul.f32 %s780, %s782
      %vm784 = vcmp.eq.s32.totalorder %v316, 0
      %v785 = vsel %vm784, 1, 0
      %vm786 = vcmp.eq.s32.totalorder %v785, 1
      %v787 = vsel %vm786, %v358, 0.0
      %vm788 = vcmp.eq.s32.totalorder %v316, 1
      %v789 = vsel %vm788, 1, 0
      %vm790 = vcmp.eq.s32.totalorder %v789, 1
      %v791 = vsel %vm790, %v514, 0.0
      %v792 = vadd.f32 %v787, %v791
      %vm793 = vcmp.eq.s32.totalorder %v316, 2
      %v794 = vsel %vm793, 1, 0
      %vm795 = vcmp.eq.s32.totalorder %v794, 1
      %v796 = vsel %vm795, %v529, 0.0
      %v797 = vadd.f32 %v792, %v796
      %vm798 = vcmp.eq.s32.totalorder %v316, 3
      %v799 = vsel %vm798, 1, 0
      %vm800 = vcmp.eq.s32.totalorder %v799, 1
      %v801 = vlaneseq
      %v802 = vshrl.u32 %v801, 7
      %v803 = vsub.s32 0, %v802
      %v804 = vrot.slane %v662, %v803
      %v805 = vsel %vm800, %v804, 0.0
      %v806 = vadd.f32 %v797, %v805
      %vm807 = vcmp.eq.s32.totalorder %v316, 4
      %v808 = vstv %s783
      %v809 = vsel %vm807, %v808, 0.0
      %v810 = vadd.f32 %v806, %v809
      %811 = vst [vmem:[%s302] sm:$0xff] %v810
      %p812 = scmp.lt.s32.totalorder %s16, 1
      %s813 = scalar_select %p812, %s16, 1
      %s814 = smul.addr %s813, 8
      %s815 = scalar_lea.vmem %s5, %s814
      // Predicated region
      $region41: #{nda_loss.3} parent=39 // pred_check
        %p816 = pneg %p164
      $region42: #{nda_loss.3} parent=39 // pred_check_branch
        %818 = sbr.rel (%p816) target = $region44
      $region43: #{nda_loss.3} parent=39 // pred_region
        _
      $region44: #{nda_loss.3} parent=39 // pred_fallthru
        _
    $region40: #{nda_loss.3} parent=5 // pred_fallthru
      _
    %p819 = scmp.le.s32.totalorder 2, %s11
    // Predicated region
    $region45: #{nda_loss.3} parent=5 // pred_check
      %p820 = pneg %p819
    $region46: #{nda_loss.3} parent=5 // pred_check_branch
      %822 = sbr.rel (%p820) target = $region48
    $region47: #{nda_loss.3} parent=5 // pred_region
      %s823 = ssub.s32 %s11, 2
      // Predicated region
      $region49: #{nda_loss.3} parent=47 // pred_check
        %p824 = pneg %p170
      $region50: #{nda_loss.3} parent=47 // pred_check_branch
        %826 = sbr.rel (%p824) target = $region52
      $region51: #{nda_loss.3} parent=47 // pred_region
        %p827 = scmp.lt.s32.totalorder %s17, 1
        %s828 = scalar_select %p827, %s17, 1
        %s829 = smul.addr %s828, 8
        %s830 = scalar_lea.vmem %s5, %s829
      $region52: #{nda_loss.3} parent=47 // pred_fallthru
        _
    $region48: #{nda_loss.3} parent=5 // pred_fallthru
      _
  $region6: #{nda_loss.3} parent=0 // loop_footer
    %s15 = sadd.s32 1, %s11
  $region7: #{nda_loss.3} parent=0 // loop_footer_branch
    %10 = sbr.rel target = $region3
  $region8: #{nda_loss.3} parent=0 // loop_exit
    _

// kernel: nda_loss.2
$region0: #{nda_loss.2}
  #allocation0 [shape = 'u32[]', space=smem, size = 0x4, offset = 0x4, fixed_abs, tag = 'smem constant byte address 0x4 - core index']
  #allocation1 [shape = 'u32[144,128]{1,0:T(1,128)}', space=vmem, size = 0x12000, scoped, tag = 'internal scratch']
  %s0 = inlined_call_operand.vmem [shape: bf16[256,512], index: 0, kind: input, shape index: {}]
  %s1 = inlined_call_operand.vmem [shape: bf16[512,768], index: 1, kind: input, shape index: {}]
  %s2 = inlined_call_operand.vmem [shape: bf16[384,128], index: 2, kind: input, shape index: {}]
  %s3 = inlined_call_operand.vmem [shape: f32[256,128], index: 3, kind: output, shape index: {}]
  %s4 = sld [smem:[#allocation0]]
  $region22: #{nda_loss.2} parent=0
    _
  %s6 = ssub.s32 1, %s4
  %s7 = scalar_select 0, %s6, %s4
  // Predicated region
  $region2: #{nda_loss.2} parent=0 // pred_check
    _
  $region3: #{nda_loss.2} parent=0 // pred_check_branch
    %9 = sbr.rel (0) target = $region5
  $region4: #{nda_loss.2} parent=0 // pred_region
    _
  $region5: #{nda_loss.2} parent=0 // pred_fallthru
    _
  // Predicated region
  $region6: #{nda_loss.2} parent=0 // pred_check
    _
  $region7: #{nda_loss.2} parent=0 // pred_check_branch
    %11 = sbr.rel (0) target = $region9
  $region8: #{nda_loss.2} parent=0 // pred_region
    _
  $region9: #{nda_loss.2} parent=0 // pred_fallthru
    _
  // Predicated region
  $region10: #{nda_loss.2} parent=0 // pred_check
    _
  $region11: #{nda_loss.2} parent=0 // pred_check_branch
    %13 = sbr.rel (0) target = $region13
  $region12: #{nda_loss.2} parent=0 // pred_region
    _
  $region13: #{nda_loss.2} parent=0 // pred_fallthru
    _
  %v15 = vld [vmem:[%s0] sm:$0xff]
  %v16 = vld [vmem:[%s0 + $0x8] sm:$0xff]
  %v17 = vld [vmem:[%s0 + $0x10] sm:$0xff]
  %v18 = vld [vmem:[%s0 + $0x18] sm:$0xff]
  %v19 = vld [vmem:[%s0 + $0x20] sm:$0xff]
  %v20 = vld [vmem:[%s0 + $0x28] sm:$0xff]
  %v21 = vld [vmem:[%s0 + $0x30] sm:$0xff]
  %v22 = vld [vmem:[%s0 + $0x38] sm:$0xff]
  %v23 = vld [vmem:[%s0 + $0x40] sm:$0xff]
  %v24 = vld [vmem:[%s0 + $0x48] sm:$0xff]
  %v25 = vld [vmem:[%s0 + $0x50] sm:$0xff]
  %v26 = vld [vmem:[%s0 + $0x58] sm:$0xff]
  %v27 = vld [vmem:[%s0 + $0x60] sm:$0xff]
  %v28 = vld [vmem:[%s0 + $0x68] sm:$0xff]
  %v29 = vld [vmem:[%s0 + $0x70] sm:$0xff]
  %v30 = vld [vmem:[%s0 + $0x78] sm:$0xff]
  %v31 = vld [vmem:[%s0 + $0x80] sm:$0xff]
  %v32 = vld [vmem:[%s0 + $0x88] sm:$0xff]
  %v33 = vld [vmem:[%s0 + $0x90] sm:$0xff]
  %v34 = vld [vmem:[%s0 + $0x98] sm:$0xff]
  %v35 = vld [vmem:[%s0 + $0xa0] sm:$0xff]
  %v36 = vld [vmem:[%s0 + $0xa8] sm:$0xff]
  %v37 = vld [vmem:[%s0 + $0xb0] sm:$0xff]
  %v38 = vld [vmem:[%s0 + $0xb8] sm:$0xff]
  %v39 = vld [vmem:[%s0 + $0xc0] sm:$0xff]
  %v40 = vld [vmem:[%s0 + $0xc8] sm:$0xff]
  %v41 = vld [vmem:[%s0 + $0xd0] sm:$0xff]
  %v42 = vld [vmem:[%s0 + $0xd8] sm:$0xff]
  %v43 = vld [vmem:[%s0 + $0xe0] sm:$0xff]
  %v44 = vld [vmem:[%s0 + $0xe8] sm:$0xff]
  %v45 = vld [vmem:[%s0 + $0xf0] sm:$0xff]
  %v46 = vld [vmem:[%s0 + $0xf8] sm:$0xff]
  %v47 = vld [vmem:[%s0 + $0x100] sm:$0xff]
  %v48 = vld [vmem:[%s0 + $0x108] sm:$0xff]
  %v49 = vld [vmem:[%s0 + $0x110] sm:$0xff]
  %v50 = vld [vmem:[%s0 + $0x118] sm:$0xff]
  %v51 = vld [vmem:[%s0 + $0x120] sm:$0xff]
  %v52 = vld [vmem:[%s0 + $0x128] sm:$0xff]
  %v53 = vld [vmem:[%s0 + $0x130] sm:$0xff]
  %v54 = vld [vmem:[%s0 + $0x138] sm:$0xff]
  %v55 = vld [vmem:[%s0 + $0x140] sm:$0xff]
  %v56 = vld [vmem:[%s0 + $0x148] sm:$0xff]
  %v57 = vld [vmem:[%s0 + $0x150] sm:$0xff]
  %v58 = vld [vmem:[%s0 + $0x158] sm:$0xff]
  %v59 = vld [vmem:[%s0 + $0x160] sm:$0xff]
  %v60 = vld [vmem:[%s0 + $0x168] sm:$0xff]
  %v61 = vld [vmem:[%s0 + $0x170] sm:$0xff]
  %v62 = vld [vmem:[%s0 + $0x178] sm:$0xff]
  %v63 = vld [vmem:[%s0 + $0x180] sm:$0xff]
  %v64 = vld [vmem:[%s0 + $0x188] sm:$0xff]
  %v65 = vld [vmem:[%s0 + $0x190] sm:$0xff]
  %v66 = vld [vmem:[%s0 + $0x198] sm:$0xff]
  %v67 = vld [vmem:[%s0 + $0x1a0] sm:$0xff]
  %v68 = vld [vmem:[%s0 + $0x1a8] sm:$0xff]
  %v69 = vld [vmem:[%s0 + $0x1b0] sm:$0xff]
  %v70 = vld [vmem:[%s0 + $0x1b8] sm:$0xff]
  %v71 = vld [vmem:[%s0 + $0x1c0] sm:$0xff]
  %v72 = vld [vmem:[%s0 + $0x1c8] sm:$0xff]
  %v73 = vld [vmem:[%s0 + $0x1d0] sm:$0xff]
  %v74 = vld [vmem:[%s0 + $0x1d8] sm:$0xff]
  %v75 = vld [vmem:[%s0 + $0x1e0] sm:$0xff]
  %v76 = vld [vmem:[%s0 + $0x1e8] sm:$0xff]
  %v77 = vld [vmem:[%s0 + $0x1f0] sm:$0xff]
  %v78 = vld [vmem:[%s0 + $0x1f8] sm:$0xff]
  %v79 = vld [vmem:[%s1] sm:$0xff]
  %v80 = vld [vmem:[%s1 + $0x8] sm:$0xff]
  %v81 = vld [vmem:[%s1 + $0x10] sm:$0xff]
  %v82 = vld [vmem:[%s1 + $0x18] sm:$0xff]
  %v83 = vld [vmem:[%s1 + $0x20] sm:$0xff]
  %v84 = vld [vmem:[%s1 + $0x28] sm:$0xff]
  %v85 = vld [vmem:[%s1 + $0x30] sm:$0xff]
  %v86 = vld [vmem:[%s1 + $0x38] sm:$0xff]
  %v87 = vld [vmem:[%s1 + $0x40] sm:$0xff]
  %v88 = vld [vmem:[%s1 + $0x48] sm:$0xff]
  %v89 = vld [vmem:[%s1 + $0x50] sm:$0xff]
  %v90 = vld [vmem:[%s1 + $0x58] sm:$0xff]
  %v91 = vld [vmem:[%s1 + $0x60] sm:$0xff]
  %v92 = vld [vmem:[%s1 + $0x68] sm:$0xff]
  %v93 = vld [vmem:[%s1 + $0x70] sm:$0xff]
  %v94 = vld [vmem:[%s1 + $0x78] sm:$0xff]
  %v95 = vld [vmem:[%s1 + $0x80] sm:$0xff]
  %v96 = vld [vmem:[%s1 + $0x88] sm:$0xff]
  %v97 = vld [vmem:[%s1 + $0x90] sm:$0xff]
  %v98 = vld [vmem:[%s1 + $0x98] sm:$0xff]
  %v99 = vld [vmem:[%s1 + $0xa0] sm:$0xff]
  %v100 = vld [vmem:[%s1 + $0xa8] sm:$0xff]
  %v101 = vld [vmem:[%s1 + $0xb0] sm:$0xff]
  %v102 = vld [vmem:[%s1 + $0xb8] sm:$0xff]
  %v103 = vld [vmem:[%s1 + $0xc0] sm:$0xff]
  %v104 = vld [vmem:[%s1 + $0xc8] sm:$0xff]
  %v105 = vld [vmem:[%s1 + $0xd0] sm:$0xff]
  %v106 = vld [vmem:[%s1 + $0xd8] sm:$0xff]
  %v107 = vld [vmem:[%s1 + $0xe0] sm:$0xff]
  %v108 = vld [vmem:[%s1 + $0xe8] sm:$0xff]
  %v109 = vld [vmem:[%s1 + $0xf0] sm:$0xff]
  %v110 = vld [vmem:[%s1 + $0xf8] sm:$0xff]
  %v111 = vld [vmem:[%s1 + $0x100] sm:$0xff]
  %v112 = vld [vmem:[%s1 + $0x108] sm:$0xff]
  %v113 = vld [vmem:[%s1 + $0x110] sm:$0xff]
  %v114 = vld [vmem:[%s1 + $0x118] sm:$0xff]
  %v115 = vld [vmem:[%s1 + $0x120] sm:$0xff]
  %v116 = vld [vmem:[%s1 + $0x128] sm:$0xff]
  %v117 = vld [vmem:[%s1 + $0x130] sm:$0xff]
  %v118 = vld [vmem:[%s1 + $0x138] sm:$0xff]
  %v119 = vld [vmem:[%s1 + $0x140] sm:$0xff]
  %v120 = vld [vmem:[%s1 + $0x148] sm:$0xff]
  %v121 = vld [vmem:[%s1 + $0x150] sm:$0xff]
  %v122 = vld [vmem:[%s1 + $0x158] sm:$0xff]
  %v123 = vld [vmem:[%s1 + $0x160] sm:$0xff]
  %v124 = vld [vmem:[%s1 + $0x168] sm:$0xff]
  %v125 = vld [vmem:[%s1 + $0x170] sm:$0xff]
  %v126 = vld [vmem:[%s1 + $0x178] sm:$0xff]
  %v127 = vld [vmem:[%s1 + $0x180] sm:$0xff]
  %v128 = vld [vmem:[%s1 + $0x188] sm:$0xff]
  %v129 = vld [vmem:[%s1 + $0x190] sm:$0xff]
  %v130 = vld [vmem:[%s1 + $0x198] sm:$0xff]
  %v131 = vld [vmem:[%s1 + $0x1a0] sm:$0xff]
  %v132 = vld [vmem:[%s1 + $0x1a8] sm:$0xff]
  %v133 = vld [vmem:[%s1 + $0x1b0] sm:$0xff]
  %v134 = vld [vmem:[%s1 + $0x1b8] sm:$0xff]
  %v135 = vld [vmem:[%s1 + $0x1c0] sm:$0xff]
  %v136 = vld [vmem:[%s1 + $0x1c8] sm:$0xff]
  %v137 = vld [vmem:[%s1 + $0x1d0] sm:$0xff]
  %v138 = vld [vmem:[%s1 + $0x1d8] sm:$0xff]
  %v139 = vld [vmem:[%s1 + $0x1e0] sm:$0xff]
  %v140 = vld [vmem:[%s1 + $0x1e8] sm:$0xff]
  %v141 = vld [vmem:[%s1 + $0x1f0] sm:$0xff]
  %v142 = vld [vmem:[%s1 + $0x1f8] sm:$0xff]
  %v143 = vld [vmem:[%s1 + $0x200] sm:$0xff]
  %v144 = vld [vmem:[%s1 + $0x208] sm:$0xff]
  %v145 = vld [vmem:[%s1 + $0x210] sm:$0xff]
  %v146 = vld [vmem:[%s1 + $0x218] sm:$0xff]
  %v147 = vld [vmem:[%s1 + $0x220] sm:$0xff]
  %v148 = vld [vmem:[%s1 + $0x228] sm:$0xff]
  %v149 = vld [vmem:[%s1 + $0x230] sm:$0xff]
  %v150 = vld [vmem:[%s1 + $0x238] sm:$0xff]
  %v151 = vld [vmem:[%s1 + $0x240] sm:$0xff]
  %v152 = vld [vmem:[%s1 + $0x248] sm:$0xff]
  %v153 = vld [vmem:[%s1 + $0x250] sm:$0xff]
  %v154 = vld [vmem:[%s1 + $0x258] sm:$0xff]
  %v155 = vld [vmem:[%s1 + $0x260] sm:$0xff]
  %v156 = vld [vmem:[%s1 + $0x268] sm:$0xff]
  %v157 = vld [vmem:[%s1 + $0x270] sm:$0xff]
  %v158 = vld [vmem:[%s1 + $0x278] sm:$0xff]
  %v159 = vld [vmem:[%s1 + $0x280] sm:$0xff]
  %v160 = vld [vmem:[%s1 + $0x288] sm:$0xff]
  %v161 = vld [vmem:[%s1 + $0x290] sm:$0xff]
  %v162 = vld [vmem:[%s1 + $0x298] sm:$0xff]
  %v163 = vld [vmem:[%s1 + $0x2a0] sm:$0xff]
  %v164 = vld [vmem:[%s1 + $0x2a8] sm:$0xff]
  %v165 = vld [vmem:[%s1 + $0x2b0] sm:$0xff]
  %v166 = vld [vmem:[%s1 + $0x2b8] sm:$0xff]
  %v167 = vld [vmem:[%s1 + $0x2c0] sm:$0xff]
  %v168 = vld [vmem:[%s1 + $0x2c8] sm:$0xff]
  %v169 = vld [vmem:[%s1 + $0x2d0] sm:$0xff]
  %v170 = vld [vmem:[%s1 + $0x2d8] sm:$0xff]
  %v171 = vld [vmem:[%s1 + $0x2e0] sm:$0xff]
  %v172 = vld [vmem:[%s1 + $0x2e8] sm:$0xff]
  %v173 = vld [vmem:[%s1 + $0x2f0] sm:$0xff]
  %v174 = vld [vmem:[%s1 + $0x2f8] sm:$0xff]
  %v175 = vld [vmem:[%s1 + $0x300] sm:$0xff]
  %v176 = vld [vmem:[%s1 + $0x308] sm:$0xff]
  %v177 = vld [vmem:[%s1 + $0x310] sm:$0xff]
  %v178 = vld [vmem:[%s1 + $0x318] sm:$0xff]
  %v179 = vld [vmem:[%s1 + $0x320] sm:$0xff]
  %v180 = vld [vmem:[%s1 + $0x328] sm:$0xff]
  %v181 = vld [vmem:[%s1 + $0x330] sm:$0xff]
  %v182 = vld [vmem:[%s1 + $0x338] sm:$0xff]
  %v183 = vld [vmem:[%s1 + $0x340] sm:$0xff]
  %v184 = vld [vmem:[%s1 + $0x348] sm:$0xff]
  %v185 = vld [vmem:[%s1 + $0x350] sm:$0xff]
  %v186 = vld [vmem:[%s1 + $0x358] sm:$0xff]
  %v187 = vld [vmem:[%s1 + $0x360] sm:$0xff]
  %v188 = vld [vmem:[%s1 + $0x368] sm:$0xff]
  %v189 = vld [vmem:[%s1 + $0x370] sm:$0xff]
  %v190 = vld [vmem:[%s1 + $0x378] sm:$0xff]
  %v191 = vld [vmem:[%s1 + $0x380] sm:$0xff]
  %v192 = vld [vmem:[%s1 + $0x388] sm:$0xff]
  %v193 = vld [vmem:[%s1 + $0x390] sm:$0xff]
  %v194 = vld [vmem:[%s1 + $0x398] sm:$0xff]
  %v195 = vld [vmem:[%s1 + $0x3a0] sm:$0xff]
  %v196 = vld [vmem:[%s1 + $0x3a8] sm:$0xff]
  %v197 = vld [vmem:[%s1 + $0x3b0] sm:$0xff]
  %v198 = vld [vmem:[%s1 + $0x3b8] sm:$0xff]
  %v199 = vld [vmem:[%s1 + $0x3c0] sm:$0xff]
  %v200 = vld [vmem:[%s1 + $0x3c8] sm:$0xff]
  %v201 = vld [vmem:[%s1 + $0x3d0] sm:$0xff]
  %v202 = vld [vmem:[%s1 + $0x3d8] sm:$0xff]
  %v203 = vld [vmem:[%s1 + $0x3e0] sm:$0xff]
  %v204 = vld [vmem:[%s1 + $0x3e8] sm:$0xff]
  %v205 = vld [vmem:[%s1 + $0x3f0] sm:$0xff]
  %v206 = vld [vmem:[%s1 + $0x3f8] sm:$0xff]
  %v207 = vld [vmem:[%s1 + $0x400] sm:$0xff]
  %v208 = vld [vmem:[%s1 + $0x408] sm:$0xff]
  %v209 = vld [vmem:[%s1 + $0x410] sm:$0xff]
  %v210 = vld [vmem:[%s1 + $0x418] sm:$0xff]
  %v211 = vld [vmem:[%s1 + $0x420] sm:$0xff]
  %v212 = vld [vmem:[%s1 + $0x428] sm:$0xff]
  %v213 = vld [vmem:[%s1 + $0x430] sm:$0xff]
  %v214 = vld [vmem:[%s1 + $0x438] sm:$0xff]
  %v215 = vld [vmem:[%s1 + $0x440] sm:$0xff]
  %v216 = vld [vmem:[%s1 + $0x448] sm:$0xff]
  %v217 = vld [vmem:[%s1 + $0x450] sm:$0xff]
  %v218 = vld [vmem:[%s1 + $0x458] sm:$0xff]
  %v219 = vld [vmem:[%s1 + $0x460] sm:$0xff]
  %v220 = vld [vmem:[%s1 + $0x468] sm:$0xff]
  %v221 = vld [vmem:[%s1 + $0x470] sm:$0xff]
  %v222 = vld [vmem:[%s1 + $0x478] sm:$0xff]
  %v223 = vld [vmem:[%s1 + $0x480] sm:$0xff]
  %v224 = vld [vmem:[%s1 + $0x488] sm:$0xff]
  %v225 = vld [vmem:[%s1 + $0x490] sm:$0xff]
  %v226 = vld [vmem:[%s1 + $0x498] sm:$0xff]
  %v227 = vld [vmem:[%s1 + $0x4a0] sm:$0xff]
  %v228 = vld [vmem:[%s1 + $0x4a8] sm:$0xff]
  %v229 = vld [vmem:[%s1 + $0x4b0] sm:$0xff]
  %v230 = vld [vmem:[%s1 + $0x4b8] sm:$0xff]
  %v231 = vld [vmem:[%s1 + $0x4c0] sm:$0xff]
  %v232 = vld [vmem:[%s1 + $0x4c8] sm:$0xff]
  %v233 = vld [vmem:[%s1 + $0x4d0] sm:$0xff]
  %v234 = vld [vmem:[%s1 + $0x4d8] sm:$0xff]
  %v235 = vld [vmem:[%s1 + $0x4e0] sm:$0xff]
  %v236 = vld [vmem:[%s1 + $0x4e8] sm:$0xff]
  %v237 = vld [vmem:[%s1 + $0x4f0] sm:$0xff]
  %v238 = vld [vmem:[%s1 + $0x4f8] sm:$0xff]
  %v239 = vld [vmem:[%s1 + $0x500] sm:$0xff]
  %v240 = vld [vmem:[%s1 + $0x508] sm:$0xff]
  %v241 = vld [vmem:[%s1 + $0x510] sm:$0xff]
  %v242 = vld [vmem:[%s1 + $0x518] sm:$0xff]
  %v243 = vld [vmem:[%s1 + $0x520] sm:$0xff]
  %v244 = vld [vmem:[%s1 + $0x528] sm:$0xff]
  %v245 = vld [vmem:[%s1 + $0x530] sm:$0xff]
  %v246 = vld [vmem:[%s1 + $0x538] sm:$0xff]
  %v247 = vld [vmem:[%s1 + $0x540] sm:$0xff]
  %v248 = vld [vmem:[%s1 + $0x548] sm:$0xff]
  %v249 = vld [vmem:[%s1 + $0x550] sm:$0xff]
  %v250 = vld [vmem:[%s1 + $0x558] sm:$0xff]
  %v251 = vld [vmem:[%s1 + $0x560] sm:$0xff]
  %v252 = vld [vmem:[%s1 + $0x568] sm:$0xff]
  %v253 = vld [vmem:[%s1 + $0x570] sm:$0xff]
  %v254 = vld [vmem:[%s1 + $0x578] sm:$0xff]
  %v255 = vld [vmem:[%s1 + $0x580] sm:$0xff]
  %v256 = vld [vmem:[%s1 + $0x588] sm:$0xff]
  %v257 = vld [vmem:[%s1 + $0x590] sm:$0xff]
  %v258 = vld [vmem:[%s1 + $0x598] sm:$0xff]
  %v259 = vld [vmem:[%s1 + $0x5a0] sm:$0xff]
  %v260 = vld [vmem:[%s1 + $0x5a8] sm:$0xff]
  %v261 = vld [vmem:[%s1 + $0x5b0] sm:$0xff]
  %v262 = vld [vmem:[%s1 + $0x5b8] sm:$0xff]
  %v263 = vld [vmem:[%s1 + $0x5c0] sm:$0xff]
  %v264 = vld [vmem:[%s1 + $0x5c8] sm:$0xff]
  %v265 = vld [vmem:[%s1 + $0x5d0] sm:$0xff]
  %v266 = vld [vmem:[%s1 + $0x5d8] sm:$0xff]
  %v267 = vld [vmem:[%s1 + $0x5e0] sm:$0xff]
  %v268 = vld [vmem:[%s1 + $0x5e8] sm:$0xff]
  %v269 = vld [vmem:[%s1 + $0x5f0] sm:$0xff]
  %v270 = vld [vmem:[%s1 + $0x5f8] sm:$0xff]
  %v335 = vunpack.c.l.b16 %v15
  %v336 = vunpack.c.h.b16 %v15
  %v337 = vunpack.c.l.b16 %v16
  %v338 = vunpack.c.h.b16 %v16
  %v339 = vunpack.c.l.b16 %v17
  %v340 = vunpack.c.h.b16 %v17
  %v341 = vunpack.c.l.b16 %v18
  %v342 = vunpack.c.h.b16 %v18
  %v343 = vunpack.c.l.b16 %v19
  %v344 = vunpack.c.h.b16 %v19
  %v345 = vunpack.c.l.b16 %v20
  %v346 = vunpack.c.h.b16 %v20
  %v347 = vunpack.c.l.b16 %v21
  %v348 = vunpack.c.h.b16 %v21
  %v349 = vunpack.c.l.b16 %v22
  %v350 = vunpack.c.h.b16 %v22
  %v351 = vunpack.c.l.b16 %v23
  %v352 = vunpack.c.h.b16 %v23
  %v353 = vunpack.c.l.b16 %v24
  %v354 = vunpack.c.h.b16 %v24
  %v355 = vunpack.c.l.b16 %v25
  %v356 = vunpack.c.h.b16 %v25
  %v357 = vunpack.c.l.b16 %v26
  %v358 = vunpack.c.h.b16 %v26
  %v359 = vunpack.c.l.b16 %v27
  %v360 = vunpack.c.h.b16 %v27
  %v361 = vunpack.c.l.b16 %v28
  %v362 = vunpack.c.h.b16 %v28
  %v363 = vunpack.c.l.b16 %v29
  %v364 = vunpack.c.h.b16 %v29
  %v365 = vunpack.c.l.b16 %v30
  %v366 = vunpack.c.h.b16 %v30
  %v367 = vunpack.c.l.b16 %v31
  %v368 = vunpack.c.h.b16 %v31
  %v369 = vunpack.c.l.b16 %v32
  %v370 = vunpack.c.h.b16 %v32
  %v371 = vunpack.c.l.b16 %v33
  %v372 = vunpack.c.h.b16 %v33
  %v373 = vunpack.c.l.b16 %v34
  %v374 = vunpack.c.h.b16 %v34
  %v375 = vunpack.c.l.b16 %v35
  %v376 = vunpack.c.h.b16 %v35
  %v377 = vunpack.c.l.b16 %v36
  %v378 = vunpack.c.h.b16 %v36
  %v379 = vunpack.c.l.b16 %v37
  %v380 = vunpack.c.h.b16 %v37
  %v381 = vunpack.c.l.b16 %v38
  %v382 = vunpack.c.h.b16 %v38
  %v383 = vunpack.c.l.b16 %v39
  %v384 = vunpack.c.h.b16 %v39
  %v385 = vunpack.c.l.b16 %v40
  %v386 = vunpack.c.h.b16 %v40
  %v387 = vunpack.c.l.b16 %v41
  %v388 = vunpack.c.h.b16 %v41
  %v389 = vunpack.c.l.b16 %v42
  %v390 = vunpack.c.h.b16 %v42
  %v391 = vunpack.c.l.b16 %v43
  %v392 = vunpack.c.h.b16 %v43
  %v393 = vunpack.c.l.b16 %v44
  %v394 = vunpack.c.h.b16 %v44
  %v395 = vunpack.c.l.b16 %v45
  %v396 = vunpack.c.h.b16 %v45
  %v397 = vunpack.c.l.b16 %v46
  %v398 = vunpack.c.h.b16 %v46
  %v399 = vunpack.c.l.b16 %v47
  %v400 = vunpack.c.h.b16 %v47
  %v401 = vunpack.c.l.b16 %v48
  %v402 = vunpack.c.h.b16 %v48
  %v403 = vunpack.c.l.b16 %v49
  %v404 = vunpack.c.h.b16 %v49
  %v405 = vunpack.c.l.b16 %v50
  %v406 = vunpack.c.h.b16 %v50
  %v407 = vunpack.c.l.b16 %v51
  %v408 = vunpack.c.h.b16 %v51
  %v409 = vunpack.c.l.b16 %v52
  %v410 = vunpack.c.h.b16 %v52
  %v411 = vunpack.c.l.b16 %v53
  %v412 = vunpack.c.h.b16 %v53
  %v413 = vunpack.c.l.b16 %v54
  %v414 = vunpack.c.h.b16 %v54
  %v415 = vunpack.c.l.b16 %v55
  %v416 = vunpack.c.h.b16 %v55
  %v417 = vunpack.c.l.b16 %v56
  %v418 = vunpack.c.h.b16 %v56
  %v419 = vunpack.c.l.b16 %v57
  %v420 = vunpack.c.h.b16 %v57
  %v421 = vunpack.c.l.b16 %v58
  %v422 = vunpack.c.h.b16 %v58
  %v423 = vunpack.c.l.b16 %v59
  %v424 = vunpack.c.h.b16 %v59
  %v425 = vunpack.c.l.b16 %v60
  %v426 = vunpack.c.h.b16 %v60
  %v427 = vunpack.c.l.b16 %v61
  %v428 = vunpack.c.h.b16 %v61
  %v429 = vunpack.c.l.b16 %v62
  %v430 = vunpack.c.h.b16 %v62
  %v431 = vunpack.c.l.b16 %v63
  %v432 = vunpack.c.h.b16 %v63
  %v433 = vunpack.c.l.b16 %v64
  %v434 = vunpack.c.h.b16 %v64
  %v435 = vunpack.c.l.b16 %v65
  %v436 = vunpack.c.h.b16 %v65
  %v437 = vunpack.c.l.b16 %v66
  %v438 = vunpack.c.h.b16 %v66
  %v439 = vunpack.c.l.b16 %v67
  %v440 = vunpack.c.h.b16 %v67
  %v441 = vunpack.c.l.b16 %v68
  %v442 = vunpack.c.h.b16 %v68
  %v443 = vunpack.c.l.b16 %v69
  %v444 = vunpack.c.h.b16 %v69
  %v445 = vunpack.c.l.b16 %v70
  %v446 = vunpack.c.h.b16 %v70
  %v447 = vunpack.c.l.b16 %v71
  %v448 = vunpack.c.h.b16 %v71
  %v449 = vunpack.c.l.b16 %v72
  %v450 = vunpack.c.h.b16 %v72
  %v451 = vunpack.c.l.b16 %v73
  %v452 = vunpack.c.h.b16 %v73
  %v453 = vunpack.c.l.b16 %v74
  %v454 = vunpack.c.h.b16 %v74
  %v455 = vunpack.c.l.b16 %v75
  %v456 = vunpack.c.h.b16 %v75
  %v457 = vunpack.c.l.b16 %v76
  %v458 = vunpack.c.h.b16 %v76
  %v459 = vunpack.c.l.b16 %v77
  %v460 = vunpack.c.h.b16 %v77
  %v461 = vunpack.c.l.b16 %v78
  %v462 = vunpack.c.h.b16 %v78
  %v463 = vpack.c.b16 %v339, %v335
  %v464 = vpack.c.b16 %v340, %v336
  %v465 = vpack.c.b16 %v341, %v337
  %v466 = vpack.c.b16 %v342, %v338
  %v467 = vpack.c.b16 %v347, %v343
  %v468 = vpack.c.b16 %v348, %v344
  %v469 = vpack.c.b16 %v349, %v345
  %v470 = vpack.c.b16 %v350, %v346
  %v471 = vpack.c.b16 %v355, %v351
  %v472 = vpack.c.b16 %v356, %v352
  %v473 = vpack.c.b16 %v357, %v353
  %v474 = vpack.c.b16 %v358, %v354
  %v475 = vpack.c.b16 %v363, %v359
  %v476 = vpack.c.b16 %v364, %v360
  %v477 = vpack.c.b16 %v365, %v361
  %v478 = vpack.c.b16 %v366, %v362
  %v479 = vpack.c.b16 %v371, %v367
  %v480 = vpack.c.b16 %v372, %v368
  %v481 = vpack.c.b16 %v373, %v369
  %v482 = vpack.c.b16 %v374, %v370
  %v483 = vpack.c.b16 %v379, %v375
  %v484 = vpack.c.b16 %v380, %v376
  %v485 = vpack.c.b16 %v381, %v377
  %v486 = vpack.c.b16 %v382, %v378
  %v487 = vpack.c.b16 %v387, %v383
  %v488 = vpack.c.b16 %v388, %v384
  %v489 = vpack.c.b16 %v389, %v385
  %v490 = vpack.c.b16 %v390, %v386
  %v491 = vpack.c.b16 %v395, %v391
  %v492 = vpack.c.b16 %v396, %v392
  %v493 = vpack.c.b16 %v397, %v393
  %v494 = vpack.c.b16 %v398, %v394
  %v495 = vpack.c.b16 %v403, %v399
  %v496 = vpack.c.b16 %v404, %v400
  %v497 = vpack.c.b16 %v405, %v401
  %v498 = vpack.c.b16 %v406, %v402
  %v499 = vpack.c.b16 %v411, %v407
  %v500 = vpack.c.b16 %v412, %v408
  %v501 = vpack.c.b16 %v413, %v409
  %v502 = vpack.c.b16 %v414, %v410
  %v503 = vpack.c.b16 %v419, %v415
  %v504 = vpack.c.b16 %v420, %v416
  %v505 = vpack.c.b16 %v421, %v417
  %v506 = vpack.c.b16 %v422, %v418
  %v507 = vpack.c.b16 %v427, %v423
  %v508 = vpack.c.b16 %v428, %v424
  %v509 = vpack.c.b16 %v429, %v425
  %v510 = vpack.c.b16 %v430, %v426
  %v511 = vpack.c.b16 %v435, %v431
  %v512 = vpack.c.b16 %v436, %v432
  %v513 = vpack.c.b16 %v437, %v433
  %v514 = vpack.c.b16 %v438, %v434
  %v515 = vpack.c.b16 %v443, %v439
  %v516 = vpack.c.b16 %v444, %v440
  %v517 = vpack.c.b16 %v445, %v441
  %v518 = vpack.c.b16 %v446, %v442
  %v519 = vpack.c.b16 %v451, %v447
  %v520 = vpack.c.b16 %v452, %v448
  %v521 = vpack.c.b16 %v453, %v449
  %v522 = vpack.c.b16 %v454, %v450
  %v523 = vpack.c.b16 %v459, %v455
  %v524 = vpack.c.b16 %v460, %v456
  %v525 = vpack.c.b16 %v461, %v457
  %v526 = vpack.c.b16 %v462, %v458
  %v783 = vunpack.c.l.b16 %v79
  %v784 = vunpack.c.h.b16 %v79
  %v785 = vunpack.c.l.b16 %v80
  %v786 = vunpack.c.h.b16 %v80
  %v787 = vunpack.c.l.b16 %v81
  %v788 = vunpack.c.h.b16 %v81
  %v789 = vunpack.c.l.b16 %v82
  %v790 = vunpack.c.h.b16 %v82
  %v791 = vunpack.c.l.b16 %v83
  %v792 = vunpack.c.h.b16 %v83
  %v793 = vunpack.c.l.b16 %v84
  %v794 = vunpack.c.h.b16 %v84
  %v795 = vunpack.c.l.b16 %v85
  %v796 = vunpack.c.h.b16 %v85
  %v797 = vunpack.c.l.b16 %v86
  %v798 = vunpack.c.h.b16 %v86
  %v799 = vunpack.c.l.b16 %v87
  %v800 = vunpack.c.h.b16 %v87
  %v801 = vunpack.c.l.b16 %v88
  %v802 = vunpack.c.h.b16 %v88
  %v803 = vunpack.c.l.b16 %v89
  %v804 = vunpack.c.h.b16 %v89
  %v805 = vunpack.c.l.b16 %v90
  %v806 = vunpack.c.h.b16 %v90
  %v807 = vunpack.c.l.b16 %v91
  %v808 = vunpack.c.h.b16 %v91
  %v809 = vunpack.c.l.b16 %v92
  %v810 = vunpack.c.h.b16 %v92
  %v811 = vunpack.c.l.b16 %v93
  %v812 = vunpack.c.h.b16 %v93
  %v813 = vunpack.c.l.b16 %v94
  %v814 = vunpack.c.h.b16 %v94
  %v815 = vunpack.c.l.b16 %v95
  %v816 = vunpack.c.h.b16 %v95
  %v817 = vunpack.c.l.b16 %v96
  %v818 = vunpack.c.h.b16 %v96
  %v819 = vunpack.c.l.b16 %v97
  %v820 = vunpack.c.h.b16 %v97
  %v821 = vunpack.c.l.b16 %v98
  %v822 = vunpack.c.h.b16 %v98
  %v823 = vunpack.c.l.b16 %v99
  %v824 = vunpack.c.h.b16 %v99
  %v825 = vunpack.c.l.b16 %v100
  %v826 = vunpack.c.h.b16 %v100
  %v827 = vunpack.c.l.b16 %v101
  %v828 = vunpack.c.h.b16 %v101
  %v829 = vunpack.c.l.b16 %v102
  %v830 = vunpack.c.h.b16 %v102
  %v831 = vunpack.c.l.b16 %v103
  %v832 = vunpack.c.h.b16 %v103
  %v833 = vunpack.c.l.b16 %v104
  %v834 = vunpack.c.h.b16 %v104
  %v835 = vunpack.c.l.b16 %v105
  %v836 = vunpack.c.h.b16 %v105
  %v837 = vunpack.c.l.b16 %v106
  %v838 = vunpack.c.h.b16 %v106
  %v839 = vunpack.c.l.b16 %v107
  %v840 = vunpack.c.h.b16 %v107
  %v841 = vunpack.c.l.b16 %v108
  %v842 = vunpack.c.h.b16 %v108
  %v843 = vunpack.c.l.b16 %v109
  %v844 = vunpack.c.h.b16 %v109
  %v845 = vunpack.c.l.b16 %v110
  %v846 = vunpack.c.h.b16 %v110
  %v847 = vunpack.c.l.b16 %v111
  %v848 = vunpack.c.h.b16 %v111
  %v849 = vunpack.c.l.b16 %v112
  %v850 = vunpack.c.h.b16 %v112
  %v851 = vunpack.c.l.b16 %v113
  %v852 = vunpack.c.h.b16 %v113
  %v853 = vunpack.c.l.b16 %v114
  %v854 = vunpack.c.h.b16 %v114
  %v855 = vunpack.c.l.b16 %v115
  %v856 = vunpack.c.h.b16 %v115
  %v857 = vunpack.c.l.b16 %v116
  %v858 = vunpack.c.h.b16 %v116
  %v859 = vunpack.c.l.b16 %v117
  %v860 = vunpack.c.h.b16 %v117
  %v861 = vunpack.c.l.b16 %v118
  %v862 = vunpack.c.h.b16 %v118
  %v863 = vunpack.c.l.b16 %v119
  %v864 = vunpack.c.h.b16 %v119
  %v865 = vunpack.c.l.b16 %v120
  %v866 = vunpack.c.h.b16 %v120
  %v867 = vunpack.c.l.b16 %v121
  %v868 = vunpack.c.h.b16 %v121
  %v869 = vunpack.c.l.b16 %v122
  %v870 = vunpack.c.h.b16 %v122
  %v871 = vunpack.c.l.b16 %v123
  %v872 = vunpack.c.h.b16 %v123
  %v873 = vunpack.c.l.b16 %v124
  %v874 = vunpack.c.h.b16 %v124
  %v875 = vunpack.c.l.b16 %v125
  %v876 = vunpack.c.h.b16 %v125
  %v877 = vunpack.c.l.b16 %v126
  %v878 = vunpack.c.h.b16 %v126
  %v879 = vunpack.c.l.b16 %v127
  %v880 = vunpack.c.h.b16 %v127
  %v881 = vunpack.c.l.b16 %v128
  %v882 = vunpack.c.h.b16 %v128
  %v883 = vunpack.c.l.b16 %v129
  %v884 = vunpack.c.h.b16 %v129
  %v885 = vunpack.c.l.b16 %v130
  %v886 = vunpack.c.h.b16 %v130
  %v887 = vunpack.c.l.b16 %v131
  %v888 = vunpack.c.h.b16 %v131
  %v889 = vunpack.c.l.b16 %v132
  %v890 = vunpack.c.h.b16 %v132
  %v891 = vunpack.c.l.b16 %v133
  %v892 = vunpack.c.h.b16 %v133
  %v893 = vunpack.c.l.b16 %v134
  %v894 = vunpack.c.h.b16 %v134
  %v895 = vunpack.c.l.b16 %v135
  %v896 = vunpack.c.h.b16 %v135
  %v897 = vunpack.c.l.b16 %v136
  %v898 = vunpack.c.h.b16 %v136
  %v899 = vunpack.c.l.b16 %v137
  %v900 = vunpack.c.h.b16 %v137
  %v901 = vunpack.c.l.b16 %v138
  %v902 = vunpack.c.h.b16 %v138
  %v903 = vunpack.c.l.b16 %v139
  %v904 = vunpack.c.h.b16 %v139
  %v905 = vunpack.c.l.b16 %v140
  %v906 = vunpack.c.h.b16 %v140
  %v907 = vunpack.c.l.b16 %v141
  %v908 = vunpack.c.h.b16 %v141
  %v909 = vunpack.c.l.b16 %v142
  %v910 = vunpack.c.h.b16 %v142
  %v911 = vunpack.c.l.b16 %v143
  %v912 = vunpack.c.h.b16 %v143
  %v913 = vunpack.c.l.b16 %v144
  %v914 = vunpack.c.h.b16 %v144
  %v915 = vunpack.c.l.b16 %v145
  %v916 = vunpack.c.h.b16 %v145
  %v917 = vunpack.c.l.b16 %v146
  %v918 = vunpack.c.h.b16 %v146
  %v919 = vunpack.c.l.b16 %v147
  %v920 = vunpack.c.h.b16 %v147
  %v921 = vunpack.c.l.b16 %v148
  %v922 = vunpack.c.h.b16 %v148
  %v923 = vunpack.c.l.b16 %v149
  %v924 = vunpack.c.h.b16 %v149
  %v925 = vunpack.c.l.b16 %v150
  %v926 = vunpack.c.h.b16 %v150
  %v927 = vunpack.c.l.b16 %v151
  %v928 = vunpack.c.h.b16 %v151
  %v929 = vunpack.c.l.b16 %v152
  %v930 = vunpack.c.h.b16 %v152
  %v931 = vunpack.c.l.b16 %v153
  %v932 = vunpack.c.h.b16 %v153
  %v933 = vunpack.c.l.b16 %v154
  %v934 = vunpack.c.h.b16 %v154
  %v935 = vunpack.c.l.b16 %v155
  %v936 = vunpack.c.h.b16 %v155
  %v937 = vunpack.c.l.b16 %v156
  %v938 = vunpack.c.h.b16 %v156
  %v939 = vunpack.c.l.b16 %v157
  %v940 = vunpack.c.h.b16 %v157
  %v941 = vunpack.c.l.b16 %v158
  %v942 = vunpack.c.h.b16 %v158
  %v943 = vunpack.c.l.b16 %v159
  %v944 = vunpack.c.h.b16 %v159
  %v945 = vunpack.c.l.b16 %v160
  %v946 = vunpack.c.h.b16 %v160
  %v947 = vunpack.c.l.b16 %v161
  %v948 = vunpack.c.h.b16 %v161
  %v949 = vunpack.c.l.b16 %v162
  %v950 = vunpack.c.h.b16 %v162
  %v951 = vunpack.c.l.b16 %v163
  %v952 = vunpack.c.h.b16 %v163
  %v953 = vunpack.c.l.b16 %v164
  %v954 = vunpack.c.h.b16 %v164
  %v955 = vunpack.c.l.b16 %v165
  %v956 = vunpack.c.h.b16 %v165
  %v957 = vunpack.c.l.b16 %v166
  %v958 = vunpack.c.h.b16 %v166
  %v959 = vunpack.c.l.b16 %v167
  %v960 = vunpack.c.h.b16 %v167
  %v961 = vunpack.c.l.b16 %v168
  %v962 = vunpack.c.h.b16 %v168
  %v963 = vunpack.c.l.b16 %v169
  %v964 = vunpack.c.h.b16 %v169
  %v965 = vunpack.c.l.b16 %v170
  %v966 = vunpack.c.h.b16 %v170
  %v967 = vunpack.c.l.b16 %v171
  %v968 = vunpack.c.h.b16 %v171
  %v969 = vunpack.c.l.b16 %v172
  %v970 = vunpack.c.h.b16 %v172
  %v971 = vunpack.c.l.b16 %v173
  %v972 = vunpack.c.h.b16 %v173
  %v973 = vunpack.c.l.b16 %v174
  %v974 = vunpack.c.h.b16 %v174
  %v975 = vunpack.c.l.b16 %v175
  %v976 = vunpack.c.h.b16 %v175
  %v977 = vunpack.c.l.b16 %v176
  %v978 = vunpack.c.h.b16 %v176
  %v979 = vunpack.c.l.b16 %v177
  %v980 = vunpack.c.h.b16 %v177
  %v981 = vunpack.c.l.b16 %v178
  %v982 = vunpack.c.h.b16 %v178
  %v983 = vunpack.c.l.b16 %v179
  %v984 = vunpack.c.h.b16 %v179
  %v985 = vunpack.c.l.b16 %v180
  %v986 = vunpack.c.h.b16 %v180
  %v987 = vunpack.c.l.b16 %v181
  %v988 = vunpack.c.h.b16 %v181
  %v989 = vunpack.c.l.b16 %v182
  %v990 = vunpack.c.h.b16 %v182
  %v991 = vunpack.c.l.b16 %v183
  %v992 = vunpack.c.h.b16 %v183
  %v993 = vunpack.c.l.b16 %v184
  %v994 = vunpack.c.h.b16 %v184
  %v995 = vunpack.c.l.b16 %v185
  %v996 = vunpack.c.h.b16 %v185
  %v997 = vunpack.c.l.b16 %v186
  %v998 = vunpack.c.h.b16 %v186
  %v999 = vunpack.c.l.b16 %v187
  %v1000 = vunpack.c.h.b16 %v187
  %v1001 = vunpack.c.l.b16 %v188
  %v1002 = vunpack.c.h.b16 %v188
  %v1003 = vunpack.c.l.b16 %v189
  %v1004 = vunpack.c.h.b16 %v189
  %v1005 = vunpack.c.l.b16 %v190
  %v1006 = vunpack.c.h.b16 %v190
  %v1007 = vunpack.c.l.b16 %v191
  %v1008 = vunpack.c.h.b16 %v191
  %v1009 = vunpack.c.l.b16 %v192
  %v1010 = vunpack.c.h.b16 %v192
  %v1011 = vunpack.c.l.b16 %v193
  %v1012 = vunpack.c.h.b16 %v193
  %v1013 = vunpack.c.l.b16 %v194
  %v1014 = vunpack.c.h.b16 %v194
  %v1015 = vunpack.c.l.b16 %v195
  %v1016 = vunpack.c.h.b16 %v195
  %v1017 = vunpack.c.l.b16 %v196
  %v1018 = vunpack.c.h.b16 %v196
  %v1019 = vunpack.c.l.b16 %v197
  %v1020 = vunpack.c.h.b16 %v197
  %v1021 = vunpack.c.l.b16 %v198
  %v1022 = vunpack.c.h.b16 %v198
  %v1023 = vunpack.c.l.b16 %v199
  %v1024 = vunpack.c.h.b16 %v199
  %v1025 = vunpack.c.l.b16 %v200
  %v1026 = vunpack.c.h.b16 %v200
  %v1027 = vunpack.c.l.b16 %v201
  %v1028 = vunpack.c.h.b16 %v201
  %v1029 = vunpack.c.l.b16 %v202
  %v1030 = vunpack.c.h.b16 %v202
  %v1031 = vunpack.c.l.b16 %v203
  %v1032 = vunpack.c.h.b16 %v203
  %v1033 = vunpack.c.l.b16 %v204
  %v1034 = vunpack.c.h.b16 %v204
  %v1035 = vunpack.c.l.b16 %v205
  %v1036 = vunpack.c.h.b16 %v205
  %v1037 = vunpack.c.l.b16 %v206
  %v1038 = vunpack.c.h.b16 %v206
  %v1039 = vunpack.c.l.b16 %v207
  %v1040 = vunpack.c.h.b16 %v207
  %v1041 = vunpack.c.l.b16 %v208
  %v1042 = vunpack.c.h.b16 %v208
  %v1043 = vunpack.c.l.b16 %v209
  %v1044 = vunpack.c.h.b16 %v209
  %v1045 = vunpack.c.l.b16 %v210
  %v1046 = vunpack.c.h.b16 %v210
  %v1047 = vunpack.c.l.b16 %v211
  %v1048 = vunpack.c.h.b16 %v211
  %v1049 = vunpack.c.l.b16 %v212
  %v1050 = vunpack.c.h.b16 %v212
  %v1051 = vunpack.c.l.b16 %v213
  %v1052 = vunpack.c.h.b16 %v213
  %v1053 = vunpack.c.l.b16 %v214
  %v1054 = vunpack.c.h.b16 %v214
  %v1055 = vunpack.c.l.b16 %v215
  %v1056 = vunpack.c.h.b16 %v215
  %v1057 = vunpack.c.l.b16 %v216
  %v1058 = vunpack.c.h.b16 %v216
  %v1059 = vunpack.c.l.b16 %v217
  %v1060 = vunpack.c.h.b16 %v217
  %v1061 = vunpack.c.l.b16 %v218
  %v1062 = vunpack.c.h.b16 %v218
  %v1063 = vunpack.c.l.b16 %v219
  %v1064 = vunpack.c.h.b16 %v219
  %v1065 = vunpack.c.l.b16 %v220
  %v1066 = vunpack.c.h.b16 %v220
  %v1067 = vunpack.c.l.b16 %v221
  %v1068 = vunpack.c.h.b16 %v221
  %v1069 = vunpack.c.l.b16 %v222
  %v1070 = vunpack.c.h.b16 %v222
  %v1071 = vunpack.c.l.b16 %v223
  %v1072 = vunpack.c.h.b16 %v223
  %v1073 = vunpack.c.l.b16 %v224
  %v1074 = vunpack.c.h.b16 %v224
  %v1075 = vunpack.c.l.b16 %v225
  %v1076 = vunpack.c.h.b16 %v225
  %v1077 = vunpack.c.l.b16 %v226
  %v1078 = vunpack.c.h.b16 %v226
  %v1079 = vunpack.c.l.b16 %v227
  %v1080 = vunpack.c.h.b16 %v227
  %v1081 = vunpack.c.l.b16 %v228
  %v1082 = vunpack.c.h.b16 %v228
  %v1083 = vunpack.c.l.b16 %v229
  %v1084 = vunpack.c.h.b16 %v229
  %v1085 = vunpack.c.l.b16 %v230
  %v1086 = vunpack.c.h.b16 %v230
  %v1087 = vunpack.c.l.b16 %v231
  %v1088 = vunpack.c.h.b16 %v231
  %v1089 = vunpack.c.l.b16 %v232
  %v1090 = vunpack.c.h.b16 %v232
  %v1091 = vunpack.c.l.b16 %v233
  %v1092 = vunpack.c.h.b16 %v233
  %v1093 = vunpack.c.l.b16 %v234
  %v1094 = vunpack.c.h.b16 %v234
  %v1095 = vunpack.c.l.b16 %v235
  %v1096 = vunpack.c.h.b16 %v235
  %v1097 = vunpack.c.l.b16 %v236
  %v1098 = vunpack.c.h.b16 %v236
  %v1099 = vunpack.c.l.b16 %v237
  %v1100 = vunpack.c.h.b16 %v237
  %v1101 = vunpack.c.l.b16 %v238
  %v1102 = vunpack.c.h.b16 %v238
  %v1103 = vunpack.c.l.b16 %v239
  %v1104 = vunpack.c.h.b16 %v239
  %v1105 = vunpack.c.l.b16 %v240
  %v1106 = vunpack.c.h.b16 %v240
  %v1107 = vunpack.c.l.b16 %v241
  %v1108 = vunpack.c.h.b16 %v241
  %v1109 = vunpack.c.l.b16 %v242
  %v1110 = vunpack.c.h.b16 %v242
  %v1111 = vunpack.c.l.b16 %v243
  %v1112 = vunpack.c.h.b16 %v243
  %v1113 = vunpack.c.l.b16 %v244
  %v1114 = vunpack.c.h.b16 %v244
  %v1115 = vunpack.c.l.b16 %v245
  %v1116 = vunpack.c.h.b16 %v245
  %v1117 = vunpack.c.l.b16 %v246
  %v1118 = vunpack.c.h.b16 %v246
  %v1119 = vunpack.c.l.b16 %v247
  %v1120 = vunpack.c.h.b16 %v247
  %v1121 = vunpack.c.l.b16 %v248
  %v1122 = vunpack.c.h.b16 %v248
  %v1123 = vunpack.c.l.b16 %v249
  %v1124 = vunpack.c.h.b16 %v249
  %v1125 = vunpack.c.l.b16 %v250
  %v1126 = vunpack.c.h.b16 %v250
  %v1127 = vunpack.c.l.b16 %v251
  %v1128 = vunpack.c.h.b16 %v251
  %v1129 = vunpack.c.l.b16 %v252
  %v1130 = vunpack.c.h.b16 %v252
  %v1131 = vunpack.c.l.b16 %v253
  %v1132 = vunpack.c.h.b16 %v253
  %v1133 = vunpack.c.l.b16 %v254
  %v1134 = vunpack.c.h.b16 %v254
  %v1135 = vunpack.c.l.b16 %v255
  %v1136 = vunpack.c.h.b16 %v255
  %v1137 = vunpack.c.l.b16 %v256
  %v1138 = vunpack.c.h.b16 %v256
  %v1139 = vunpack.c.l.b16 %v257
  %v1140 = vunpack.c.h.b16 %v257
  %v1141 = vunpack.c.l.b16 %v258
  %v1142 = vunpack.c.h.b16 %v258
  %v1143 = vunpack.c.l.b16 %v259
  %v1144 = vunpack.c.h.b16 %v259
  %v1145 = vunpack.c.l.b16 %v260
  %v1146 = vunpack.c.h.b16 %v260
  %v1147 = vunpack.c.l.b16 %v261
  %v1148 = vunpack.c.h.b16 %v261
  %v1149 = vunpack.c.l.b16 %v262
  %v1150 = vunpack.c.h.b16 %v262
  %v1151 = vunpack.c.l.b16 %v263
  %v1152 = vunpack.c.h.b16 %v263
  %v1153 = vunpack.c.l.b16 %v264
  %v1154 = vunpack.c.h.b16 %v264
  %v1155 = vunpack.c.l.b16 %v265
  %v1156 = vunpack.c.h.b16 %v265
  %v1157 = vunpack.c.l.b16 %v266
  %v1158 = vunpack.c.h.b16 %v266
  %v1159 = vunpack.c.l.b16 %v267
  %v1160 = vunpack.c.h.b16 %v267
  %v1161 = vunpack.c.l.b16 %v268
  %v1162 = vunpack.c.h.b16 %v268
  %v1163 = vunpack.c.l.b16 %v269
  %v1164 = vunpack.c.h.b16 %v269
  %v1165 = vunpack.c.l.b16 %v270
  %v1166 = vunpack.c.h.b16 %v270
  %v1167 = vpack.c.b16 %v789, %v783
  %v1168 = vpack.c.b16 %v790, %v784
  %v1169 = vpack.c.b16 %v791, %v785
  %v1170 = vpack.c.b16 %v792, %v786
  %v1171 = vpack.c.b16 %v793, %v787
  %v1172 = vpack.c.b16 %v794, %v788
  %v1173 = vpack.c.b16 %v801, %v795
  %v1174 = vpack.c.b16 %v802, %v796
  %v1175 = vpack.c.b16 %v803, %v797
  %v1176 = vpack.c.b16 %v804, %v798
  %v1177 = vpack.c.b16 %v805, %v799
  %v1178 = vpack.c.b16 %v806, %v800
  %v1179 = vpack.c.b16 %v813, %v807
  %v1180 = vpack.c.b16 %v814, %v808
  %v1181 = vpack.c.b16 %v815, %v809
  %v1182 = vpack.c.b16 %v816, %v810
  %v1183 = vpack.c.b16 %v817, %v811
  %v1184 = vpack.c.b16 %v818, %v812
  %v1185 = vpack.c.b16 %v825, %v819
  %v1186 = vpack.c.b16 %v826, %v820
  %v1187 = vpack.c.b16 %v827, %v821
  %v1188 = vpack.c.b16 %v828, %v822
  %v1189 = vpack.c.b16 %v829, %v823
  %v1190 = vpack.c.b16 %v830, %v824
  %v1191 = vpack.c.b16 %v837, %v831
  %v1192 = vpack.c.b16 %v838, %v832
  %v1193 = vpack.c.b16 %v839, %v833
  %v1194 = vpack.c.b16 %v840, %v834
  %v1195 = vpack.c.b16 %v841, %v835
  %v1196 = vpack.c.b16 %v842, %v836
  %v1197 = vpack.c.b16 %v849, %v843
  %v1198 = vpack.c.b16 %v850, %v844
  %v1199 = vpack.c.b16 %v851, %v845
  %v1200 = vpack.c.b16 %v852, %v846
  %v1201 = vpack.c.b16 %v853, %v847
  %v1202 = vpack.c.b16 %v854, %v848
  %v1203 = vpack.c.b16 %v861, %v855
  %v1204 = vpack.c.b16 %v862, %v856
  %v1205 = vpack.c.b16 %v863, %v857
  %v1206 = vpack.c.b16 %v864, %v858
  %v1207 = vpack.c.b16 %v865, %v859
  %v1208 = vpack.c.b16 %v866, %v860
  %v1209 = vpack.c.b16 %v873, %v867
  %v1210 = vpack.c.b16 %v874, %v868
  %v1211 = vpack.c.b16 %v875, %v869
  %v1212 = vpack.c.b16 %v876, %v870
  %v1213 = vpack.c.b16 %v877, %v871
  %v1214 = vpack.c.b16 %v878, %v872
  %v1215 = vpack.c.b16 %v885, %v879
  %v1216 = vpack.c.b16 %v886, %v880
  %v1217 = vpack.c.b16 %v887, %v881
  %v1218 = vpack.c.b16 %v888, %v882
  %v1219 = vpack.c.b16 %v889, %v883
  %v1220 = vpack.c.b16 %v890, %v884
  %v1221 = vpack.c.b16 %v897, %v891
  %v1222 = vpack.c.b16 %v898, %v892
  %v1223 = vpack.c.b16 %v899, %v893
  %v1224 = vpack.c.b16 %v900, %v894
  %v1225 = vpack.c.b16 %v901, %v895
  %v1226 = vpack.c.b16 %v902, %v896
  %v1227 = vpack.c.b16 %v909, %v903
  %v1228 = vpack.c.b16 %v910, %v904
  %v1229 = vpack.c.b16 %v911, %v905
  %v1230 = vpack.c.b16 %v912, %v906
  %v1231 = vpack.c.b16 %v913, %v907
  %v1232 = vpack.c.b16 %v914, %v908
  %v1233 = vpack.c.b16 %v921, %v915
  %v1234 = vpack.c.b16 %v922, %v916
  %v1235 = vpack.c.b16 %v923, %v917
  %v1236 = vpack.c.b16 %v924, %v918
  %v1237 = vpack.c.b16 %v925, %v919
  %v1238 = vpack.c.b16 %v926, %v920
  %v1239 = vpack.c.b16 %v933, %v927
  %v1240 = vpack.c.b16 %v934, %v928
  %v1241 = vpack.c.b16 %v935, %v929
  %v1242 = vpack.c.b16 %v936, %v930
  %v1243 = vpack.c.b16 %v937, %v931
  %v1244 = vpack.c.b16 %v938, %v932
  %v1245 = vpack.c.b16 %v945, %v939
  %v1246 = vpack.c.b16 %v946, %v940
  %v1247 = vpack.c.b16 %v947, %v941
  %v1248 = vpack.c.b16 %v948, %v942
  %v1249 = vpack.c.b16 %v949, %v943
  %v1250 = vpack.c.b16 %v950, %v944
  %v1251 = vpack.c.b16 %v957, %v951
  %v1252 = vpack.c.b16 %v958, %v952
  %v1253 = vpack.c.b16 %v959, %v953
  %v1254 = vpack.c.b16 %v960, %v954
  %v1255 = vpack.c.b16 %v961, %v955
  %v1256 = vpack.c.b16 %v962, %v956
  %v1257 = vpack.c.b16 %v969, %v963
  %v1258 = vpack.c.b16 %v970, %v964
  %v1259 = vpack.c.b16 %v971, %v965
  %v1260 = vpack.c.b16 %v972, %v966
  %v1261 = vpack.c.b16 %v973, %v967
  %v1262 = vpack.c.b16 %v974, %v968
  %v1263 = vpack.c.b16 %v981, %v975
  %v1264 = vpack.c.b16 %v982, %v976
  %v1265 = vpack.c.b16 %v983, %v977
  %v1266 = vpack.c.b16 %v984, %v978
  %v1267 = vpack.c.b16 %v985, %v979
  %v1268 = vpack.c.b16 %v986, %v980
  %v1269 = vpack.c.b16 %v993, %v987
  %v1270 = vpack.c.b16 %v994, %v988
  %v1271 = vpack.c.b16 %v995, %v989
  %v1272 = vpack.c.b16 %v996, %v990
  %v1273 = vpack.c.b16 %v997, %v991
  %v1274 = vpack.c.b16 %v998, %v992
  %v1275 = vpack.c.b16 %v1005, %v999
  %v1276 = vpack.c.b16 %v1006, %v1000
  %v1277 = vpack.c.b16 %v1007, %v1001
  %v1278 = vpack.c.b16 %v1008, %v1002
  %v1279 = vpack.c.b16 %v1009, %v1003
  %v1280 = vpack.c.b16 %v1010, %v1004
  %v1281 = vpack.c.b16 %v1017, %v1011
  %v1282 = vpack.c.b16 %v1018, %v1012
  %v1283 = vpack.c.b16 %v1019, %v1013
  %v1284 = vpack.c.b16 %v1020, %v1014
  %v1285 = vpack.c.b16 %v1021, %v1015
  %v1286 = vpack.c.b16 %v1022, %v1016
  %v1287 = vpack.c.b16 %v1029, %v1023
  %v1288 = vpack.c.b16 %v1030, %v1024
  %v1289 = vpack.c.b16 %v1031, %v1025
  %v1290 = vpack.c.b16 %v1032, %v1026
  %v1291 = vpack.c.b16 %v1033, %v1027
  %v1292 = vpack.c.b16 %v1034, %v1028
  %v1293 = vpack.c.b16 %v1041, %v1035
  %v1294 = vpack.c.b16 %v1042, %v1036
  %v1295 = vpack.c.b16 %v1043, %v1037
  %v1296 = vpack.c.b16 %v1044, %v1038
  %v1297 = vpack.c.b16 %v1045, %v1039
  %v1298 = vpack.c.b16 %v1046, %v1040
  %v1299 = vpack.c.b16 %v1053, %v1047
  %v1300 = vpack.c.b16 %v1054, %v1048
  %v1301 = vpack.c.b16 %v1055, %v1049
  %v1302 = vpack.c.b16 %v1056, %v1050
  %v1303 = vpack.c.b16 %v1057, %v1051
  %v1304 = vpack.c.b16 %v1058, %v1052
  %v1305 = vpack.c.b16 %v1065, %v1059
  %v1306 = vpack.c.b16 %v1066, %v1060
  %v1307 = vpack.c.b16 %v1067, %v1061
  %v1308 = vpack.c.b16 %v1068, %v1062
  %v1309 = vpack.c.b16 %v1069, %v1063
  %v1310 = vpack.c.b16 %v1070, %v1064
  %v1311 = vpack.c.b16 %v1077, %v1071
  %v1312 = vpack.c.b16 %v1078, %v1072
  %v1313 = vpack.c.b16 %v1079, %v1073
  %v1314 = vpack.c.b16 %v1080, %v1074
  %v1315 = vpack.c.b16 %v1081, %v1075
  %v1316 = vpack.c.b16 %v1082, %v1076
  %v1317 = vpack.c.b16 %v1089, %v1083
  %v1318 = vpack.c.b16 %v1090, %v1084
  %v1319 = vpack.c.b16 %v1091, %v1085
  %v1320 = vpack.c.b16 %v1092, %v1086
  %v1321 = vpack.c.b16 %v1093, %v1087
  %v1322 = vpack.c.b16 %v1094, %v1088
  %v1323 = vpack.c.b16 %v1101, %v1095
  %v1324 = vpack.c.b16 %v1102, %v1096
  %v1325 = vpack.c.b16 %v1103, %v1097
  %v1326 = vpack.c.b16 %v1104, %v1098
  %v1327 = vpack.c.b16 %v1105, %v1099
  %v1328 = vpack.c.b16 %v1106, %v1100
  %v1329 = vpack.c.b16 %v1113, %v1107
  %v1330 = vpack.c.b16 %v1114, %v1108
  %v1331 = vpack.c.b16 %v1115, %v1109
  %v1332 = vpack.c.b16 %v1116, %v1110
  %v1333 = vpack.c.b16 %v1117, %v1111
  %v1334 = vpack.c.b16 %v1118, %v1112
  %v1335 = vpack.c.b16 %v1125, %v1119
  %v1336 = vpack.c.b16 %v1126, %v1120
  %v1337 = vpack.c.b16 %v1127, %v1121
  %v1338 = vpack.c.b16 %v1128, %v1122
  %v1339 = vpack.c.b16 %v1129, %v1123
  %v1340 = vpack.c.b16 %v1130, %v1124
  %v1341 = vpack.c.b16 %v1137, %v1131
  %v1342 = vpack.c.b16 %v1138, %v1132
  %v1343 = vpack.c.b16 %v1139, %v1133
  %v1344 = vpack.c.b16 %v1140, %v1134
  %v1345 = vpack.c.b16 %v1141, %v1135
  %v1346 = vpack.c.b16 %v1142, %v1136
  %v1347 = vpack.c.b16 %v1149, %v1143
  %v1348 = vpack.c.b16 %v1150, %v1144
  %v1349 = vpack.c.b16 %v1151, %v1145
  %v1350 = vpack.c.b16 %v1152, %v1146
  %v1351 = vpack.c.b16 %v1153, %v1147
  %v1352 = vpack.c.b16 %v1154, %v1148
  %v1353 = vpack.c.b16 %v1161, %v1155
  %v1354 = vpack.c.b16 %v1162, %v1156
  %v1355 = vpack.c.b16 %v1163, %v1157
  %v1356 = vpack.c.b16 %v1164, %v1158
  %v1357 = vpack.c.b16 %v1165, %v1159
  %v1358 = vpack.c.b16 %v1166, %v1160
  %1551 = vmatprep.subr.bf16.mxu0 %v1168
  %1552 = vmatpush1.bf16.msra.mxu0 %v1167
  %1553 = vmatprep.subr.bf16.mxu0 %v1174
  %1554 = vmatpush1.bf16.msra.mxu0 %v1173
  %1555 = vmatprep.subr.bf16.mxu0 %v1180
  %1556 = vmatpush1.bf16.msra.mxu0 %v1179
  %1557 = vmatprep.subr.bf16.mxu0 %v1186
  %1558 = vmatpush1.bf16.msra.mxu0 %v1185
  %1559 = vmatprep.subr.bf16.mxu0 %v1192
  %1560 = vmatpush1.bf16.msra.mxu0 %v1191
  %1561 = vmatprep.subr.bf16.mxu0 %v1198
  %1562 = vmatpush1.bf16.msra.mxu0 %v1197
  %1563 = vmatprep.subr.bf16.mxu0 %v1204
  %1564 = vmatpush1.bf16.msra.mxu0 %v1203
  %1565 = vmatprep.subr.bf16.mxu0 %v1210
  %1566 = vmatpush1.bf16.msra.mxu0 %v1209
  %1567 = vmatprep.subr.bf16.mxu0 %v1216
  %1568 = vmatpush1.bf16.msra.mxu0 %v1215
  %1569 = vmatprep.subr.bf16.mxu0 %v1222
  %1570 = vmatpush1.bf16.msra.mxu0 %v1221
  %1571 = vmatprep.subr.bf16.mxu0 %v1228
  %1572 = vmatpush1.bf16.msra.mxu0 %v1227
  %1573 = vmatprep.subr.bf16.mxu0 %v1234
  %1574 = vmatpush1.bf16.msra.mxu0 %v1233
  %1575 = vmatprep.subr.bf16.mxu0 %v1240
  %1576 = vmatpush1.bf16.msra.mxu0 %v1239
  %1577 = vmatprep.subr.bf16.mxu0 %v1246
  %1578 = vmatpush1.bf16.msra.mxu0 %v1245
  %1579 = vmatprep.subr.bf16.mxu0 %v1252
  %1580 = vmatpush1.bf16.msra.mxu0 %v1251
  %1581 = vmatprep.subr.bf16.mxu0 %v1258
  %1582 = vmatpush1.bf16.msra.mxu0 %v1257
  %1583 = vmatprep.mubr.bf16.mxu0 %v464
  %1584 = vmatmul.mubr.bf16.gmra.mrb[0].mxu0 %v463
  %v1585 = vpop.f32.mrb[0].mxu0
  %v1586 = vadd.f32 0.0, %v1585
  %v1587 = vpop.f32.mrb[0].mxu0
  %v1588 = vadd.f32 0.0, %v1587
  %v1589 = vpop.f32.mrb[0].mxu0
  %v1590 = vadd.f32 0.0, %v1589
  %v1591 = vpop.f32.mrb[0].mxu0
  %v1592 = vadd.f32 0.0, %v1591
  %1593 = vmatprep.mubr.bf16.mxu0 %v468
  %1594 = vmatmul.mubr.bf16.gmra.mrb[0].mxu0 %v467
  %v1595 = vpop.f32.mrb[0].mxu0
  %v1596 = vadd.f32 0.0, %v1595
  %v1597 = vpop.f32.mrb[0].mxu0
  %v1598 = vadd.f32 0.0, %v1597
  %v1599 = vpop.f32.mrb[0].mxu0
  %v1600 = vadd.f32 0.0, %v1599
  %v1601 = vpop.f32.mrb[0].mxu0
  %v1602 = vadd.f32 0.0, %v1601
  %1603 = vmatprep.mubr.bf16.mxu0 %v472
  %1604 = vmatmul.mubr.bf16.gmra.mrb[0].mxu0 %v471
  %v1605 = vpop.f32.mrb[0].mxu0
  %v1606 = vadd.f32 0.0, %v1605
  %v1607 = vpop.f32.mrb[0].mxu0
  %v1608 = vadd.f32 0.0, %v1607
  %v1609 = vpop.f32.mrb[0].mxu0
  %v1610 = vadd.f32 0.0, %v1609
  %v1611 = vpop.f32.mrb[0].mxu0
  %v1612 = vadd.f32 0.0, %v1611
  %1613 = vmatprep.mubr.bf16.mxu0 %v476
  %1614 = vmatmul.mubr.bf16.gmra.mrb[0].mxu0 %v475
  %v1615 = vpop.f32.mrb[0].mxu0
  %v1616 = vadd.f32 0.0, %v1615
  %v1617 = vpop.f32.mrb[0].mxu0
  %v1618 = vadd.f32 0.0, %v1617
  %v1619 = vpop.f32.mrb[0].mxu0
  %v1620 = vadd.f32 0.0, %v1619
  %v1621 = vpop.f32.mrb[0].mxu0
  %v1622 = vadd.f32 0.0, %v1621
  %1623 = vmatprep.mubr.bf16.mxu0 %v480
  %1624 = vmatmul.mubr.bf16.gmra.mrb[0].mxu0 %v479
  %v1625 = vpop.f32.mrb[0].mxu0
  %v1626 = vadd.f32 0.0, %v1625
  %v1627 = vpop.f32.mrb[0].mxu0
  %v1628 = vadd.f32 0.0, %v1627
  %v1629 = vpop.f32.mrb[0].mxu0
  %v1630 = vadd.f32 0.0, %v1629
  %v1631 = vpop.f32.mrb[0].mxu0
  %v1632 = vadd.f32 0.0, %v1631
  %1633 = vmatprep.mubr.bf16.mxu0 %v484
  %1634 = vmatmul.mubr.bf16.gmra.mrb[0].mxu0 %v483
  %v1635 = vpop.f32.mrb[0].mxu0
  %v1636 = vadd.f32 0.0, %v1635
  %v1637 = vpop.f32.mrb[0].mxu0
  %v1638 = vadd.f32 0.0, %v1637
  %v1639 = vpop.f32.mrb[0].mxu0
  %v1640 = vadd.f32 0.0, %v1639
  %v1641 = vpop.f32.mrb[0].mxu0
  %v1642 = vadd.f32 0.0, %v1641
  %1643 = vmatprep.mubr.bf16.mxu0 %v488
  %1644 = vmatmul.mubr.bf16.gmra.mrb[0].mxu0 %v487
  %v1645 = vpop.f32.mrb[0].mxu0
  %v1646 = vadd.f32 0.0, %v1645
  %v1647 = vpop.f32.mrb[0].mxu0
  %v1648 = vadd.f32 0.0, %v1647
  %v1649 = vpop.f32.mrb[0].mxu0
  %v1650 = vadd.f32 0.0, %v1649
  %v1651 = vpop.f32.mrb[0].mxu0
  %v1652 = vadd.f32 0.0, %v1651
  %1653 = vmatprep.mubr.bf16.mxu0 %v492
  %1654 = vmatmul.mubr.bf16.gmra.mrb[0].mxu0 %v491
  %v1655 = vpop.f32.mrb[0].mxu0
  %v1656 = vadd.f32 0.0, %v1655
  %v1657 = vpop.f32.mrb[0].mxu0
  %v1658 = vadd.f32 0.0, %v1657
  %v1659 = vpop.f32.mrb[0].mxu0
  %v1660 = vadd.f32 0.0, %v1659
  %v1661 = vpop.f32.mrb[0].mxu0
  %v1662 = vadd.f32 0.0, %v1661
  %1663 = vmatprep.mubr.bf16.mxu0 %v496
  %1664 = vmatmul.mubr.bf16.gmra.mrb[0].mxu0 %v495
  %v1665 = vpop.f32.mrb[0].mxu0
  %v1666 = vadd.f32 0.0, %v1665
  %v1667 = vpop.f32.mrb[0].mxu0
  %v1668 = vadd.f32 0.0, %v1667
  %v1669 = vpop.f32.mrb[0].mxu0
  %v1670 = vadd.f32 0.0, %v1669
  %v1671 = vpop.f32.mrb[0].mxu0
  %v1672 = vadd.f32 0.0, %v1671
  %1673 = vmatprep.mubr.bf16.mxu0 %v500
  %1674 = vmatmul.mubr.bf16.gmra.mrb[0].mxu0 %v499
  %v1675 = vpop.f32.mrb[0].mxu0
  %v1676 = vadd.f32 0.0, %v1675
  %v1677 = vpop.f32.mrb[0].mxu0
  %v1678 = vadd.f32 0.0, %v1677
  %v1679 = vpop.f32.mrb[0].mxu0
  %v1680 = vadd.f32 0.0, %v1679
  %v1681 = vpop.f32.mrb[0].mxu0
  %v1682 = vadd.f32 0.0, %v1681
  %1683 = vmatprep.mubr.bf16.mxu0 %v504
  %1684 = vmatmul.mubr.bf16.gmra.mrb[0].mxu0 %v503
  %v1685 = vpop.f32.mrb[0].mxu0
  %v1686 = vadd.f32 0.0, %v1685
  %v1687 = vpop.f32.mrb[0].mxu0
  %v1688 = vadd.f32 0.0, %v1687
  %v1689 = vpop.f32.mrb[0].mxu0
  %v1690 = vadd.f32 0.0, %v1689
  %v1691 = vpop.f32.mrb[0].mxu0
  %v1692 = vadd.f32 0.0, %v1691
  %1693 = vmatprep.mubr.bf16.mxu0 %v508
  %1694 = vmatmul.mubr.bf16.gmra.mrb[0].mxu0 %v507
  %v1695 = vpop.f32.mrb[0].mxu0
  %v1696 = vadd.f32 0.0, %v1695
  %v1697 = vpop.f32.mrb[0].mxu0
  %v1698 = vadd.f32 0.0, %v1697
  %v1699 = vpop.f32.mrb[0].mxu0
  %v1700 = vadd.f32 0.0, %v1699
  %v1701 = vpop.f32.mrb[0].mxu0
  %v1702 = vadd.f32 0.0, %v1701
  %1703 = vmatprep.mubr.bf16.mxu0 %v512
  %1704 = vmatmul.mubr.bf16.gmra.mrb[0].mxu0 %v511
  %v1705 = vpop.f32.mrb[0].mxu0
  %v1706 = vadd.f32 0.0, %v1705
  %v1707 = vpop.f32.mrb[0].mxu0
  %v1708 = vadd.f32 0.0, %v1707
  %v1709 = vpop.f32.mrb[0].mxu0
  %v1710 = vadd.f32 0.0, %v1709
  %v1711 = vpop.f32.mrb[0].mxu0
  %v1712 = vadd.f32 0.0, %v1711
  %1713 = vmatprep.mubr.bf16.mxu0 %v516
  %1714 = vmatmul.mubr.bf16.gmra.mrb[0].mxu0 %v515
  %v1715 = vpop.f32.mrb[0].mxu0
  %v1716 = vadd.f32 0.0, %v1715
  %v1717 = vpop.f32.mrb[0].mxu0
  %v1718 = vadd.f32 0.0, %v1717
  %v1719 = vpop.f32.mrb[0].mxu0
  %v1720 = vadd.f32 0.0, %v1719
  %v1721 = vpop.f32.mrb[0].mxu0
  %v1722 = vadd.f32 0.0, %v1721
  %1723 = vmatprep.mubr.bf16.mxu0 %v520
  %1724 = vmatmul.mubr.bf16.gmra.mrb[0].mxu0 %v519
  %v1725 = vpop.f32.mrb[0].mxu0
  %v1726 = vadd.f32 0.0, %v1725
  %v1727 = vpop.f32.mrb[0].mxu0
  %v1728 = vadd.f32 0.0, %v1727
  %v1729 = vpop.f32.mrb[0].mxu0
  %v1730 = vadd.f32 0.0, %v1729
  %v1731 = vpop.f32.mrb[0].mxu0
  %v1732 = vadd.f32 0.0, %v1731
  %1733 = vmatprep.mubr.bf16.mxu0 %v524
  %1734 = vmatmul.mubr.bf16.gmra.mrb[0].mxu0 %v523
  %v1735 = vpop.f32.mrb[0].mxu0
  %v1736 = vadd.f32 0.0, %v1735
  %v1737 = vpop.f32.mrb[0].mxu0
  %v1738 = vadd.f32 0.0, %v1737
  %v1739 = vpop.f32.mrb[0].mxu0
  %v1740 = vadd.f32 0.0, %v1739
  %v1741 = vpop.f32.mrb[0].mxu0
  %v1742 = vadd.f32 0.0, %v1741
  %1743 = vdwg.mxu0
  %1744 = vmatprep.subr.bf16.mxu0 %v1264
  %1745 = vmatpush1.bf16.msra.mxu0 %v1263
  %1746 = vmatprep.subr.bf16.mxu0 %v1270
  %1747 = vmatpush1.bf16.msra.mxu0 %v1269
  %1748 = vmatprep.subr.bf16.mxu0 %v1276
  %1749 = vmatpush1.bf16.msra.mxu0 %v1275
  %1750 = vmatprep.subr.bf16.mxu0 %v1282
  %1751 = vmatpush1.bf16.msra.mxu0 %v1281
  %1752 = vmatprep.subr.bf16.mxu0 %v1288
  %1753 = vmatpush1.bf16.msra.mxu0 %v1287
  %1754 = vmatprep.subr.bf16.mxu0 %v1294
  %1755 = vmatpush1.bf16.msra.mxu0 %v1293
  %1756 = vmatprep.subr.bf16.mxu0 %v1300
  %1757 = vmatpush1.bf16.msra.mxu0 %v1299
  %1758 = vmatprep.subr.bf16.mxu0 %v1306
  %1759 = vmatpush1.bf16.msra.mxu0 %v1305
  %1760 = vmatprep.subr.bf16.mxu0 %v1312
  %1761 = vmatpush1.bf16.msra.mxu0 %v1311
  %1762 = vmatprep.subr.bf16.mxu0 %v1318
  %1763 = vmatpush1.bf16.msra.mxu0 %v1317
  %1764 = vmatprep.subr.bf16.mxu0 %v1324
  %1765 = vmatpush1.bf16.msra.mxu0 %v1323
  %1766 = vmatprep.subr.bf16.mxu0 %v1330
  %1767 = vmatpush1.bf16.msra.mxu0 %v1329
  %1768 = vmatprep.subr.bf16.mxu0 %v1336
  %1769 = vmatpush1.bf16.msra.mxu0 %v1335
  %1770 = vmatprep.subr.bf16.mxu0 %v1342
  %1771 = vmatpush1.bf16.msra.mxu0 %v1341
  %1772 = vmatprep.subr.bf16.mxu0 %v1348
  %1773 = vmatpush1.bf16.msra.mxu0 %v1347
  %1774 = vmatprep.subr.bf16.mxu0 %v1354
  %1775 = vmatpush1.bf16.msra.mxu0 %v1353
  %1776 = vmatprep.mubr.bf16.mxu0 %v466
  %1777 = vmatmul.mubr.bf16.gmra.mrb[0].mxu0 %v465
  %v1778 = vpop.f32.mrb[0].mxu0
  %v1779 = vadd.f32 %v1586, %v1778
  %v1780 = vpop.f32.mrb[0].mxu0
  %v1781 = vadd.f32 %v1588, %v1780
  %v1782 = vpop.f32.mrb[0].mxu0
  %v1783 = vadd.f32 %v1590, %v1782
  %v1784 = vpop.f32.mrb[0].mxu0
  %v1785 = vadd.f32 %v1592, %v1784
  %1786 = vmatprep.mubr.bf16.mxu0 %v470
  %1787 = vmatmul.mubr.bf16.gmra.mrb[0].mxu0 %v469
  %v1788 = vpop.f32.mrb[0].mxu0
  %v1789 = vadd.f32 %v1596, %v1788
  %v1790 = vpop.f32.mrb[0].mxu0
  %v1791 = vadd.f32 %v1598, %v1790
  %v1792 = vpop.f32.mrb[0].mxu0
  %v1793 = vadd.f32 %v1600, %v1792
  %v1794 = vpop.f32.mrb[0].mxu0
  %v1795 = vadd.f32 %v1602, %v1794
  %1796 = vmatprep.mubr.bf16.mxu0 %v474
  %1797 = vmatmul.mubr.bf16.gmra.mrb[0].mxu0 %v473
  %v1798 = vpop.f32.mrb[0].mxu0
  %v1799 = vadd.f32 %v1606, %v1798
  %v1800 = vpop.f32.mrb[0].mxu0
  %v1801 = vadd.f32 %v1608, %v1800
  %v1802 = vpop.f32.mrb[0].mxu0
  %v1803 = vadd.f32 %v1610, %v1802
  %v1804 = vpop.f32.mrb[0].mxu0
  %v1805 = vadd.f32 %v1612, %v1804
  %1806 = vmatprep.mubr.bf16.mxu0 %v478
  %1807 = vmatmul.mubr.bf16.gmra.mrb[0].mxu0 %v477
  %v1808 = vpop.f32.mrb[0].mxu0
  %v1809 = vadd.f32 %v1616, %v1808
  %v1810 = vpop.f32.mrb[0].mxu0
  %v1811 = vadd.f32 %v1618, %v1810
  %v1812 = vpop.f32.mrb[0].mxu0
  %v1813 = vadd.f32 %v1620, %v1812
  %v1814 = vpop.f32.mrb[0].mxu0
  %v1815 = vadd.f32 %v1622, %v1814
  %1816 = vmatprep.mubr.bf16.mxu0 %v482
  %1817 = vmatmul.mubr.bf16.gmra.mrb[0].mxu0 %v481
  %v1818 = vpop.f32.mrb[0].mxu0
  %v1819 = vadd.f32 %v1626, %v1818
  %v1820 = vpop.f32.mrb[0].mxu0
  %v1821 = vadd.f32 %v1628, %v1820
  %v1822 = vpop.f32.mrb[0].mxu0
  %v1823 = vadd.f32 %v1630, %v1822
  %v1824 = vpop.f32.mrb[0].mxu0
  %v1825 = vadd.f32 %v1632, %v1824
  %1826 = vmatprep.mubr.bf16.mxu0 %v486
  %1827 = vmatmul.mubr.bf16.gmra.mrb[0].mxu0 %v485
  %v1828 = vpop.f32.mrb[0].mxu0
  %v1829 = vadd.f32 %v1636, %v1828
  %v1830 = vpop.f32.mrb[0].mxu0
  %v1831 = vadd.f32 %v1638, %v1830
  %v1832 = vpop.f32.mrb[0].mxu0
  %v1833 = vadd.f32 %v1640, %v1832
  %v1834 = vpop.f32.mrb[0].mxu0
  %v1835 = vadd.f32 %v1642, %v1834
  %1836 = vmatprep.mubr.bf16.mxu0 %v490
  %1837 = vmatmul.mubr.bf16.gmra.mrb[0].mxu0 %v489
  %v1838 = vpop.f32.mrb[0].mxu0
  %v1839 = vadd.f32 %v1646, %v1838
  %v1840 = vpop.f32.mrb[0].mxu0
  %v1841 = vadd.f32 %v1648, %v1840
  %v1842 = vpop.f32.mrb[0].mxu0
  %v1843 = vadd.f32 %v1650, %v1842
  %v1844 = vpop.f32.mrb[0].mxu0
  %v1845 = vadd.f32 %v1652, %v1844
  %1846 = vmatprep.mubr.bf16.mxu0 %v494
  %1847 = vmatmul.mubr.bf16.gmra.mrb[0].mxu0 %v493
  %v1848 = vpop.f32.mrb[0].mxu0
  %v1849 = vadd.f32 %v1656, %v1848
  %v1850 = vpop.f32.mrb[0].mxu0
  %v1851 = vadd.f32 %v1658, %v1850
  %v1852 = vpop.f32.mrb[0].mxu0
  %v1853 = vadd.f32 %v1660, %v1852
  %v1854 = vpop.f32.mrb[0].mxu0
  %v1855 = vadd.f32 %v1662, %v1854
  %1856 = vmatprep.mubr.bf16.mxu0 %v498
  %1857 = vmatmul.mubr.bf16.gmra.mrb[0].mxu0 %v497
  %v1858 = vpop.f32.mrb[0].mxu0
  %v1859 = vadd.f32 %v1666, %v1858
  %v1860 = vpop.f32.mrb[0].mxu0
  %v1861 = vadd.f32 %v1668, %v1860
  %v1862 = vpop.f32.mrb[0].mxu0
  %v1863 = vadd.f32 %v1670, %v1862
  %v1864 = vpop.f32.mrb[0].mxu0
  %v1865 = vadd.f32 %v1672, %v1864
  %1866 = vmatprep.mubr.bf16.mxu0 %v502
  %1867 = vmatmul.mubr.bf16.gmra.mrb[0].mxu0 %v501
  %v1868 = vpop.f32.mrb[0].mxu0
  %v1869 = vadd.f32 %v1676, %v1868
  %v1870 = vpop.f32.mrb[0].mxu0
  %v1871 = vadd.f32 %v1678, %v1870
  %v1872 = vpop.f32.mrb[0].mxu0
  %v1873 = vadd.f32 %v1680, %v1872
  %v1874 = vpop.f32.mrb[0].mxu0
  %v1875 = vadd.f32 %v1682, %v1874
  %1876 = vmatprep.mubr.bf16.mxu0 %v506
  %1877 = vmatmul.mubr.bf16.gmra.mrb[0].mxu0 %v505
  %v1878 = vpop.f32.mrb[0].mxu0
  %v1879 = vadd.f32 %v1686, %v1878
  %v1880 = vpop.f32.mrb[0].mxu0
  %v1881 = vadd.f32 %v1688, %v1880
  %v1882 = vpop.f32.mrb[0].mxu0
  %v1883 = vadd.f32 %v1690, %v1882
  %v1884 = vpop.f32.mrb[0].mxu0
  %v1885 = vadd.f32 %v1692, %v1884
  %1886 = vmatprep.mubr.bf16.mxu0 %v510
  %1887 = vmatmul.mubr.bf16.gmra.mrb[0].mxu0 %v509
  %v1888 = vpop.f32.mrb[0].mxu0
  %v1889 = vadd.f32 %v1696, %v1888
  %v1890 = vpop.f32.mrb[0].mxu0
  %v1891 = vadd.f32 %v1698, %v1890
  %v1892 = vpop.f32.mrb[0].mxu0
  %v1893 = vadd.f32 %v1700, %v1892
  %v1894 = vpop.f32.mrb[0].mxu0
  %v1895 = vadd.f32 %v1702, %v1894
  %1896 = vmatprep.mubr.bf16.mxu0 %v514
  %1897 = vmatmul.mubr.bf16.gmra.mrb[0].mxu0 %v513
  %v1898 = vpop.f32.mrb[0].mxu0
  %v1899 = vadd.f32 %v1706, %v1898
  %v1900 = vpop.f32.mrb[0].mxu0
  %v1901 = vadd.f32 %v1708, %v1900
  %v1902 = vpop.f32.mrb[0].mxu0
  %v1903 = vadd.f32 %v1710, %v1902
  %v1904 = vpop.f32.mrb[0].mxu0
  %v1905 = vadd.f32 %v1712, %v1904
  %1906 = vmatprep.mubr.bf16.mxu0 %v518
  %1907 = vmatmul.mubr.bf16.gmra.mrb[0].mxu0 %v517
  %v1908 = vpop.f32.mrb[0].mxu0
  %v1909 = vadd.f32 %v1716, %v1908
  %v1910 = vpop.f32.mrb[0].mxu0
  %v1911 = vadd.f32 %v1718, %v1910
  %v1912 = vpop.f32.mrb[0].mxu0
  %v1913 = vadd.f32 %v1720, %v1912
  %v1914 = vpop.f32.mrb[0].mxu0
  %v1915 = vadd.f32 %v1722, %v1914
  %1916 = vmatprep.mubr.bf16.mxu0 %v522
  %1917 = vmatmul.mubr.bf16.gmra.mrb[0].mxu0 %v521
  %v1918 = vpop.f32.mrb[0].mxu0
  %v1919 = vadd.f32 %v1726, %v1918
  %v1920 = vpop.f32.mrb[0].mxu0
  %v1921 = vadd.f32 %v1728, %v1920
  %v1922 = vpop.f32.mrb[0].mxu0
  %v1923 = vadd.f32 %v1730, %v1922
  %v1924 = vpop.f32.mrb[0].mxu0
  %v1925 = vadd.f32 %v1732, %v1924
  %1926 = vmatprep.mubr.bf16.mxu0 %v526
  %1927 = vmatmul.mubr.bf16.gmra.mrb[0].mxu0 %v525
  %v1928 = vpop.f32.mrb[0].mxu0
  %v1929 = vadd.f32 %v1736, %v1928
  %v1930 = vpop.f32.mrb[0].mxu0
  %v1931 = vadd.f32 %v1738, %v1930
  %v1932 = vpop.f32.mrb[0].mxu0
  %v1933 = vadd.f32 %v1740, %v1932
  %v1934 = vpop.f32.mrb[0].mxu0
  %v1935 = vadd.f32 %v1742, %v1934
  %1936 = vdwg.mxu0
  %1937 = vmatprep.subr.bf16.mxu0 %v1170
  %1938 = vmatpush1.bf16.msra.mxu0 %v1169
  %1939 = vmatprep.subr.bf16.mxu0 %v1176
  %1940 = vmatpush1.bf16.msra.mxu0 %v1175
  %1941 = vmatprep.subr.bf16.mxu0 %v1182
  %1942 = vmatpush1.bf16.msra.mxu0 %v1181
  %1943 = vmatprep.subr.bf16.mxu0 %v1188
  %1944 = vmatpush1.bf16.msra.mxu0 %v1187
  %1945 = vmatprep.subr.bf16.mxu0 %v1194
  %1946 = vmatpush1.bf16.msra.mxu0 %v1193
  %1947 = vmatprep.subr.bf16.mxu0 %v1200
  %1948 = vmatpush1.bf16.msra.mxu0 %v1199
  %1949 = vmatprep.subr.bf16.mxu0 %v1206
  %1950 = vmatpush1.bf16.msra.mxu0 %v1205
  %1951 = vmatprep.subr.bf16.mxu0 %v1212
  %1952 = vmatpush1.bf16.msra.mxu0 %v1211
  %1953 = vmatprep.subr.bf16.mxu0 %v1218
  %1954 = vmatpush1.bf16.msra.mxu0 %v1217
  %1955 = vmatprep.subr.bf16.mxu0 %v1224
  %1956 = vmatpush1.bf16.msra.mxu0 %v1223
  %1957 = vmatprep.subr.bf16.mxu0 %v1230
  %1958 = vmatpush1.bf16.msra.mxu0 %v1229
  %1959 = vmatprep.subr.bf16.mxu0 %v1236
  %1960 = vmatpush1.bf16.msra.mxu0 %v1235
  %1961 = vmatprep.subr.bf16.mxu0 %v1242
  %1962 = vmatpush1.bf16.msra.mxu0 %v1241
  %1963 = vmatprep.subr.bf16.mxu0 %v1248
  %1964 = vmatpush1.bf16.msra.mxu0 %v1247
  %1965 = vmatprep.subr.bf16.mxu0 %v1254
  %1966 = vmatpush1.bf16.msra.mxu0 %v1253
  %1967 = vmatprep.subr.bf16.mxu0 %v1260
  %1968 = vmatpush1.bf16.msra.mxu0 %v1259
  %1969 = vmatprep.mubr.bf16.mxu0 %v464
  %1970 = vmatmul.mubr.bf16.gmra.mrb[0].mxu0 %v463
  %v1971 = vpop.f32.mrb[0].mxu0
  %v1972 = vadd.f32 0.0, %v1971
  %v1973 = vpop.f32.mrb[0].mxu0
  %v1974 = vadd.f32 0.0, %v1973
  %v1975 = vpop.f32.mrb[0].mxu0
  %v1976 = vadd.f32 0.0, %v1975
  %v1977 = vpop.f32.mrb[0].mxu0
  %v1978 = vadd.f32 0.0, %v1977
  %1979 = vmatprep.mubr.bf16.mxu0 %v468
  %1980 = vmatmul.mubr.bf16.gmra.mrb[0].mxu0 %v467
  %v1981 = vpop.f32.mrb[0].mxu0
  %v1982 = vadd.f32 0.0, %v1981
  %v1983 = vpop.f32.mrb[0].mxu0
  %v1984 = vadd.f32 0.0, %v1983
  %v1985 = vpop.f32.mrb[0].mxu0
  %v1986 = vadd.f32 0.0, %v1985
  %v1987 = vpop.f32.mrb[0].mxu0
  %v1988 = vadd.f32 0.0, %v1987
  %1989 = vmatprep.mubr.bf16.mxu0 %v472
  %1990 = vmatmul.mubr.bf16.gmra.mrb[0].mxu0 %v471
  %v1991 = vpop.f32.mrb[0].mxu0
  %v1992 = vadd.f32 0.0, %v1991
  %v1993 = vpop.f32.mrb[0].mxu0
  %v1994 = vadd.f32 0.0, %v1993
  %v1995 = vpop.f32.mrb[0].mxu0
  %v1996 = vadd.f32 0.0, %v1995
  %v1997 = vpop.f32.mrb[0].mxu0
  %v1998 = vadd.f32 0.0, %v1997
  %1999 = vmatprep.mubr.bf16.mxu0 %v476
  %2000 = vmatmul.mubr.bf16.gmra.mrb[0].mxu0 %v475
  %v2001 = vpop.f32.mrb[0].mxu0
  %v2002 = vadd.f32 0.0, %v2001
  %v2003 = vpop.f32.mrb[0].mxu0
  %v2004 = vadd.f32 0.0, %v2003
  %v2005 = vpop.f32.mrb[0].mxu0
  %v2006 = vadd.f32 0.0, %v2005
  %v2007 = vpop.f32.mrb[0].mxu0
  %v2008 = vadd.f32 0.0, %v2007
  %2009 = vmatprep.mubr.bf16.mxu0 %v480
  %2010 = vmatmul.mubr.bf16.gmra.mrb[0].mxu0 %v479
  %v2011 = vpop.f32.mrb[0].mxu0
  %v2012 = vadd.f32 0.0, %v2011
  %v2013 = vpop.f32.mrb[0].mxu0
  %v2014 = vadd.f32 0.0, %v2013
  %v2015 = vpop.f32.mrb[0].mxu0
  %v2016 = vadd.f32 0.0, %v2015
  %v2017 = vpop.f32.mrb[0].mxu0
  %v2018 = vadd.f32 0.0, %v2017
  %2019 = vmatprep.mubr.bf16.mxu0 %v484
  %2020 = vmatmul.mubr.bf16.gmra.mrb[0].mxu0 %v483
  %v2021 = vpop.f32.mrb[0].mxu0
  %v2022 = vadd.f32 0.0, %v2021
  %v2023 = vpop.f32.mrb[0].mxu0
  %v2024 = vadd.f32 0.0, %v2023
  %v2025 = vpop.f32.mrb[0].mxu0
  %v2026 = vadd.f32 0.0, %v2025
  %v2027 = vpop.f32.mrb[0].mxu0
  %v2028 = vadd.f32 0.0, %v2027
  %2029 = vmatprep.mubr.bf16.mxu0 %v488
  %2030 = vmatmul.mubr.bf16.gmra.mrb[0].mxu0 %v487
  %v2031 = vpop.f32.mrb[0].mxu0
  %v2032 = vadd.f32 0.0, %v2031
  %v2033 = vpop.f32.mrb[0].mxu0
  %v2034 = vadd.f32 0.0, %v2033
  %v2035 = vpop.f32.mrb[0].mxu0
  %v2036 = vadd.f32 0.0, %v2035
  %v2037 = vpop.f32.mrb[0].mxu0
  %v2038 = vadd.f32 0.0, %v2037
  %2039 = vmatprep.mubr.bf16.mxu0 %v492
  %2040 = vmatmul.mubr.bf16.gmra.mrb[0].mxu0 %v491
  %v2041 = vpop.f32.mrb[0].mxu0
  %v2042 = vadd.f32 0.0, %v2041
  %v2043 = vpop.f32.mrb[0].mxu0
  %v2044 = vadd.f32 0.0, %v2043
  %v2045 = vpop.f32.mrb[0].mxu0
  %v2046 = vadd.f32 0.0, %v2045
  %v2047 = vpop.f32.mrb[0].mxu0
  %v2048 = vadd.f32 0.0, %v2047
  %2049 = vmatprep.mubr.bf16.mxu0 %v496
  %2050 = vmatmul.mubr.bf16.gmra.mrb[0].mxu0 %v495
  %v2051 = vpop.f32.mrb[0].mxu0
  %v2052 = vadd.f32 0.0, %v2051
  %v2053 = vpop.f32.mrb[0].mxu0
  %v2054 = vadd.f32 0.0, %v2053
  %v2055 = vpop.f32.mrb[0].mxu0
  %v2056 = vadd.f32 0.0, %v2055
  %v2057 = vpop.f32.mrb[0].mxu0
  %v2058 = vadd.f32 0.0, %v2057
  %2059 = vmatprep.mubr.bf16.mxu0 %v500
  %2060 = vmatmul.mubr.bf16.gmra.mrb[0].mxu0 %v499
  %v2061 = vpop.f32.mrb[0].mxu0
  %v2062 = vadd.f32 0.0, %v2061
  %v2063 = vpop.f32.mrb[0].mxu0
  %v2064 = vadd.f32 0.0, %v2063
  %v2065 = vpop.f32.mrb[0].mxu0
  %v2066 = vadd.f32 0.0, %v2065
  %v2067 = vpop.f32.mrb[0].mxu0
  %v2068 = vadd.f32 0.0, %v2067
  %2069 = vmatprep.mubr.bf16.mxu0 %v504
  %2070 = vmatmul.mubr.bf16.gmra.mrb[0].mxu0 %v503
  %v2071 = vpop.f32.mrb[0].mxu0
  %v2072 = vadd.f32 0.0, %v2071
  %v2073 = vpop.f32.mrb[0].mxu0
  %v2074 = vadd.f32 0.0, %v2073
  %v2075 = vpop.f32.mrb[0].mxu0
  %v2076 = vadd.f32 0.0, %v2075
  %v2077 = vpop.f32.mrb[0].mxu0
  %v2078 = vadd.f32 0.0, %v2077
  %2079 = vmatprep.mubr.bf16.mxu0 %v508
  %2080 = vmatmul.mubr.bf16.gmra.mrb[0].mxu0 %v507
  %v2081 = vpop.f32.mrb[0].mxu0
  %v2082 = vadd.f32 0.0, %v2081
  %v2083 = vpop.f32.mrb[0].mxu0
  %v2084 = vadd.f32 0.0, %v2083
  %v2085 = vpop.f32.mrb[0].mxu0
  %v2086 = vadd.f32 0.0, %v2085
  %v2087 = vpop.f32.mrb[0].mxu0
  %v2088 = vadd.f32 0.0, %v2087
  %2089 = vmatprep.mubr.bf16.mxu0 %v512
  %2090 = vmatmul.mubr.bf16.gmra.mrb[0].mxu0 %v511
  %v2091 = vpop.f32.mrb[0].mxu0
  %v2092 = vadd.f32 0.0, %v2091
  %v2093 = vpop.f32.mrb[0].mxu0
  %v2094 = vadd.f32 0.0, %v2093
  %v2095 = vpop.f32.mrb[0].mxu0
  %v2096 = vadd.f32 0.0, %v2095
  %v2097 = vpop.f32.mrb[0].mxu0
  %v2098 = vadd.f32 0.0, %v2097
  %2099 = vmatprep.mubr.bf16.mxu0 %v516
  %2100 = vmatmul.mubr.bf16.gmra.mrb[0].mxu0 %v515
  %v2101 = vpop.f32.mrb[0].mxu0
  %v2102 = vadd.f32 0.0, %v2101
  %v2103 = vpop.f32.mrb[0].mxu0
  %v2104 = vadd.f32 0.0, %v2103
  %v2105 = vpop.f32.mrb[0].mxu0
  %v2106 = vadd.f32 0.0, %v2105
  %v2107 = vpop.f32.mrb[0].mxu0
  %v2108 = vadd.f32 0.0, %v2107
  %2109 = vmatprep.mubr.bf16.mxu0 %v520
  %2110 = vmatmul.mubr.bf16.gmra.mrb[0].mxu0 %v519
  %v2111 = vpop.f32.mrb[0].mxu0
  %v2112 = vadd.f32 0.0, %v2111
  %v2113 = vpop.f32.mrb[0].mxu0
  %v2114 = vadd.f32 0.0, %v2113
  %v2115 = vpop.f32.mrb[0].mxu0
  %v2116 = vadd.f32 0.0, %v2115
  %v2117 = vpop.f32.mrb[0].mxu0
  %v2118 = vadd.f32 0.0, %v2117
  %2119 = vmatprep.mubr.bf16.mxu0 %v524
  %2120 = vmatmul.mubr.bf16.gmra.mrb[0].mxu0 %v523
  %v2121 = vpop.f32.mrb[0].mxu0
  %v2122 = vadd.f32 0.0, %v2121
  %v2123 = vpop.f32.mrb[0].mxu0
  %v2124 = vadd.f32 0.0, %v2123
  %v2125 = vpop.f32.mrb[0].mxu0
  %v2126 = vadd.f32 0.0, %v2125
  %v2127 = vpop.f32.mrb[0].mxu0
  %v2128 = vadd.f32 0.0, %v2127
  %2129 = vdwg.mxu0
  %2130 = vmatprep.subr.bf16.mxu0 %v1266
  %2131 = vmatpush1.bf16.msra.mxu0 %v1265
  %2132 = vmatprep.subr.bf16.mxu0 %v1272
  %2133 = vmatpush1.bf16.msra.mxu0 %v1271
  %2134 = vmatprep.subr.bf16.mxu0 %v1278
  %2135 = vmatpush1.bf16.msra.mxu0 %v1277
  %2136 = vmatprep.subr.bf16.mxu0 %v1284
  %2137 = vmatpush1.bf16.msra.mxu0 %v1283
  %2138 = vmatprep.subr.bf16.mxu0 %v1290
  %2139 = vmatpush1.bf16.msra.mxu0 %v1289
  %2140 = vmatprep.subr.bf16.mxu0 %v1296
  %2141 = vmatpush1.bf16.msra.mxu0 %v1295
  %2142 = vmatprep.subr.bf16.mxu0 %v1302
  %2143 = vmatpush1.bf16.msra.mxu0 %v1301
  %2144 = vmatprep.subr.bf16.mxu0 %v1308
  %2145 = vmatpush1.bf16.msra.mxu0 %v1307
  %2146 = vmatprep.subr.bf16.mxu0 %v1314
  %2147 = vmatpush1.bf16.msra.mxu0 %v1313
  %2148 = vmatprep.subr.bf16.mxu0 %v1320
  %2149 = vmatpush1.bf16.msra.mxu0 %v1319
  %2150 = vmatprep.subr.bf16.mxu0 %v1326
  %2151 = vmatpush1.bf16.msra.mxu0 %v1325
  %2152 = vmatprep.subr.bf16.mxu0 %v1332
  %2153 = vmatpush1.bf16.msra.mxu0 %v1331
  %2154 = vmatprep.subr.bf16.mxu0 %v1338
  %2155 = vmatpush1.bf16.msra.mxu0 %v1337
  %2156 = vmatprep.subr.bf16.mxu0 %v1344
  %2157 = vmatpush1.bf16.msra.mxu0 %v1343
  %2158 = vmatprep.subr.bf16.mxu0 %v1350
  %2159 = vmatpush1.bf16.msra.mxu0 %v1349
  %2160 = vmatprep.subr.bf16.mxu0 %v1356
  %2161 = vmatpush1.bf16.msra.mxu0 %v1355
  %2162 = vmatprep.mubr.bf16.mxu0 %v466
  %2163 = vmatmul.mubr.bf16.gmra.mrb[0].mxu0 %v465
  %v2164 = vpop.f32.mrb[0].mxu0
  %v2165 = vadd.f32 %v1972, %v2164
  %v2166 = vpop.f32.mrb[0].mxu0
  %v2167 = vadd.f32 %v1974, %v2166
  %v2168 = vpop.f32.mrb[0].mxu0
  %v2169 = vadd.f32 %v1976, %v2168
  %v2170 = vpop.f32.mrb[0].mxu0
  %v2171 = vadd.f32 %v1978, %v2170
  %2172 = vmatprep.mubr.bf16.mxu0 %v470
  %2173 = vmatmul.mubr.bf16.gmra.mrb[0].mxu0 %v469
  %v2174 = vpop.f32.mrb[0].mxu0
  %v2175 = vadd.f32 %v1982, %v2174
  %v2176 = vpop.f32.mrb[0].mxu0
  %v2177 = vadd.f32 %v1984, %v2176
  %v2178 = vpop.f32.mrb[0].mxu0
  %v2179 = vadd.f32 %v1986, %v2178
  %v2180 = vpop.f32.mrb[0].mxu0
  %v2181 = vadd.f32 %v1988, %v2180
  %2182 = vmatprep.mubr.bf16.mxu0 %v474
  %2183 = vmatmul.mubr.bf16.gmra.mrb[0].mxu0 %v473
  %v2184 = vpop.f32.mrb[0].mxu0
  %v2185 = vadd.f32 %v1992, %v2184
  %v2186 = vpop.f32.mrb[0].mxu0
  %v2187 = vadd.f32 %v1994, %v2186
  %v2188 = vpop.f32.mrb[0].mxu0
  %v2189 = vadd.f32 %v1996, %v2188
  %v2190 = vpop.f32.mrb[0].mxu0
  %v2191 = vadd.f32 %v1998, %v2190
  %2192 = vmatprep.mubr.bf16.mxu0 %v478
  %2193 = vmatmul.mubr.bf16.gmra.mrb[0].mxu0 %v477
  %v2194 = vpop.f32.mrb[0].mxu0
  %v2195 = vadd.f32 %v2002, %v2194
  %v2196 = vpop.f32.mrb[0].mxu0
  %v2197 = vadd.f32 %v2004, %v2196
  %v2198 = vpop.f32.mrb[0].mxu0
  %v2199 = vadd.f32 %v2006, %v2198
  %v2200 = vpop.f32.mrb[0].mxu0
  %v2201 = vadd.f32 %v2008, %v2200
  %2202 = vmatprep.mubr.bf16.mxu0 %v482
  %2203 = vmatmul.mubr.bf16.gmra.mrb[0].mxu0 %v481
  %v2204 = vpop.f32.mrb[0].mxu0
  %v2205 = vadd.f32 %v2012, %v2204
  %v2206 = vpop.f32.mrb[0].mxu0
  %v2207 = vadd.f32 %v2014, %v2206
  %v2208 = vpop.f32.mrb[0].mxu0
  %v2209 = vadd.f32 %v2016, %v2208
  %v2210 = vpop.f32.mrb[0].mxu0
  %v2211 = vadd.f32 %v2018, %v2210
  %2212 = vmatprep.mubr.bf16.mxu0 %v486
  %2213 = vmatmul.mubr.bf16.gmra.mrb[0].mxu0 %v485
  %v2214 = vpop.f32.mrb[0].mxu0
  %v2215 = vadd.f32 %v2022, %v2214
  %v2216 = vpop.f32.mrb[0].mxu0
  %v2217 = vadd.f32 %v2024, %v2216
  %v2218 = vpop.f32.mrb[0].mxu0
  %v2219 = vadd.f32 %v2026, %v2218
  %v2220 = vpop.f32.mrb[0].mxu0
  %v2221 = vadd.f32 %v2028, %v2220
  %2222 = vmatprep.mubr.bf16.mxu0 %v490
  %2223 = vmatmul.mubr.bf16.gmra.mrb[0].mxu0 %v489
  %v2224 = vpop.f32.mrb[0].mxu0
  %v2225 = vadd.f32 %v2032, %v2224
  %v2226 = vpop.f32.mrb[0].mxu0
  %v2227 = vadd.f32 %v2034, %v2226
  %v2228 = vpop.f32.mrb[0].mxu0
  %v2229 = vadd.f32 %v2036, %v2228
  %v2230 = vpop.f32.mrb[0].mxu0
  %v2231 = vadd.f32 %v2038, %v2230
  %2232 = vmatprep.mubr.bf16.mxu0 %v494
  %2233 = vmatmul.mubr.bf16.gmra.mrb[0].mxu0 %v493
  %v2234 = vpop.f32.mrb[0].mxu0
  %v2235 = vadd.f32 %v2042, %v2234
  %v2236 = vpop.f32.mrb[0].mxu0
  %v2237 = vadd.f32 %v2044, %v2236
  %v2238 = vpop.f32.mrb[0].mxu0
  %v2239 = vadd.f32 %v2046, %v2238
  %v2240 = vpop.f32.mrb[0].mxu0
  %v2241 = vadd.f32 %v2048, %v2240
  %2242 = vmatprep.mubr.bf16.mxu0 %v498
  %2243 = vmatmul.mubr.bf16.gmra.mrb[0].mxu0 %v497
  %v2244 = vpop.f32.mrb[0].mxu0
  %v2245 = vadd.f32 %v2052, %v2244
  %v2246 = vpop.f32.mrb[0].mxu0
  %v2247 = vadd.f32 %v2054, %v2246
  %v2248 = vpop.f32.mrb[0].mxu0
  %v2249 = vadd.f32 %v2056, %v2248
  %v2250 = vpop.f32.mrb[0].mxu0
  %v2251 = vadd.f32 %v2058, %v2250
  %2252 = vmatprep.mubr.bf16.mxu0 %v502
  %2253 = vmatmul.mubr.bf16.gmra.mrb[0].mxu0 %v501
  %v2254 = vpop.f32.mrb[0].mxu0
  %v2255 = vadd.f32 %v2062, %v2254
  %v2256 = vpop.f32.mrb[0].mxu0
  %v2257 = vadd.f32 %v2064, %v2256
  %v2258 = vpop.f32.mrb[0].mxu0
  %v2259 = vadd.f32 %v2066, %v2258
  %v2260 = vpop.f32.mrb[0].mxu0
  %v2261 = vadd.f32 %v2068, %v2260
  %2262 = vmatprep.mubr.bf16.mxu0 %v506
  %2263 = vmatmul.mubr.bf16.gmra.mrb[0].mxu0 %v505
  %v2264 = vpop.f32.mrb[0].mxu0
  %v2265 = vadd.f32 %v2072, %v2264
  %v2266 = vpop.f32.mrb[0].mxu0
  %v2267 = vadd.f32 %v2074, %v2266
  %v2268 = vpop.f32.mrb[0].mxu0
  %v2269 = vadd.f32 %v2076, %v2268
  %v2270 = vpop.f32.mrb[0].mxu0
  %v2271 = vadd.f32 %v2078, %v2270
  %2272 = vmatprep.mubr.bf16.mxu0 %v510
  %2273 = vmatmul.mubr.bf16.gmra.mrb[0].mxu0 %v509
  %v2274 = vpop.f32.mrb[0].mxu0
  %v2275 = vadd.f32 %v2082, %v2274
  %v2276 = vpop.f32.mrb[0].mxu0
  %v2277 = vadd.f32 %v2084, %v2276
  %v2278 = vpop.f32.mrb[0].mxu0
  %v2279 = vadd.f32 %v2086, %v2278
  %v2280 = vpop.f32.mrb[0].mxu0
  %v2281 = vadd.f32 %v2088, %v2280
  %2282 = vmatprep.mubr.bf16.mxu0 %v514
  %2283 = vmatmul.mubr.bf16.gmra.mrb[0].mxu0 %v513
  %v2284 = vpop.f32.mrb[0].mxu0
  %v2285 = vadd.f32 %v2092, %v2284
  %v2286 = vpop.f32.mrb[0].mxu0
  %v2287 = vadd.f32 %v2094, %v2286
  %v2288 = vpop.f32.mrb[0].mxu0
  %v2289 = vadd.f32 %v2096, %v2288
  %v2290 = vpop.f32.mrb[0].mxu0
  %v2291 = vadd.f32 %v2098, %v2290
  %2292 = vmatprep.mubr.bf16.mxu0 %v518
  %2293 = vmatmul.mubr.bf16.gmra.mrb[0].mxu0 %v517
  %v2294 = vpop.f32.mrb[0].mxu0
  %v2295 = vadd.f32 %v2102, %v2294
  %v2296 = vpop.f32.mrb[0].mxu0
  %v2297 = vadd.f32 %v2104, %v2296
  %v2298 = vpop.f32.mrb[0].mxu0
  %v2299 = vadd.f32 %v2106, %v2298
  %v2300 = vpop.f32.mrb[0].mxu0
  %v2301 = vadd.f32 %v2108, %v2300
  %2302 = vmatprep.mubr.bf16.mxu0 %v522
  %2303 = vmatmul.mubr.bf16.gmra.mrb[0].mxu0 %v521
  %v2304 = vpop.f32.mrb[0].mxu0
  %v2305 = vadd.f32 %v2112, %v2304
  %v2306 = vpop.f32.mrb[0].mxu0
  %v2307 = vadd.f32 %v2114, %v2306
  %v2308 = vpop.f32.mrb[0].mxu0
  %v2309 = vadd.f32 %v2116, %v2308
  %v2310 = vpop.f32.mrb[0].mxu0
  %v2311 = vadd.f32 %v2118, %v2310
  %2312 = vmatprep.mubr.bf16.mxu0 %v526
  %2313 = vmatmul.mubr.bf16.gmra.mrb[0].mxu0 %v525
  %v2314 = vpop.f32.mrb[0].mxu0
  %v2315 = vadd.f32 %v2122, %v2314
  %v2316 = vpop.f32.mrb[0].mxu0
  %v2317 = vadd.f32 %v2124, %v2316
  %v2318 = vpop.f32.mrb[0].mxu0
  %v2319 = vadd.f32 %v2126, %v2318
  %v2320 = vpop.f32.mrb[0].mxu0
  %v2321 = vadd.f32 %v2128, %v2320
  %2322 = vdwg.mxu0
  %2323 = vmatprep.subr.bf16.mxu0 %v1172
  %2324 = vmatpush1.bf16.msra.mxu0 %v1171
  %2325 = vmatprep.subr.bf16.mxu0 %v1178
  %2326 = vmatpush1.bf16.msra.mxu0 %v1177
  %2327 = vmatprep.subr.bf16.mxu0 %v1184
  %2328 = vmatpush1.bf16.msra.mxu0 %v1183
  %2329 = vmatprep.subr.bf16.mxu0 %v1190
  %2330 = vmatpush1.bf16.msra.mxu0 %v1189
  %2331 = vmatprep.subr.bf16.mxu0 %v1196
  %2332 = vmatpush1.bf16.msra.mxu0 %v1195
  %2333 = vmatprep.subr.bf16.mxu0 %v1202
  %2334 = vmatpush1.bf16.msra.mxu0 %v1201
  %2335 = vmatprep.subr.bf16.mxu0 %v1208
  %2336 = vmatpush1.bf16.msra.mxu0 %v1207
  %2337 = vmatprep.subr.bf16.mxu0 %v1214
  %2338 = vmatpush1.bf16.msra.mxu0 %v1213
  %2339 = vmatprep.subr.bf16.mxu0 %v1220
  %2340 = vmatpush1.bf16.msra.mxu0 %v1219
  %2341 = vmatprep.subr.bf16.mxu0 %v1226
  %2342 = vmatpush1.bf16.msra.mxu0 %v1225
  %2343 = vmatprep.subr.bf16.mxu0 %v1232
  %2344 = vmatpush1.bf16.msra.mxu0 %v1231
  %2345 = vmatprep.subr.bf16.mxu0 %v1238
  %2346 = vmatpush1.bf16.msra.mxu0 %v1237
  %2347 = vmatprep.subr.bf16.mxu0 %v1244
  %2348 = vmatpush1.bf16.msra.mxu0 %v1243
  %2349 = vmatprep.subr.bf16.mxu0 %v1250
  %2350 = vmatpush1.bf16.msra.mxu0 %v1249
  %2351 = vmatprep.subr.bf16.mxu0 %v1256
  %2352 = vmatpush1.bf16.msra.mxu0 %v1255
  %2353 = vmatprep.subr.bf16.mxu0 %v1262
  %2354 = vmatpush1.bf16.msra.mxu0 %v1261
  %2355 = vmatprep.mubr.bf16.mxu0 %v464
  %2356 = vmatmul.mubr.bf16.gmra.mrb[0].mxu0 %v463
  %v2357 = vpop.f32.mrb[0].mxu0
  %v2358 = vadd.f32 0.0, %v2357
  %v2359 = vpop.f32.mrb[0].mxu0
  %v2360 = vadd.f32 0.0, %v2359
  %v2361 = vpop.f32.mrb[0].mxu0
  %v2362 = vadd.f32 0.0, %v2361
  %v2363 = vpop.f32.mrb[0].mxu0
  %v2364 = vadd.f32 0.0, %v2363
  %2365 = vmatprep.mubr.bf16.mxu0 %v468
  %2366 = vmatmul.mubr.bf16.gmra.mrb[0].mxu0 %v467
  %v2367 = vpop.f32.mrb[0].mxu0
  %v2368 = vadd.f32 0.0, %v2367
  %v2369 = vpop.f32.mrb[0].mxu0
  %v2370 = vadd.f32 0.0, %v2369
  %v2371 = vpop.f32.mrb[0].mxu0
  %v2372 = vadd.f32 0.0, %v2371
  %v2373 = vpop.f32.mrb[0].mxu0
  %v2374 = vadd.f32 0.0, %v2373
  %2375 = vmatprep.mubr.bf16.mxu0 %v472
  %2376 = vmatmul.mubr.bf16.gmra.mrb[0].mxu0 %v471
  %v2377 = vpop.f32.mrb[0].mxu0
  %v2378 = vadd.f32 0.0, %v2377
  %v2379 = vpop.f32.mrb[0].mxu0
  %v2380 = vadd.f32 0.0, %v2379
  %v2381 = vpop.f32.mrb[0].mxu0
  %v2382 = vadd.f32 0.0, %v2381
  %v2383 = vpop.f32.mrb[0].mxu0
  %v2384 = vadd.f32 0.0, %v2383
  %2385 = vmatprep.mubr.bf16.mxu0 %v476
  %2386 = vmatmul.mubr.bf16.gmra.mrb[0].mxu0 %v475
  %v2387 = vpop.f32.mrb[0].mxu0
  %v2388 = vadd.f32 0.0, %v2387
  %v2389 = vpop.f32.mrb[0].mxu0
  %v2390 = vadd.f32 0.0, %v2389
  %v2391 = vpop.f32.mrb[0].mxu0
  %v2392 = vadd.f32 0.0, %v2391
  %v2393 = vpop.f32.mrb[0].mxu0
  %v2394 = vadd.f32 0.0, %v2393
  %2395 = vmatprep.mubr.bf16.mxu0 %v480
  %2396 = vmatmul.mubr.bf16.gmra.mrb[0].mxu0 %v479
  %v2397 = vpop.f32.mrb[0].mxu0
  %v2398 = vadd.f32 0.0, %v2397
  %v2399 = vpop.f32.mrb[0].mxu0
  %v2400 = vadd.f32 0.0, %v2399
  %v2401 = vpop.f32.mrb[0].mxu0
  %v2402 = vadd.f32 0.0, %v2401
  %v2403 = vpop.f32.mrb[0].mxu0
  %v2404 = vadd.f32 0.0, %v2403
  %2405 = vmatprep.mubr.bf16.mxu0 %v484
  %2406 = vmatmul.mubr.bf16.gmra.mrb[0].mxu0 %v483
  %v2407 = vpop.f32.mrb[0].mxu0
  %v2408 = vadd.f32 0.0, %v2407
  %v2409 = vpop.f32.mrb[0].mxu0
  %v2410 = vadd.f32 0.0, %v2409
  %v2411 = vpop.f32.mrb[0].mxu0
  %v2412 = vadd.f32 0.0, %v2411
  %v2413 = vpop.f32.mrb[0].mxu0
  %v2414 = vadd.f32 0.0, %v2413
  %2415 = vmatprep.mubr.bf16.mxu0 %v488
  %2416 = vmatmul.mubr.bf16.gmra.mrb[0].mxu0 %v487
  %v2417 = vpop.f32.mrb[0].mxu0
  %v2418 = vadd.f32 0.0, %v2417
  %v2419 = vpop.f32.mrb[0].mxu0
  %v2420 = vadd.f32 0.0, %v2419
  %v2421 = vpop.f32.mrb[0].mxu0
  %v2422 = vadd.f32 0.0, %v2421
  %v2423 = vpop.f32.mrb[0].mxu0
  %v2424 = vadd.f32 0.0, %v2423
  %2425 = vmatprep.mubr.bf16.mxu0 %v492
  %2426 = vmatmul.mubr.bf16.gmra.mrb[0].mxu0 %v491
  %v2427 = vpop.f32.mrb[0].mxu0
  %v2428 = vadd.f32 0.0, %v2427
  %v2429 = vpop.f32.mrb[0].mxu0
  %v2430 = vadd.f32 0.0, %v2429
  %v2431 = vpop.f32.mrb[0].mxu0
  %v2432 = vadd.f32 0.0, %v2431
  %v2433 = vpop.f32.mrb[0].mxu0
  %v2434 = vadd.f32 0.0, %v2433
  %2435 = vmatprep.mubr.bf16.mxu0 %v496
  %2436 = vmatmul.mubr.bf16.gmra.mrb[0].mxu0 %v495
  %v2437 = vpop.f32.mrb[0].mxu0
  %v2438 = vadd.f32 0.0, %v2437
  %v2439 = vpop.f32.mrb[0].mxu0
  %v2440 = vadd.f32 0.0, %v2439
  %v2441 = vpop.f32.mrb[0].mxu0
  %v2442 = vadd.f32 0.0, %v2441
  %v2443 = vpop.f32.mrb[0].mxu0
  %v2444 = vadd.f32 0.0, %v2443
  %2445 = vmatprep.mubr.bf16.mxu0 %v500
  %2446 = vmatmul.mubr.bf16.gmra.mrb[0].mxu0 %v499
  %v2447 = vpop.f32.mrb[0].mxu0
  %v2448 = vadd.f32 0.0, %v2447
  %v2449 = vpop.f32.mrb[0].mxu0
  %v2450 = vadd.f32 0.0, %v2449
  %v2451 = vpop.f32.mrb[0].mxu0
  %v2452 = vadd.f32 0.0, %v2451
  %v2453 = vpop.f32.mrb[0].mxu0
  %v2454 = vadd.f32 0.0, %v2453
  %2455 = vmatprep.mubr.bf16.mxu0 %v504
  %2456 = vmatmul.mubr.bf16.gmra.mrb[0].mxu0 %v503
  %v2457 = vpop.f32.mrb[0].mxu0
  %v2458 = vadd.f32 0.0, %v2457
  %v2459 = vpop.f32.mrb[0].mxu0
  %v2460 = vadd.f32 0.0, %v2459
  %v2461 = vpop.f32.mrb[0].mxu0
  %v2462 = vadd.f32 0.0, %v2461
  %v2463 = vpop.f32.mrb[0].mxu0
  %v2464 = vadd.f32 0.0, %v2463
  %2465 = vmatprep.mubr.bf16.mxu0 %v508
  %2466 = vmatmul.mubr.bf16.gmra.mrb[0].mxu0 %v507
  %v2467 = vpop.f32.mrb[0].mxu0
  %v2468 = vadd.f32 0.0, %v2467
  %v2469 = vpop.f32.mrb[0].mxu0
  %v2470 = vadd.f32 0.0, %v2469
  %v2471 = vpop.f32.mrb[0].mxu0
  %v2472 = vadd.f32 0.0, %v2471
  %v2473 = vpop.f32.mrb[0].mxu0
  %v2474 = vadd.f32 0.0, %v2473
  %2475 = vmatprep.mubr.bf16.mxu0 %v512
  %2476 = vmatmul.mubr.bf16.gmra.mrb[0].mxu0 %v511
  %v2477 = vpop.f32.mrb[0].mxu0
  %v2478 = vadd.f32 0.0, %v2477
  %v2479 = vpop.f32.mrb[0].mxu0
  %v2480 = vadd.f32 0.0, %v2479
  %v2481 = vpop.f32.mrb[0].mxu0
  %v2482 = vadd.f32 0.0, %v2481
  %v2483 = vpop.f32.mrb[0].mxu0
  %v2484 = vadd.f32 0.0, %v2483
  %2485 = vmatprep.mubr.bf16.mxu0 %v516
  %2486 = vmatmul.mubr.bf16.gmra.mrb[0].mxu0 %v515
  %v2487 = vpop.f32.mrb[0].mxu0
  %v2488 = vadd.f32 0.0, %v2487
  %v2489 = vpop.f32.mrb[0].mxu0
  %v2490 = vadd.f32 0.0, %v2489
  %v2491 = vpop.f32.mrb[0].mxu0
  %v2492 = vadd.f32 0.0, %v2491
  %v2493 = vpop.f32.mrb[0].mxu0
  %v2494 = vadd.f32 0.0, %v2493
  %2495 = vmatprep.mubr.bf16.mxu0 %v520
  %2496 = vmatmul.mubr.bf16.gmra.mrb[0].mxu0 %v519
  %v2497 = vpop.f32.mrb[0].mxu0
  %v2498 = vadd.f32 0.0, %v2497
  %v2499 = vpop.f32.mrb[0].mxu0
  %v2500 = vadd.f32 0.0, %v2499
  %v2501 = vpop.f32.mrb[0].mxu0
  %v2502 = vadd.f32 0.0, %v2501
  %v2503 = vpop.f32.mrb[0].mxu0
  %v2504 = vadd.f32 0.0, %v2503
  %2505 = vmatprep.mubr.bf16.mxu0 %v524
  %2506 = vmatmul.mubr.bf16.gmra.mrb[0].mxu0 %v523
  %v2507 = vpop.f32.mrb[0].mxu0
  %v2508 = vadd.f32 0.0, %v2507
  %v2509 = vpop.f32.mrb[0].mxu0
  %v2510 = vadd.f32 0.0, %v2509
  %v2511 = vpop.f32.mrb[0].mxu0
  %v2512 = vadd.f32 0.0, %v2511
  %v2513 = vpop.f32.mrb[0].mxu0
  %v2514 = vadd.f32 0.0, %v2513
  %2515 = vdwg.mxu0
  %2516 = vmatprep.subr.bf16.mxu0 %v1268
  %2517 = vmatpush1.bf16.msra.mxu0 %v1267
  %2518 = vmatprep.subr.bf16.mxu0 %v1274
  %2519 = vmatpush1.bf16.msra.mxu0 %v1273
  %2520 = vmatprep.subr.bf16.mxu0 %v1280
  %2521 = vmatpush1.bf16.msra.mxu0 %v1279
  %2522 = vmatprep.subr.bf16.mxu0 %v1286
  %2523 = vmatpush1.bf16.msra.mxu0 %v1285
  %2524 = vmatprep.subr.bf16.mxu0 %v1292
  %2525 = vmatpush1.bf16.msra.mxu0 %v1291
  %2526 = vmatprep.subr.bf16.mxu0 %v1298
  %2527 = vmatpush1.bf16.msra.mxu0 %v1297
  %2528 = vmatprep.subr.bf16.mxu0 %v1304
  %2529 = vmatpush1.bf16.msra.mxu0 %v1303
  %2530 = vmatprep.subr.bf16.mxu0 %v1310
  %2531 = vmatpush1.bf16.msra.mxu0 %v1309
  %2532 = vmatprep.subr.bf16.mxu0 %v1316
  %2533 = vmatpush1.bf16.msra.mxu0 %v1315
  %2534 = vmatprep.subr.bf16.mxu0 %v1322
  %2535 = vmatpush1.bf16.msra.mxu0 %v1321
  %2536 = vmatprep.subr.bf16.mxu0 %v1328
  %2537 = vmatpush1.bf16.msra.mxu0 %v1327
  %2538 = vmatprep.subr.bf16.mxu0 %v1334
  %2539 = vmatpush1.bf16.msra.mxu0 %v1333
  %2540 = vmatprep.subr.bf16.mxu0 %v1340
  %2541 = vmatpush1.bf16.msra.mxu0 %v1339
  %2542 = vmatprep.subr.bf16.mxu0 %v1346
  %2543 = vmatpush1.bf16.msra.mxu0 %v1345
  %2544 = vmatprep.subr.bf16.mxu0 %v1352
  %2545 = vmatpush1.bf16.msra.mxu0 %v1351
  %2546 = vmatprep.subr.bf16.mxu0 %v1358
  %2547 = vmatpush1.bf16.msra.mxu0 %v1357
  %2548 = vmatprep.mubr.bf16.mxu0 %v466
  %2549 = vmatmul.mubr.bf16.gmra.mrb[0].mxu0 %v465
  %v2550 = vpop.f32.mrb[0].mxu0
  %v2551 = vadd.f32 %v2358, %v2550
  %v2552 = vpop.f32.mrb[0].mxu0
  %v2553 = vadd.f32 %v2360, %v2552
  %v2554 = vpop.f32.mrb[0].mxu0
  %v2555 = vadd.f32 %v2362, %v2554
  %v2556 = vpop.f32.mrb[0].mxu0
  %v2557 = vadd.f32 %v2364, %v2556
  %2558 = vmatprep.mubr.bf16.mxu0 %v470
  %2559 = vmatmul.mubr.bf16.gmra.mrb[0].mxu0 %v469
  %v2560 = vpop.f32.mrb[0].mxu0
  %v2561 = vadd.f32 %v2368, %v2560
  %v2562 = vpop.f32.mrb[0].mxu0
  %v2563 = vadd.f32 %v2370, %v2562
  %v2564 = vpop.f32.mrb[0].mxu0
  %v2565 = vadd.f32 %v2372, %v2564
  %v2566 = vpop.f32.mrb[0].mxu0
  %v2567 = vadd.f32 %v2374, %v2566
  %2568 = vmatprep.mubr.bf16.mxu0 %v474
  %2569 = vmatmul.mubr.bf16.gmra.mrb[0].mxu0 %v473
  %v2570 = vpop.f32.mrb[0].mxu0
  %v2571 = vadd.f32 %v2378, %v2570
  %v2572 = vpop.f32.mrb[0].mxu0
  %v2573 = vadd.f32 %v2380, %v2572
  %v2574 = vpop.f32.mrb[0].mxu0
  %v2575 = vadd.f32 %v2382, %v2574
  %v2576 = vpop.f32.mrb[0].mxu0
  %v2577 = vadd.f32 %v2384, %v2576
  %2578 = vmatprep.mubr.bf16.mxu0 %v478
  %2579 = vmatmul.mubr.bf16.gmra.mrb[0].mxu0 %v477
  %v2580 = vpop.f32.mrb[0].mxu0
  %v2581 = vadd.f32 %v2388, %v2580
  %v2582 = vpop.f32.mrb[0].mxu0
  %v2583 = vadd.f32 %v2390, %v2582
  %v2584 = vpop.f32.mrb[0].mxu0
  %v2585 = vadd.f32 %v2392, %v2584
  %v2586 = vpop.f32.mrb[0].mxu0
  %v2587 = vadd.f32 %v2394, %v2586
  %2588 = vmatprep.mubr.bf16.mxu0 %v482
  %2589 = vmatmul.mubr.bf16.gmra.mrb[0].mxu0 %v481
  %v2590 = vpop.f32.mrb[0].mxu0
  %v2591 = vadd.f32 %v2398, %v2590
  %v2592 = vpop.f32.mrb[0].mxu0
  %v2593 = vadd.f32 %v2400, %v2592
  %v2594 = vpop.f32.mrb[0].mxu0
  %v2595 = vadd.f32 %v2402, %v2594
  %v2596 = vpop.f32.mrb[0].mxu0
  %v2597 = vadd.f32 %v2404, %v2596
  %2598 = vmatprep.mubr.bf16.mxu0 %v486
  %2599 = vmatmul.mubr.bf16.gmra.mrb[0].mxu0 %v485
  %v2600 = vpop.f32.mrb[0].mxu0
  %v2601 = vadd.f32 %v2408, %v2600
  %v2602 = vpop.f32.mrb[0].mxu0
  %v2603 = vadd.f32 %v2410, %v2602
  %v2604 = vpop.f32.mrb[0].mxu0
  %v2605 = vadd.f32 %v2412, %v2604
  %v2606 = vpop.f32.mrb[0].mxu0
  %v2607 = vadd.f32 %v2414, %v2606
  %2608 = vmatprep.mubr.bf16.mxu0 %v490
  %2609 = vmatmul.mubr.bf16.gmra.mrb[0].mxu0 %v489
  %v2610 = vpop.f32.mrb[0].mxu0
  %v2611 = vadd.f32 %v2418, %v2610
  %v2612 = vpop.f32.mrb[0].mxu0
  %v2613 = vadd.f32 %v2420, %v2612
  %v2614 = vpop.f32.mrb[0].mxu0
  %v2615 = vadd.f32 %v2422, %v2614
  %v2616 = vpop.f32.mrb[0].mxu0
  %v2617 = vadd.f32 %v2424, %v2616
  %2618 = vmatprep.mubr.bf16.mxu0 %v494
  %2619 = vmatmul.mubr.bf16.gmra.mrb[0].mxu0 %v493
  %v2620 = vpop.f32.mrb[0].mxu0
  %v2621 = vadd.f32 %v2428, %v2620
  %v2622 = vpop.f32.mrb[0].mxu0
  %v2623 = vadd.f32 %v2430, %v2622
  %v2624 = vpop.f32.mrb[0].mxu0
  %v2625 = vadd.f32 %v2432, %v2624
  %v2626 = vpop.f32.mrb[0].mxu0
  %v2627 = vadd.f32 %v2434, %v2626
  %2628 = vmatprep.mubr.bf16.mxu0 %v498
  %2629 = vmatmul.mubr.bf16.gmra.mrb[0].mxu0 %v497
  %v2630 = vpop.f32.mrb[0].mxu0
  %v2631 = vadd.f32 %v2438, %v2630
  %v2632 = vpop.f32.mrb[0].mxu0
  %v2633 = vadd.f32 %v2440, %v2632
  %v2634 = vpop.f32.mrb[0].mxu0
  %v2635 = vadd.f32 %v2442, %v2634
  %v2636 = vpop.f32.mrb[0].mxu0
  %v2637 = vadd.f32 %v2444, %v2636
  %2638 = vmatprep.mubr.bf16.mxu0 %v502
  %2639 = vmatmul.mubr.bf16.gmra.mrb[0].mxu0 %v501
  %v2640 = vpop.f32.mrb[0].mxu0
  %v2641 = vadd.f32 %v2448, %v2640
  %v2642 = vpop.f32.mrb[0].mxu0
  %v2643 = vadd.f32 %v2450, %v2642
  %v2644 = vpop.f32.mrb[0].mxu0
  %v2645 = vadd.f32 %v2452, %v2644
  %v2646 = vpop.f32.mrb[0].mxu0
  %v2647 = vadd.f32 %v2454, %v2646
  %2648 = vmatprep.mubr.bf16.mxu0 %v506
  %2649 = vmatmul.mubr.bf16.gmra.mrb[0].mxu0 %v505
  %v2650 = vpop.f32.mrb[0].mxu0
  %v2651 = vadd.f32 %v2458, %v2650
  %v2652 = vpop.f32.mrb[0].mxu0
  %v2653 = vadd.f32 %v2460, %v2652
  %v2654 = vpop.f32.mrb[0].mxu0
  %v2655 = vadd.f32 %v2462, %v2654
  %v2656 = vpop.f32.mrb[0].mxu0
  %v2657 = vadd.f32 %v2464, %v2656
  %2658 = vmatprep.mubr.bf16.mxu0 %v510
  %2659 = vmatmul.mubr.bf16.gmra.mrb[0].mxu0 %v509
  %v2660 = vpop.f32.mrb[0].mxu0
  %v2661 = vadd.f32 %v2468, %v2660
  %v2662 = vpop.f32.mrb[0].mxu0
  %v2663 = vadd.f32 %v2470, %v2662
  %v2664 = vpop.f32.mrb[0].mxu0
  %v2665 = vadd.f32 %v2472, %v2664
  %v2666 = vpop.f32.mrb[0].mxu0
  %v2667 = vadd.f32 %v2474, %v2666
  %2668 = vmatprep.mubr.bf16.mxu0 %v514
  %2669 = vmatmul.mubr.bf16.gmra.mrb[0].mxu0 %v513
  %v2670 = vpop.f32.mrb[0].mxu0
  %v2671 = vadd.f32 %v2478, %v2670
  %v2672 = vpop.f32.mrb[0].mxu0
  %v2673 = vadd.f32 %v2480, %v2672
  %v2674 = vpop.f32.mrb[0].mxu0
  %v2675 = vadd.f32 %v2482, %v2674
  %v2676 = vpop.f32.mrb[0].mxu0
  %v2677 = vadd.f32 %v2484, %v2676
  %2678 = vmatprep.mubr.bf16.mxu0 %v518
  %2679 = vmatmul.mubr.bf16.gmra.mrb[0].mxu0 %v517
  %v2680 = vpop.f32.mrb[0].mxu0
  %v2681 = vadd.f32 %v2488, %v2680
  %v2682 = vpop.f32.mrb[0].mxu0
  %v2683 = vadd.f32 %v2490, %v2682
  %v2684 = vpop.f32.mrb[0].mxu0
  %v2685 = vadd.f32 %v2492, %v2684
  %v2686 = vpop.f32.mrb[0].mxu0
  %v2687 = vadd.f32 %v2494, %v2686
  %2688 = vmatprep.mubr.bf16.mxu0 %v522
  %2689 = vmatmul.mubr.bf16.gmra.mrb[0].mxu0 %v521
  %v2690 = vpop.f32.mrb[0].mxu0
  %v2691 = vadd.f32 %v2498, %v2690
  %v2692 = vpop.f32.mrb[0].mxu0
  %v2693 = vadd.f32 %v2500, %v2692
  %v2694 = vpop.f32.mrb[0].mxu0
  %v2695 = vadd.f32 %v2502, %v2694
  %v2696 = vpop.f32.mrb[0].mxu0
  %v2697 = vadd.f32 %v2504, %v2696
  %2698 = vmatprep.mubr.bf16.mxu0 %v526
  %2699 = vmatmul.mubr.bf16.gmra.mrb[0].mxu0 %v525
  %v2700 = vpop.f32.mrb[0].mxu0
  %v2701 = vadd.f32 %v2508, %v2700
  %v2702 = vpop.f32.mrb[0].mxu0
  %v2703 = vadd.f32 %v2510, %v2702
  %v2704 = vpop.f32.mrb[0].mxu0
  %v2705 = vadd.f32 %v2512, %v2704
  %v2706 = vpop.f32.mrb[0].mxu0
  %v2707 = vadd.f32 %v2514, %v2706
  %2708 = vdwg.mxu0
  %v2709 = vmul.f32 %v1779, %v1779
  %v2710 = vmul.f32 %v1781, %v1781
  %v2711 = vmul.f32 %v2165, %v2165
  %v2712 = vmul.f32 %v1783, %v1783
  %v2713 = vmul.f32 %v1785, %v1785
  %v2714 = vmul.f32 %v2169, %v2169
  %v2715 = vmul.f32 %v1789, %v1789
  %v2716 = vmul.f32 %v1791, %v1791
  %v2717 = vmul.f32 %v2175, %v2175
  %v2718 = vmul.f32 %v1793, %v1793
  %v2719 = vmul.f32 %v1795, %v1795
  %v2720 = vmul.f32 %v2179, %v2179
  %v2721 = vmul.f32 %v1799, %v1799
  %v2722 = vmul.f32 %v1801, %v1801
  %v2723 = vmul.f32 %v2185, %v2185
  %v2724 = vmul.f32 %v1803, %v1803
  %v2725 = vmul.f32 %v1805, %v1805
  %v2726 = vmul.f32 %v2189, %v2189
  %v2727 = vmul.f32 %v1809, %v1809
  %v2728 = vmul.f32 %v1811, %v1811
  %v2729 = vmul.f32 %v2195, %v2195
  %v2730 = vmul.f32 %v1813, %v1813
  %v2731 = vmul.f32 %v1815, %v1815
  %v2732 = vmul.f32 %v2199, %v2199
  %v2733 = vmul.f32 %v1819, %v1819
  %v2734 = vmul.f32 %v1821, %v1821
  %v2735 = vmul.f32 %v2205, %v2205
  %v2736 = vmul.f32 %v1823, %v1823
  %v2737 = vmul.f32 %v1825, %v1825
  %v2738 = vmul.f32 %v2209, %v2209
  %v2739 = vmul.f32 %v1829, %v1829
  %v2740 = vmul.f32 %v1831, %v1831
  %v2741 = vmul.f32 %v2215, %v2215
  %v2742 = vmul.f32 %v1833, %v1833
  %v2743 = vmul.f32 %v1835, %v1835
  %v2744 = vmul.f32 %v2219, %v2219
  %v2745 = vmul.f32 %v1839, %v1839
  %v2746 = vmul.f32 %v1841, %v1841
  %v2747 = vmul.f32 %v2225, %v2225
  %v2748 = vmul.f32 %v1843, %v1843
  %v2749 = vmul.f32 %v1845, %v1845
  %v2750 = vmul.f32 %v2229, %v2229
  %v2751 = vmul.f32 %v1849, %v1849
  %v2752 = vmul.f32 %v1851, %v1851
  %v2753 = vmul.f32 %v2235, %v2235
  %v2754 = vmul.f32 %v1853, %v1853
  %v2755 = vmul.f32 %v1855, %v1855
  %v2756 = vmul.f32 %v2239, %v2239
  %v2757 = vmul.f32 %v1859, %v1859
  %v2758 = vmul.f32 %v1861, %v1861
  %v2759 = vmul.f32 %v2245, %v2245
  %v2760 = vmul.f32 %v1863, %v1863
  %v2761 = vmul.f32 %v1865, %v1865
  %v2762 = vmul.f32 %v2249, %v2249
  %v2763 = vmul.f32 %v1869, %v1869
  %v2764 = vmul.f32 %v1871, %v1871
  %v2765 = vmul.f32 %v2255, %v2255
  %v2766 = vmul.f32 %v1873, %v1873
  %v2767 = vmul.f32 %v1875, %v1875
  %v2768 = vmul.f32 %v2259, %v2259
  %v2769 = vmul.f32 %v1879, %v1879
  %v2770 = vmul.f32 %v1881, %v1881
  %v2771 = vmul.f32 %v2265, %v2265
  %v2772 = vmul.f32 %v1883, %v1883
  %v2773 = vmul.f32 %v1885, %v1885
  %v2774 = vmul.f32 %v2269, %v2269
  %v2775 = vmul.f32 %v1889, %v1889
  %v2776 = vmul.f32 %v1891, %v1891
  %v2777 = vmul.f32 %v2275, %v2275
  %v2778 = vmul.f32 %v1893, %v1893
  %v2779 = vmul.f32 %v1895, %v1895
  %v2780 = vmul.f32 %v2279, %v2279
  %v2781 = vmul.f32 %v1899, %v1899
  %v2782 = vmul.f32 %v1901, %v1901
  %v2783 = vmul.f32 %v2285, %v2285
  %v2784 = vmul.f32 %v1903, %v1903
  %v2785 = vmul.f32 %v1905, %v1905
  %v2786 = vmul.f32 %v2289, %v2289
  %v2787 = vmul.f32 %v1909, %v1909
  %v2788 = vmul.f32 %v1911, %v1911
  %v2789 = vmul.f32 %v2295, %v2295
  %v2790 = vmul.f32 %v1913, %v1913
  %v2791 = vmul.f32 %v1915, %v1915
  %v2792 = vmul.f32 %v2299, %v2299
  %v2793 = vmul.f32 %v1919, %v1919
  %v2794 = vmul.f32 %v1921, %v1921
  %v2795 = vmul.f32 %v2305, %v2305
  %v2796 = vmul.f32 %v1923, %v1923
  %v2797 = vmul.f32 %v1925, %v1925
  %v2798 = vmul.f32 %v2309, %v2309
  %v2799 = vmul.f32 %v1929, %v1929
  %v2800 = vmul.f32 %v1931, %v1931
  %v2801 = vmul.f32 %v2315, %v2315
  %v2802 = vmul.f32 %v1933, %v1933
  %v2803 = vmul.f32 %v1935, %v1935
  %v2804 = vmul.f32 %v2319, %v2319
  %v2805 = vmul.f32 %v2167, %v2167
  %v2806 = vmul.f32 %v2551, %v2551
  %v2807 = vmul.f32 %v2553, %v2553
  %v2808 = vmul.f32 %v2171, %v2171
  %v2809 = vmul.f32 %v2555, %v2555
  %v2810 = vmul.f32 %v2557, %v2557
  %v2811 = vmul.f32 %v2177, %v2177
  %v2812 = vmul.f32 %v2561, %v2561
  %v2813 = vmul.f32 %v2563, %v2563
  %v2814 = vmul.f32 %v2181, %v2181
  %v2815 = vmul.f32 %v2565, %v2565
  %v2816 = vmul.f32 %v2567, %v2567
  %v2817 = vmul.f32 %v2187, %v2187
  %v2818 = vmul.f32 %v2571, %v2571
  %v2819 = vmul.f32 %v2573, %v2573
  %v2820 = vmul.f32 %v2191, %v2191
  %v2821 = vmul.f32 %v2575, %v2575
  %v2822 = vmul.f32 %v2577, %v2577
  %v2823 = vmul.f32 %v2197, %v2197
  %v2824 = vmul.f32 %v2581, %v2581
  %v2825 = vmul.f32 %v2583, %v2583
  %v2826 = vmul.f32 %v2201, %v2201
  %v2827 = vmul.f32 %v2585, %v2585
  %v2828 = vmul.f32 %v2587, %v2587
  %v2829 = vmul.f32 %v2207, %v2207
  %v2830 = vmul.f32 %v2591, %v2591
  %v2831 = vmul.f32 %v2593, %v2593
  %v2832 = vmul.f32 %v2211, %v2211
  %v2833 = vmul.f32 %v2595, %v2595
  %v2834 = vmul.f32 %v2597, %v2597
  %v2835 = vmul.f32 %v2217, %v2217
  %v2836 = vmul.f32 %v2601, %v2601
  %v2837 = vmul.f32 %v2603, %v2603
  %v2838 = vmul.f32 %v2221, %v2221
  %v2839 = vmul.f32 %v2605, %v2605
  %v2840 = vmul.f32 %v2607, %v2607
  %v2841 = vmul.f32 %v2227, %v2227
  %v2842 = vmul.f32 %v2611, %v2611
  %v2843 = vmul.f32 %v2613, %v2613
  %v2844 = vmul.f32 %v2231, %v2231
  %v2845 = vmul.f32 %v2615, %v2615
  %v2846 = vmul.f32 %v2617, %v2617
  %v2847 = vmul.f32 %v2237, %v2237
  %v2848 = vmul.f32 %v2621, %v2621
  %v2849 = vmul.f32 %v2623, %v2623
  %v2850 = vmul.f32 %v2241, %v2241
  %v2851 = vmul.f32 %v2625, %v2625
  %v2852 = vmul.f32 %v2627, %v2627
  %v2853 = vmul.f32 %v2247, %v2247
  %v2854 = vmul.f32 %v2631, %v2631
  %v2855 = vmul.f32 %v2633, %v2633
  %v2856 = vmul.f32 %v2251, %v2251
  %v2857 = vmul.f32 %v2635, %v2635
  %v2858 = vmul.f32 %v2637, %v2637
  %v2859 = vmul.f32 %v2257, %v2257
  %v2860 = vmul.f32 %v2641, %v2641
  %v2861 = vmul.f32 %v2643, %v2643
  %v2862 = vmul.f32 %v2261, %v2261
  %v2863 = vmul.f32 %v2645, %v2645
  %v2864 = vmul.f32 %v2647, %v2647
  %v2865 = vmul.f32 %v2267, %v2267
  %v2866 = vmul.f32 %v2651, %v2651
  %v2867 = vmul.f32 %v2653, %v2653
  %v2868 = vmul.f32 %v2271, %v2271
  %v2869 = vmul.f32 %v2655, %v2655
  %v2870 = vmul.f32 %v2657, %v2657
  %v2871 = vmul.f32 %v2277, %v2277
  %v2872 = vmul.f32 %v2661, %v2661
  %v2873 = vmul.f32 %v2663, %v2663
  %v2874 = vmul.f32 %v2281, %v2281
  %v2875 = vmul.f32 %v2665, %v2665
  %v2876 = vmul.f32 %v2667, %v2667
  %v2877 = vmul.f32 %v2287, %v2287
  %v2878 = vmul.f32 %v2671, %v2671
  %v2879 = vmul.f32 %v2673, %v2673
  %v2880 = vmul.f32 %v2291, %v2291
  %v2881 = vmul.f32 %v2675, %v2675
  %v2882 = vmul.f32 %v2677, %v2677
  %v2883 = vmul.f32 %v2297, %v2297
  %v2884 = vmul.f32 %v2681, %v2681
  %v2885 = vmul.f32 %v2683, %v2683
  %v2886 = vmul.f32 %v2301, %v2301
  %v2887 = vmul.f32 %v2685, %v2685
  %v2888 = vmul.f32 %v2687, %v2687
  %v2889 = vmul.f32 %v2307, %v2307
  %v2890 = vmul.f32 %v2691, %v2691
  %v2891 = vmul.f32 %v2693, %v2693
  %v2892 = vmul.f32 %v2311, %v2311
  %v2893 = vmul.f32 %v2695, %v2695
  %v2894 = vmul.f32 %v2697, %v2697
  %v2895 = vmul.f32 %v2317, %v2317
  %v2896 = vmul.f32 %v2701, %v2701
  %v2897 = vmul.f32 %v2703, %v2703
  %v2898 = vmul.f32 %v2321, %v2321
  %v2899 = vmul.f32 %v2705, %v2705
  %v2900 = vmul.f32 %v2707, %v2707
  %v2901 = vadd.f32 %v2709, %v2805
  %v2902 = vadd.f32 %v2710, %v2806
  %v2903 = vadd.f32 %v2711, %v2807
  %v2904 = vadd.f32 %v2712, %v2808
  %v2905 = vadd.f32 %v2713, %v2809
  %v2906 = vadd.f32 %v2714, %v2810
  %v2907 = vadd.f32 %v2715, %v2811
  %v2908 = vadd.f32 %v2716, %v2812
  %v2909 = vadd.f32 %v2717, %v2813
  %v2910 = vadd.f32 %v2718, %v2814
  %v2911 = vadd.f32 %v2719, %v2815
  %v2912 = vadd.f32 %v2720, %v2816
  %v2913 = vadd.f32 %v2721, %v2817
  %v2914 = vadd.f32 %v2722, %v2818
  %v2915 = vadd.f32 %v2723, %v2819
  %v2916 = vadd.f32 %v2724, %v2820
  %v2917 = vadd.f32 %v2725, %v2821
  %v2918 = vadd.f32 %v2726, %v2822
  %v2919 = vadd.f32 %v2727, %v2823
  %v2920 = vadd.f32 %v2728, %v2824
  %v2921 = vadd.f32 %v2729, %v2825
  %v2922 = vadd.f32 %v2730, %v2826
  %v2923 = vadd.f32 %v2731, %v2827
  %v2924 = vadd.f32 %v2732, %v2828
  %v2925 = vadd.f32 %v2733, %v2829
  %v2926 = vadd.f32 %v2734, %v2830
  %v2927 = vadd.f32 %v2735, %v2831
  %v2928 = vadd.f32 %v2736, %v2832
  %v2929 = vadd.f32 %v2737, %v2833
  %v2930 = vadd.f32 %v2738, %v2834
  %v2931 = vadd.f32 %v2739, %v2835
  %v2932 = vadd.f32 %v2740, %v2836
  %v2933 = vadd.f32 %v2741, %v2837
  %v2934 = vadd.f32 %v2742, %v2838
  %v2935 = vadd.f32 %v2743, %v2839
  %v2936 = vadd.f32 %v2744, %v2840
  %v2937 = vadd.f32 %v2745, %v2841
  %v2938 = vadd.f32 %v2746, %v2842
  %v2939 = vadd.f32 %v2747, %v2843
  %v2940 = vadd.f32 %v2748, %v2844
  %v2941 = vadd.f32 %v2749, %v2845
  %v2942 = vadd.f32 %v2750, %v2846
  %v2943 = vadd.f32 %v2751, %v2847
  %v2944 = vadd.f32 %v2752, %v2848
  %v2945 = vadd.f32 %v2753, %v2849
  %v2946 = vadd.f32 %v2754, %v2850
  %v2947 = vadd.f32 %v2755, %v2851
  %v2948 = vadd.f32 %v2756, %v2852
  %v2949 = vadd.f32 %v2757, %v2853
  %v2950 = vadd.f32 %v2758, %v2854
  %v2951 = vadd.f32 %v2759, %v2855
  %v2952 = vadd.f32 %v2760, %v2856
  %v2953 = vadd.f32 %v2761, %v2857
  %v2954 = vadd.f32 %v2762, %v2858
  %v2955 = vadd.f32 %v2763, %v2859
  %v2956 = vadd.f32 %v2764, %v2860
  %v2957 = vadd.f32 %v2765, %v2861
  %v2958 = vadd.f32 %v2766, %v2862
  %v2959 = vadd.f32 %v2767, %v2863
  %v2960 = vadd.f32 %v2768, %v2864
  %v2961 = vadd.f32 %v2769, %v2865
  %v2962 = vadd.f32 %v2770, %v2866
  %v2963 = vadd.f32 %v2771, %v2867
  %v2964 = vadd.f32 %v2772, %v2868
  %v2965 = vadd.f32 %v2773, %v2869
  %v2966 = vadd.f32 %v2774, %v2870
  %v2967 = vadd.f32 %v2775, %v2871
  %v2968 = vadd.f32 %v2776, %v2872
  %v2969 = vadd.f32 %v2777, %v2873
  %v2970 = vadd.f32 %v2778, %v2874
  %v2971 = vadd.f32 %v2779, %v2875
  %v2972 = vadd.f32 %v2780, %v2876
  %v2973 = vadd.f32 %v2781, %v2877
  %v2974 = vadd.f32 %v2782, %v2878
  %v2975 = vadd.f32 %v2783, %v2879
  %v2976 = vadd.f32 %v2784, %v2880
  %v2977 = vadd.f32 %v2785, %v2881
  %v2978 = vadd.f32 %v2786, %v2882
  %v2979 = vadd.f32 %v2787, %v2883
  %v2980 = vadd.f32 %v2788, %v2884
  %v2981 = vadd.f32 %v2789, %v2885
  %v2982 = vadd.f32 %v2790, %v2886
  %v2983 = vadd.f32 %v2791, %v2887
  %v2984 = vadd.f32 %v2792, %v2888
  %v2985 = vadd.f32 %v2793, %v2889
  %v2986 = vadd.f32 %v2794, %v2890
  %v2987 = vadd.f32 %v2795, %v2891
  %v2988 = vadd.f32 %v2796, %v2892
  %v2989 = vadd.f32 %v2797, %v2893
  %v2990 = vadd.f32 %v2798, %v2894
  %v2991 = vadd.f32 %v2799, %v2895
  %v2992 = vadd.f32 %v2800, %v2896
  %v2993 = vadd.f32 %v2801, %v2897
  %v2994 = vadd.f32 %v2802, %v2898
  %v2995 = vadd.f32 %v2803, %v2899
  %v2996 = vadd.f32 %v2804, %v2900
  %v2997 = vrsqrt.pop %v2901
  %v2998 = vmul.f32 %v2901, %v2997
  %vm2999 = vcmp.eq.f32.partialorder %v2901, inf
  %v3000 = vsel %vm2999, %v2901, %v2998
  %vm3001 = vcmp.eq.f32.partialorder %v2901, 0.0
  %v3002 = vand.u32 %v2901, 2147483648
  %v3003 = vsel %vm3001, %v3002, %v3000
  %v3004 = vrsqrt.pop %v2902
  %v3005 = vmul.f32 %v2902, %v3004
  %vm3006 = vcmp.eq.f32.partialorder %v2902, inf
  %v3007 = vsel %vm3006, %v2902, %v3005
  %vm3008 = vcmp.eq.f32.partialorder %v2902, 0.0
  %v3009 = vand.u32 %v2902, 2147483648
  %v3010 = vsel %vm3008, %v3009, %v3007
  %v3011 = vrsqrt.pop %v2903
  %v3012 = vmul.f32 %v2903, %v3011
  %vm3013 = vcmp.eq.f32.partialorder %v2903, inf
  %v3014 = vsel %vm3013, %v2903, %v3012
  %vm3015 = vcmp.eq.f32.partialorder %v2903, 0.0
  %v3016 = vand.u32 %v2903, 2147483648
  %v3017 = vsel %vm3015, %v3016, %v3014
  %v3018 = vrsqrt.pop %v2904
  %v3019 = vmul.f32 %v2904, %v3018
  %vm3020 = vcmp.eq.f32.partialorder %v2904, inf
  %v3021 = vsel %vm3020, %v2904, %v3019
  %vm3022 = vcmp.eq.f32.partialorder %v2904, 0.0
  %v3023 = vand.u32 %v2904, 2147483648
  %v3024 = vsel %vm3022, %v3023, %v3021
  %v3025 = vrsqrt.pop %v2905
  %v3026 = vmul.f32 %v2905, %v3025
  %vm3027 = vcmp.eq.f32.partialorder %v2905, inf
  %v3028 = vsel %vm3027, %v2905, %v3026
  %vm3029 = vcmp.eq.f32.partialorder %v2905, 0.0
  %v3030 = vand.u32 %v2905, 2147483648
  %v3031 = vsel %vm3029, %v3030, %v3028
  %v3032 = vrsqrt.pop %v2906
  %v3033 = vmul.f32 %v2906, %v3032
  %vm3034 = vcmp.eq.f32.partialorder %v2906, inf
  %v3035 = vsel %vm3034, %v2906, %v3033
  %vm3036 = vcmp.eq.f32.partialorder %v2906, 0.0
  %v3037 = vand.u32 %v2906, 2147483648
  %v3038 = vsel %vm3036, %v3037, %v3035
  %v3039 = vrsqrt.pop %v2907
  %v3040 = vmul.f32 %v2907, %v3039
  %vm3041 = vcmp.eq.f32.partialorder %v2907, inf
  %v3042 = vsel %vm3041, %v2907, %v3040
  %vm3043 = vcmp.eq.f32.partialorder %v2907, 0.0
  %v3044 = vand.u32 %v2907, 2147483648
  %v3045 = vsel %vm3043, %v3044, %v3042
  %v3046 = vrsqrt.pop %v2908
  %v3047 = vmul.f32 %v2908, %v3046
  %vm3048 = vcmp.eq.f32.partialorder %v2908, inf
  %v3049 = vsel %vm3048, %v2908, %v3047
  %vm3050 = vcmp.eq.f32.partialorder %v2908, 0.0
  %v3051 = vand.u32 %v2908, 2147483648
  %v3052 = vsel %vm3050, %v3051, %v3049
  %v3053 = vrsqrt.pop %v2909
  %v3054 = vmul.f32 %v2909, %v3053
  %vm3055 = vcmp.eq.f32.partialorder %v2909, inf
  %v3056 = vsel %vm3055, %v2909, %v3054
  %vm3057 = vcmp.eq.f32.partialorder %v2909, 0.0
  %v3058 = vand.u32 %v2909, 2147483648
  %v3059 = vsel %vm3057, %v3058, %v3056
  %v3060 = vrsqrt.pop %v2910
  %v3061 = vmul.f32 %v2910, %v3060
  %vm3062 = vcmp.eq.f32.partialorder %v2910, inf
  %v3063 = vsel %vm3062, %v2910, %v3061
  %vm3064 = vcmp.eq.f32.partialorder %v2910, 0.0
  %v3065 = vand.u32 %v2910, 2147483648
  %v3066 = vsel %vm3064, %v3065, %v3063
  %v3067 = vrsqrt.pop %v2911
  %v3068 = vmul.f32 %v2911, %v3067
  %vm3069 = vcmp.eq.f32.partialorder %v2911, inf
  %v3070 = vsel %vm3069, %v2911, %v3068
  %vm3071 = vcmp.eq.f32.partialorder %v2911, 0.0
  %v3072 = vand.u32 %v2911, 2147483648
  %v3073 = vsel %vm3071, %v3072, %v3070
  %v3074 = vrsqrt.pop %v2912
  %v3075 = vmul.f32 %v2912, %v3074
  %vm3076 = vcmp.eq.f32.partialorder %v2912, inf
  %v3077 = vsel %vm3076, %v2912, %v3075
  %vm3078 = vcmp.eq.f32.partialorder %v2912, 0.0
  %v3079 = vand.u32 %v2912, 2147483648
  %v3080 = vsel %vm3078, %v3079, %v3077
  %v3081 = vrsqrt.pop %v2913
  %v3082 = vmul.f32 %v2913, %v3081
  %vm3083 = vcmp.eq.f32.partialorder %v2913, inf
  %v3084 = vsel %vm3083, %v2913, %v3082
  %vm3085 = vcmp.eq.f32.partialorder %v2913, 0.0
  %v3086 = vand.u32 %v2913, 2147483648
  %v3087 = vsel %vm3085, %v3086, %v3084
  %v3088 = vrsqrt.pop %v2914
  %v3089 = vmul.f32 %v2914, %v3088
  %vm3090 = vcmp.eq.f32.partialorder %v2914, inf
  %v3091 = vsel %vm3090, %v2914, %v3089
  %vm3092 = vcmp.eq.f32.partialorder %v2914, 0.0
  %v3093 = vand.u32 %v2914, 2147483648
  %v3094 = vsel %vm3092, %v3093, %v3091
  %v3095 = vrsqrt.pop %v2915
  %v3096 = vmul.f32 %v2915, %v3095
  %vm3097 = vcmp.eq.f32.partialorder %v2915, inf
  %v3098 = vsel %vm3097, %v2915, %v3096
  %vm3099 = vcmp.eq.f32.partialorder %v2915, 0.0
  %v3100 = vand.u32 %v2915, 2147483648
  %v3101 = vsel %vm3099, %v3100, %v3098
  %v3102 = vrsqrt.pop %v2916
  %v3103 = vmul.f32 %v2916, %v3102
  %vm3104 = vcmp.eq.f32.partialorder %v2916, inf
  %v3105 = vsel %vm3104, %v2916, %v3103
  %vm3106 = vcmp.eq.f32.partialorder %v2916, 0.0
  %v3107 = vand.u32 %v2916, 2147483648
  %v3108 = vsel %vm3106, %v3107, %v3105
  %v3109 = vrsqrt.pop %v2917
  %v3110 = vmul.f32 %v2917, %v3109
  %vm3111 = vcmp.eq.f32.partialorder %v2917, inf
  %v3112 = vsel %vm3111, %v2917, %v3110
  %vm3113 = vcmp.eq.f32.partialorder %v2917, 0.0
  %v3114 = vand.u32 %v2917, 2147483648
  %v3115 = vsel %vm3113, %v3114, %v3112
  %v3116 = vrsqrt.pop %v2918
  %v3117 = vmul.f32 %v2918, %v3116
  %vm3118 = vcmp.eq.f32.partialorder %v2918, inf
  %v3119 = vsel %vm3118, %v2918, %v3117
  %vm3120 = vcmp.eq.f32.partialorder %v2918, 0.0
  %v3121 = vand.u32 %v2918, 2147483648
  %v3122 = vsel %vm3120, %v3121, %v3119
  %v3123 = vrsqrt.pop %v2919
  %v3124 = vmul.f32 %v2919, %v3123
  %vm3125 = vcmp.eq.f32.partialorder %v2919, inf
  %v3126 = vsel %vm3125, %v2919, %v3124
  %vm3127 = vcmp.eq.f32.partialorder %v2919, 0.0
  %v3128 = vand.u32 %v2919, 2147483648
  %v3129 = vsel %vm3127, %v3128, %v3126
  %v3130 = vrsqrt.pop %v2920
  %v3131 = vmul.f32 %v2920, %v3130
  %vm3132 = vcmp.eq.f32.partialorder %v2920, inf
  %v3133 = vsel %vm3132, %v2920, %v3131
  %vm3134 = vcmp.eq.f32.partialorder %v2920, 0.0
  %v3135 = vand.u32 %v2920, 2147483648
  %v3136 = vsel %vm3134, %v3135, %v3133
  %v3137 = vrsqrt.pop %v2921
  %v3138 = vmul.f32 %v2921, %v3137
  %vm3139 = vcmp.eq.f32.partialorder %v2921, inf
  %v3140 = vsel %vm3139, %v2921, %v3138
  %vm3141 = vcmp.eq.f32.partialorder %v2921, 0.0
  %v3142 = vand.u32 %v2921, 2147483648
  %v3143 = vsel %vm3141, %v3142, %v3140
  %v3144 = vrsqrt.pop %v2922
  %v3145 = vmul.f32 %v2922, %v3144
  %vm3146 = vcmp.eq.f32.partialorder %v2922, inf
  %v3147 = vsel %vm3146, %v2922, %v3145
  %vm3148 = vcmp.eq.f32.partialorder %v2922, 0.0
  %v3149 = vand.u32 %v2922, 2147483648
  %v3150 = vsel %vm3148, %v3149, %v3147
  %v3151 = vrsqrt.pop %v2923
  %v3152 = vmul.f32 %v2923, %v3151
  %vm3153 = vcmp.eq.f32.partialorder %v2923, inf
  %v3154 = vsel %vm3153, %v2923, %v3152
  %vm3155 = vcmp.eq.f32.partialorder %v2923, 0.0
  %v3156 = vand.u32 %v2923, 2147483648
  %v3157 = vsel %vm3155, %v3156, %v3154
  %v3158 = vrsqrt.pop %v2924
  %v3159 = vmul.f32 %v2924, %v3158
  %vm3160 = vcmp.eq.f32.partialorder %v2924, inf
  %v3161 = vsel %vm3160, %v2924, %v3159
  %vm3162 = vcmp.eq.f32.partialorder %v2924, 0.0
  %v3163 = vand.u32 %v2924, 2147483648
  %v3164 = vsel %vm3162, %v3163, %v3161
  %v3165 = vrsqrt.pop %v2925
  %v3166 = vmul.f32 %v2925, %v3165
  %vm3167 = vcmp.eq.f32.partialorder %v2925, inf
  %v3168 = vsel %vm3167, %v2925, %v3166
  %vm3169 = vcmp.eq.f32.partialorder %v2925, 0.0
  %v3170 = vand.u32 %v2925, 2147483648
  %v3171 = vsel %vm3169, %v3170, %v3168
  %v3172 = vrsqrt.pop %v2926
  %v3173 = vmul.f32 %v2926, %v3172
  %vm3174 = vcmp.eq.f32.partialorder %v2926, inf
  %v3175 = vsel %vm3174, %v2926, %v3173
  %vm3176 = vcmp.eq.f32.partialorder %v2926, 0.0
  %v3177 = vand.u32 %v2926, 2147483648
  %v3178 = vsel %vm3176, %v3177, %v3175
  %v3179 = vrsqrt.pop %v2927
  %v3180 = vmul.f32 %v2927, %v3179
  %vm3181 = vcmp.eq.f32.partialorder %v2927, inf
  %v3182 = vsel %vm3181, %v2927, %v3180
  %vm3183 = vcmp.eq.f32.partialorder %v2927, 0.0
  %v3184 = vand.u32 %v2927, 2147483648
  %v3185 = vsel %vm3183, %v3184, %v3182
  %v3186 = vrsqrt.pop %v2928
  %v3187 = vmul.f32 %v2928, %v3186
  %vm3188 = vcmp.eq.f32.partialorder %v2928, inf
  %v3189 = vsel %vm3188, %v2928, %v3187
  %vm3190 = vcmp.eq.f32.partialorder %v2928, 0.0
  %v3191 = vand.u32 %v2928, 2147483648
  %v3192 = vsel %vm3190, %v3191, %v3189
  %v3193 = vrsqrt.pop %v2929
  %v3194 = vmul.f32 %v2929, %v3193
  %vm3195 = vcmp.eq.f32.partialorder %v2929, inf
  %v3196 = vsel %vm3195, %v2929, %v3194
  %vm3197 = vcmp.eq.f32.partialorder %v2929, 0.0
  %v3198 = vand.u32 %v2929, 2147483648
  %v3199 = vsel %vm3197, %v3198, %v3196
  %v3200 = vrsqrt.pop %v2930
  %v3201 = vmul.f32 %v2930, %v3200
  %vm3202 = vcmp.eq.f32.partialorder %v2930, inf
  %v3203 = vsel %vm3202, %v2930, %v3201
  %vm3204 = vcmp.eq.f32.partialorder %v2930, 0.0
  %v3205 = vand.u32 %v2930, 2147483648
  %v3206 = vsel %vm3204, %v3205, %v3203
  %v3207 = vrsqrt.pop %v2931
  %v3208 = vmul.f32 %v2931, %v3207
  %vm3209 = vcmp.eq.f32.partialorder %v2931, inf
  %v3210 = vsel %vm3209, %v2931, %v3208
  %vm3211 = vcmp.eq.f32.partialorder %v2931, 0.0
  %v3212 = vand.u32 %v2931, 2147483648
  %v3213 = vsel %vm3211, %v3212, %v3210
  %v3214 = vrsqrt.pop %v2932
  %v3215 = vmul.f32 %v2932, %v3214
  %vm3216 = vcmp.eq.f32.partialorder %v2932, inf
  %v3217 = vsel %vm3216, %v2932, %v3215
  %vm3218 = vcmp.eq.f32.partialorder %v2932, 0.0
  %v3219 = vand.u32 %v2932, 2147483648
  %v3220 = vsel %vm3218, %v3219, %v3217
  %v3221 = vrsqrt.pop %v2933
  %v3222 = vmul.f32 %v2933, %v3221
  %vm3223 = vcmp.eq.f32.partialorder %v2933, inf
  %v3224 = vsel %vm3223, %v2933, %v3222
  %vm3225 = vcmp.eq.f32.partialorder %v2933, 0.0
  %v3226 = vand.u32 %v2933, 2147483648
  %v3227 = vsel %vm3225, %v3226, %v3224
  %v3228 = vrsqrt.pop %v2934
  %v3229 = vmul.f32 %v2934, %v3228
  %vm3230 = vcmp.eq.f32.partialorder %v2934, inf
  %v3231 = vsel %vm3230, %v2934, %v3229
  %vm3232 = vcmp.eq.f32.partialorder %v2934, 0.0
  %v3233 = vand.u32 %v2934, 2147483648
  %v3234 = vsel %vm3232, %v3233, %v3231
  %v3235 = vrsqrt.pop %v2935
  %v3236 = vmul.f32 %v2935, %v3235
  %vm3237 = vcmp.eq.f32.partialorder %v2935, inf
  %v3238 = vsel %vm3237, %v2935, %v3236
  %vm3239 = vcmp.eq.f32.partialorder %v2935, 0.0
  %v3240 = vand.u32 %v2935, 2147483648
  %v3241 = vsel %vm3239, %v3240, %v3238
  %v3242 = vrsqrt.pop %v2936
  %v3243 = vmul.f32 %v2936, %v3242
  %vm3244 = vcmp.eq.f32.partialorder %v2936, inf
  %v3245 = vsel %vm3244, %v2936, %v3243
  %vm3246 = vcmp.eq.f32.partialorder %v2936, 0.0
  %v3247 = vand.u32 %v2936, 2147483648
  %v3248 = vsel %vm3246, %v3247, %v3245
  %v3249 = vrsqrt.pop %v2937
  %v3250 = vmul.f32 %v2937, %v3249
  %vm3251 = vcmp.eq.f32.partialorder %v2937, inf
  %v3252 = vsel %vm3251, %v2937, %v3250
  %vm3253 = vcmp.eq.f32.partialorder %v2937, 0.0
  %v3254 = vand.u32 %v2937, 2147483648
  %v3255 = vsel %vm3253, %v3254, %v3252
  %v3256 = vrsqrt.pop %v2938
  %v3257 = vmul.f32 %v2938, %v3256
  %vm3258 = vcmp.eq.f32.partialorder %v2938, inf
  %v3259 = vsel %vm3258, %v2938, %v3257
  %vm3260 = vcmp.eq.f32.partialorder %v2938, 0.0
  %v3261 = vand.u32 %v2938, 2147483648
  %v3262 = vsel %vm3260, %v3261, %v3259
  %v3263 = vrsqrt.pop %v2939
  %v3264 = vmul.f32 %v2939, %v3263
  %vm3265 = vcmp.eq.f32.partialorder %v2939, inf
  %v3266 = vsel %vm3265, %v2939, %v3264
  %vm3267 = vcmp.eq.f32.partialorder %v2939, 0.0
  %v3268 = vand.u32 %v2939, 2147483648
  %v3269 = vsel %vm3267, %v3268, %v3266
  %v3270 = vrsqrt.pop %v2940
  %v3271 = vmul.f32 %v2940, %v3270
  %vm3272 = vcmp.eq.f32.partialorder %v2940, inf
  %v3273 = vsel %vm3272, %v2940, %v3271
  %vm3274 = vcmp.eq.f32.partialorder %v2940, 0.0
  %v3275 = vand.u32 %v2940, 2147483648
  %v3276 = vsel %vm3274, %v3275, %v3273
  %v3277 = vrsqrt.pop %v2941
  %v3278 = vmul.f32 %v2941, %v3277
  %vm3279 = vcmp.eq.f32.partialorder %v2941, inf
  %v3280 = vsel %vm3279, %v2941, %v3278
  %vm3281 = vcmp.eq.f32.partialorder %v2941, 0.0
  %v3282 = vand.u32 %v2941, 2147483648
  %v3283 = vsel %vm3281, %v3282, %v3280
  %v3284 = vrsqrt.pop %v2942
  %v3285 = vmul.f32 %v2942, %v3284
  %vm3286 = vcmp.eq.f32.partialorder %v2942, inf
  %v3287 = vsel %vm3286, %v2942, %v3285
  %vm3288 = vcmp.eq.f32.partialorder %v2942, 0.0
  %v3289 = vand.u32 %v2942, 2147483648
  %v3290 = vsel %vm3288, %v3289, %v3287
  %v3291 = vrsqrt.pop %v2943
  %v3292 = vmul.f32 %v2943, %v3291
  %vm3293 = vcmp.eq.f32.partialorder %v2943, inf
  %v3294 = vsel %vm3293, %v2943, %v3292
  %vm3295 = vcmp.eq.f32.partialorder %v2943, 0.0
  %v3296 = vand.u32 %v2943, 2147483648
  %v3297 = vsel %vm3295, %v3296, %v3294
  %v3298 = vrsqrt.pop %v2944
  %v3299 = vmul.f32 %v2944, %v3298
  %vm3300 = vcmp.eq.f32.partialorder %v2944, inf
  %v3301 = vsel %vm3300, %v2944, %v3299
  %vm3302 = vcmp.eq.f32.partialorder %v2944, 0.0
  %v3303 = vand.u32 %v2944, 2147483648
  %v3304 = vsel %vm3302, %v3303, %v3301
  %v3305 = vrsqrt.pop %v2945
  %v3306 = vmul.f32 %v2945, %v3305
  %vm3307 = vcmp.eq.f32.partialorder %v2945, inf
  %v3308 = vsel %vm3307, %v2945, %v3306
  %vm3309 = vcmp.eq.f32.partialorder %v2945, 0.0
  %v3310 = vand.u32 %v2945, 2147483648
  %v3311 = vsel %vm3309, %v3310, %v3308
  %v3312 = vrsqrt.pop %v2946
  %v3313 = vmul.f32 %v2946, %v3312
  %vm3314 = vcmp.eq.f32.partialorder %v2946, inf
  %v3315 = vsel %vm3314, %v2946, %v3313
  %vm3316 = vcmp.eq.f32.partialorder %v2946, 0.0
  %v3317 = vand.u32 %v2946, 2147483648
  %v3318 = vsel %vm3316, %v3317, %v3315
  %v3319 = vrsqrt.pop %v2947
  %v3320 = vmul.f32 %v2947, %v3319
  %vm3321 = vcmp.eq.f32.partialorder %v2947, inf
  %v3322 = vsel %vm3321, %v2947, %v3320
  %vm3323 = vcmp.eq.f32.partialorder %v2947, 0.0
  %v3324 = vand.u32 %v2947, 2147483648
  %v3325 = vsel %vm3323, %v3324, %v3322
  %v3326 = vrsqrt.pop %v2948
  %v3327 = vmul.f32 %v2948, %v3326
  %vm3328 = vcmp.eq.f32.partialorder %v2948, inf
  %v3329 = vsel %vm3328, %v2948, %v3327
  %vm3330 = vcmp.eq.f32.partialorder %v2948, 0.0
  %v3331 = vand.u32 %v2948, 2147483648
  %v3332 = vsel %vm3330, %v3331, %v3329
  %v3333 = vrsqrt.pop %v2949
  %v3334 = vmul.f32 %v2949, %v3333
  %vm3335 = vcmp.eq.f32.partialorder %v2949, inf
  %v3336 = vsel %vm3335, %v2949, %v3334
  %vm3337 = vcmp.eq.f32.partialorder %v2949, 0.0
  %v3338 = vand.u32 %v2949, 2147483648
  %v3339 = vsel %vm3337, %v3338, %v3336
  %v3340 = vrsqrt.pop %v2950
  %v3341 = vmul.f32 %v2950, %v3340
  %vm3342 = vcmp.eq.f32.partialorder %v2950, inf
  %v3343 = vsel %vm3342, %v2950, %v3341
  %vm3344 = vcmp.eq.f32.partialorder %v2950, 0.0
  %v3345 = vand.u32 %v2950, 2147483648
  %v3346 = vsel %vm3344, %v3345, %v3343
  %v3347 = vrsqrt.pop %v2951
  %v3348 = vmul.f32 %v2951, %v3347
  %vm3349 = vcmp.eq.f32.partialorder %v2951, inf
  %v3350 = vsel %vm3349, %v2951, %v3348
  %vm3351 = vcmp.eq.f32.partialorder %v2951, 0.0
  %v3352 = vand.u32 %v2951, 2147483648
  %v3353 = vsel %vm3351, %v3352, %v3350
  %v3354 = vrsqrt.pop %v2952
  %v3355 = vmul.f32 %v2952, %v3354
  %vm3356 = vcmp.eq.f32.partialorder %v2952, inf
  %v3357 = vsel %vm3356, %v2952, %v3355
  %vm3358 = vcmp.eq.f32.partialorder %v2952, 0.0
  %v3359 = vand.u32 %v2952, 2147483648
  %v3360 = vsel %vm3358, %v3359, %v3357
  %v3361 = vrsqrt.pop %v2953
  %v3362 = vmul.f32 %v2953, %v3361
  %vm3363 = vcmp.eq.f32.partialorder %v2953, inf
  %v3364 = vsel %vm3363, %v2953, %v3362
  %vm3365 = vcmp.eq.f32.partialorder %v2953, 0.0
  %v3366 = vand.u32 %v2953, 2147483648
  %v3367 = vsel %vm3365, %v3366, %v3364
  %v3368 = vrsqrt.pop %v2954
  %v3369 = vmul.f32 %v2954, %v3368
  %vm3370 = vcmp.eq.f32.partialorder %v2954, inf
  %v3371 = vsel %vm3370, %v2954, %v3369
  %vm3372 = vcmp.eq.f32.partialorder %v2954, 0.0
  %v3373 = vand.u32 %v2954, 2147483648
  %v3374 = vsel %vm3372, %v3373, %v3371
  %v3375 = vrsqrt.pop %v2955
  %v3376 = vmul.f32 %v2955, %v3375
  %vm3377 = vcmp.eq.f32.partialorder %v2955, inf
  %v3378 = vsel %vm3377, %v2955, %v3376
  %vm3379 = vcmp.eq.f32.partialorder %v2955, 0.0
  %v3380 = vand.u32 %v2955, 2147483648
  %v3381 = vsel %vm3379, %v3380, %v3378
  %v3382 = vrsqrt.pop %v2956
  %v3383 = vmul.f32 %v2956, %v3382
  %vm3384 = vcmp.eq.f32.partialorder %v2956, inf
  %v3385 = vsel %vm3384, %v2956, %v3383
  %vm3386 = vcmp.eq.f32.partialorder %v2956, 0.0
  %v3387 = vand.u32 %v2956, 2147483648
  %v3388 = vsel %vm3386, %v3387, %v3385
  %v3389 = vrsqrt.pop %v2957
  %v3390 = vmul.f32 %v2957, %v3389
  %vm3391 = vcmp.eq.f32.partialorder %v2957, inf
  %v3392 = vsel %vm3391, %v2957, %v3390
  %vm3393 = vcmp.eq.f32.partialorder %v2957, 0.0
  %v3394 = vand.u32 %v2957, 2147483648
  %v3395 = vsel %vm3393, %v3394, %v3392
  %v3396 = vrsqrt.pop %v2958
  %v3397 = vmul.f32 %v2958, %v3396
  %vm3398 = vcmp.eq.f32.partialorder %v2958, inf
  %v3399 = vsel %vm3398, %v2958, %v3397
  %vm3400 = vcmp.eq.f32.partialorder %v2958, 0.0
  %v3401 = vand.u32 %v2958, 2147483648
  %v3402 = vsel %vm3400, %v3401, %v3399
  %v3403 = vrsqrt.pop %v2959
  %v3404 = vmul.f32 %v2959, %v3403
  %vm3405 = vcmp.eq.f32.partialorder %v2959, inf
  %v3406 = vsel %vm3405, %v2959, %v3404
  %vm3407 = vcmp.eq.f32.partialorder %v2959, 0.0
  %v3408 = vand.u32 %v2959, 2147483648
  %v3409 = vsel %vm3407, %v3408, %v3406
  %v3410 = vrsqrt.pop %v2960
  %v3411 = vmul.f32 %v2960, %v3410
  %vm3412 = vcmp.eq.f32.partialorder %v2960, inf
  %v3413 = vsel %vm3412, %v2960, %v3411
  %vm3414 = vcmp.eq.f32.partialorder %v2960, 0.0
  %v3415 = vand.u32 %v2960, 2147483648
  %v3416 = vsel %vm3414, %v3415, %v3413
  %v3417 = vrsqrt.pop %v2961
  %v3418 = vmul.f32 %v2961, %v3417
  %vm3419 = vcmp.eq.f32.partialorder %v2961, inf
  %v3420 = vsel %vm3419, %v2961, %v3418
  %vm3421 = vcmp.eq.f32.partialorder %v2961, 0.0
  %v3422 = vand.u32 %v2961, 2147483648
  %v3423 = vsel %vm3421, %v3422, %v3420
  %v3424 = vrsqrt.pop %v2962
  %v3425 = vmul.f32 %v2962, %v3424
  %vm3426 = vcmp.eq.f32.partialorder %v2962, inf
  %v3427 = vsel %vm3426, %v2962, %v3425
  %vm3428 = vcmp.eq.f32.partialorder %v2962, 0.0
  %v3429 = vand.u32 %v2962, 2147483648
  %v3430 = vsel %vm3428, %v3429, %v3427
  %v3431 = vrsqrt.pop %v2963
  %v3432 = vmul.f32 %v2963, %v3431
  %vm3433 = vcmp.eq.f32.partialorder %v2963, inf
  %v3434 = vsel %vm3433, %v2963, %v3432
  %vm3435 = vcmp.eq.f32.partialorder %v2963, 0.0
  %v3436 = vand.u32 %v2963, 2147483648
  %v3437 = vsel %vm3435, %v3436, %v3434
  %v3438 = vrsqrt.pop %v2964
  %v3439 = vmul.f32 %v2964, %v3438
  %vm3440 = vcmp.eq.f32.partialorder %v2964, inf
  %v3441 = vsel %vm3440, %v2964, %v3439
  %vm3442 = vcmp.eq.f32.partialorder %v2964, 0.0
  %v3443 = vand.u32 %v2964, 2147483648
  %v3444 = vsel %vm3442, %v3443, %v3441
  %v3445 = vrsqrt.pop %v2965
  %v3446 = vmul.f32 %v2965, %v3445
  %vm3447 = vcmp.eq.f32.partialorder %v2965, inf
  %v3448 = vsel %vm3447, %v2965, %v3446
  %vm3449 = vcmp.eq.f32.partialorder %v2965, 0.0
  %v3450 = vand.u32 %v2965, 2147483648
  %v3451 = vsel %vm3449, %v3450, %v3448
  %v3452 = vrsqrt.pop %v2966
  %v3453 = vmul.f32 %v2966, %v3452
  %vm3454 = vcmp.eq.f32.partialorder %v2966, inf
  %v3455 = vsel %vm3454, %v2966, %v3453
  %vm3456 = vcmp.eq.f32.partialorder %v2966, 0.0
  %v3457 = vand.u32 %v2966, 2147483648
  %v3458 = vsel %vm3456, %v3457, %v3455
  %v3459 = vrsqrt.pop %v2967
  %v3460 = vmul.f32 %v2967, %v3459
  %vm3461 = vcmp.eq.f32.partialorder %v2967, inf
  %v3462 = vsel %vm3461, %v2967, %v3460
  %vm3463 = vcmp.eq.f32.partialorder %v2967, 0.0
  %v3464 = vand.u32 %v2967, 2147483648
  %v3465 = vsel %vm3463, %v3464, %v3462
  %v3466 = vrsqrt.pop %v2968
  %v3467 = vmul.f32 %v2968, %v3466
  %vm3468 = vcmp.eq.f32.partialorder %v2968, inf
  %v3469 = vsel %vm3468, %v2968, %v3467
  %vm3470 = vcmp.eq.f32.partialorder %v2968, 0.0
  %v3471 = vand.u32 %v2968, 2147483648
  %v3472 = vsel %vm3470, %v3471, %v3469
  %v3473 = vrsqrt.pop %v2969
  %v3474 = vmul.f32 %v2969, %v3473
  %vm3475 = vcmp.eq.f32.partialorder %v2969, inf
  %v3476 = vsel %vm3475, %v2969, %v3474
  %vm3477 = vcmp.eq.f32.partialorder %v2969, 0.0
  %v3478 = vand.u32 %v2969, 2147483648
  %v3479 = vsel %vm3477, %v3478, %v3476
  %v3480 = vrsqrt.pop %v2970
  %v3481 = vmul.f32 %v2970, %v3480
  %vm3482 = vcmp.eq.f32.partialorder %v2970, inf
  %v3483 = vsel %vm3482, %v2970, %v3481
  %vm3484 = vcmp.eq.f32.partialorder %v2970, 0.0
  %v3485 = vand.u32 %v2970, 2147483648
  %v3486 = vsel %vm3484, %v3485, %v3483
  %v3487 = vrsqrt.pop %v2971
  %v3488 = vmul.f32 %v2971, %v3487
  %vm3489 = vcmp.eq.f32.partialorder %v2971, inf
  %v3490 = vsel %vm3489, %v2971, %v3488
  %vm3491 = vcmp.eq.f32.partialorder %v2971, 0.0
  %v3492 = vand.u32 %v2971, 2147483648
  %v3493 = vsel %vm3491, %v3492, %v3490
  %v3494 = vrsqrt.pop %v2972
  %v3495 = vmul.f32 %v2972, %v3494
  %vm3496 = vcmp.eq.f32.partialorder %v2972, inf
  %v3497 = vsel %vm3496, %v2972, %v3495
  %vm3498 = vcmp.eq.f32.partialorder %v2972, 0.0
  %v3499 = vand.u32 %v2972, 2147483648
  %v3500 = vsel %vm3498, %v3499, %v3497
  %v3501 = vrsqrt.pop %v2973
  %v3502 = vmul.f32 %v2973, %v3501
  %vm3503 = vcmp.eq.f32.partialorder %v2973, inf
  %v3504 = vsel %vm3503, %v2973, %v3502
  %vm3505 = vcmp.eq.f32.partialorder %v2973, 0.0
  %v3506 = vand.u32 %v2973, 2147483648
  %v3507 = vsel %vm3505, %v3506, %v3504
  %v3508 = vrsqrt.pop %v2974
  %v3509 = vmul.f32 %v2974, %v3508
  %vm3510 = vcmp.eq.f32.partialorder %v2974, inf
  %v3511 = vsel %vm3510, %v2974, %v3509
  %vm3512 = vcmp.eq.f32.partialorder %v2974, 0.0
  %v3513 = vand.u32 %v2974, 2147483648
  %v3514 = vsel %vm3512, %v3513, %v3511
  %v3515 = vrsqrt.pop %v2975
  %v3516 = vmul.f32 %v2975, %v3515
  %vm3517 = vcmp.eq.f32.partialorder %v2975, inf
  %v3518 = vsel %vm3517, %v2975, %v3516
  %vm3519 = vcmp.eq.f32.partialorder %v2975, 0.0
  %v3520 = vand.u32 %v2975, 2147483648
  %v3521 = vsel %vm3519, %v3520, %v3518
  %v3522 = vrsqrt.pop %v2976
  %v3523 = vmul.f32 %v2976, %v3522
  %vm3524 = vcmp.eq.f32.partialorder %v2976, inf
  %v3525 = vsel %vm3524, %v2976, %v3523
  %vm3526 = vcmp.eq.f32.partialorder %v2976, 0.0
  %v3527 = vand.u32 %v2976, 2147483648
  %v3528 = vsel %vm3526, %v3527, %v3525
  %v3529 = vrsqrt.pop %v2977
  %v3530 = vmul.f32 %v2977, %v3529
  %vm3531 = vcmp.eq.f32.partialorder %v2977, inf
  %v3532 = vsel %vm3531, %v2977, %v3530
  %vm3533 = vcmp.eq.f32.partialorder %v2977, 0.0
  %v3534 = vand.u32 %v2977, 2147483648
  %v3535 = vsel %vm3533, %v3534, %v3532
  %v3536 = vrsqrt.pop %v2978
  %v3537 = vmul.f32 %v2978, %v3536
  %vm3538 = vcmp.eq.f32.partialorder %v2978, inf
  %v3539 = vsel %vm3538, %v2978, %v3537
  %vm3540 = vcmp.eq.f32.partialorder %v2978, 0.0
  %v3541 = vand.u32 %v2978, 2147483648
  %v3542 = vsel %vm3540, %v3541, %v3539
  %v3543 = vrsqrt.pop %v2979
  %v3544 = vmul.f32 %v2979, %v3543
  %vm3545 = vcmp.eq.f32.partialorder %v2979, inf
  %v3546 = vsel %vm3545, %v2979, %v3544
  %vm3547 = vcmp.eq.f32.partialorder %v2979, 0.0
  %v3548 = vand.u32 %v2979, 2147483648
  %v3549 = vsel %vm3547, %v3548, %v3546
  %v3550 = vrsqrt.pop %v2980
  %v3551 = vmul.f32 %v2980, %v3550
  %vm3552 = vcmp.eq.f32.partialorder %v2980, inf
  %v3553 = vsel %vm3552, %v2980, %v3551
  %vm3554 = vcmp.eq.f32.partialorder %v2980, 0.0
  %v3555 = vand.u32 %v2980, 2147483648
  %v3556 = vsel %vm3554, %v3555, %v3553
  %v3557 = vrsqrt.pop %v2981
  %v3558 = vmul.f32 %v2981, %v3557
  %vm3559 = vcmp.eq.f32.partialorder %v2981, inf
  %v3560 = vsel %vm3559, %v2981, %v3558
  %vm3561 = vcmp.eq.f32.partialorder %v2981, 0.0
  %v3562 = vand.u32 %v2981, 2147483648
  %v3563 = vsel %vm3561, %v3562, %v3560
  %v3564 = vrsqrt.pop %v2982
  %v3565 = vmul.f32 %v2982, %v3564
  %vm3566 = vcmp.eq.f32.partialorder %v2982, inf
  %v3567 = vsel %vm3566, %v2982, %v3565
  %vm3568 = vcmp.eq.f32.partialorder %v2982, 0.0
  %v3569 = vand.u32 %v2982, 2147483648
  %v3570 = vsel %vm3568, %v3569, %v3567
  %v3571 = vrsqrt.pop %v2983
  %v3572 = vmul.f32 %v2983, %v3571
  %vm3573 = vcmp.eq.f32.partialorder %v2983, inf
  %v3574 = vsel %vm3573, %v2983, %v3572
  %vm3575 = vcmp.eq.f32.partialorder %v2983, 0.0
  %v3576 = vand.u32 %v2983, 2147483648
  %v3577 = vsel %vm3575, %v3576, %v3574
  %v3578 = vrsqrt.pop %v2984
  %v3579 = vmul.f32 %v2984, %v3578
  %vm3580 = vcmp.eq.f32.partialorder %v2984, inf
  %v3581 = vsel %vm3580, %v2984, %v3579
  %vm3582 = vcmp.eq.f32.partialorder %v2984, 0.0
  %v3583 = vand.u32 %v2984, 2147483648
  %v3584 = vsel %vm3582, %v3583, %v3581
  %v3585 = vrsqrt.pop %v2985
  %v3586 = vmul.f32 %v2985, %v3585
  %vm3587 = vcmp.eq.f32.partialorder %v2985, inf
  %v3588 = vsel %vm3587, %v2985, %v3586
  %vm3589 = vcmp.eq.f32.partialorder %v2985, 0.0
  %v3590 = vand.u32 %v2985, 2147483648
  %v3591 = vsel %vm3589, %v3590, %v3588
  %v3592 = vrsqrt.pop %v2986
  %v3593 = vmul.f32 %v2986, %v3592
  %vm3594 = vcmp.eq.f32.partialorder %v2986, inf
  %v3595 = vsel %vm3594, %v2986, %v3593
  %vm3596 = vcmp.eq.f32.partialorder %v2986, 0.0
  %v3597 = vand.u32 %v2986, 2147483648
  %v3598 = vsel %vm3596, %v3597, %v3595
  %v3599 = vrsqrt.pop %v2987
  %v3600 = vmul.f32 %v2987, %v3599
  %vm3601 = vcmp.eq.f32.partialorder %v2987, inf
  %v3602 = vsel %vm3601, %v2987, %v3600
  %vm3603 = vcmp.eq.f32.partialorder %v2987, 0.0
  %v3604 = vand.u32 %v2987, 2147483648
  %v3605 = vsel %vm3603, %v3604, %v3602
  %v3606 = vrsqrt.pop %v2988
  %v3607 = vmul.f32 %v2988, %v3606
  %vm3608 = vcmp.eq.f32.partialorder %v2988, inf
  %v3609 = vsel %vm3608, %v2988, %v3607
  %vm3610 = vcmp.eq.f32.partialorder %v2988, 0.0
  %v3611 = vand.u32 %v2988, 2147483648
  %v3612 = vsel %vm3610, %v3611, %v3609
  %v3613 = vrsqrt.pop %v2989
  %v3614 = vmul.f32 %v2989, %v3613
  %vm3615 = vcmp.eq.f32.partialorder %v2989, inf
  %v3616 = vsel %vm3615, %v2989, %v3614
  %vm3617 = vcmp.eq.f32.partialorder %v2989, 0.0
  %v3618 = vand.u32 %v2989, 2147483648
  %v3619 = vsel %vm3617, %v3618, %v3616
  %v3620 = vrsqrt.pop %v2990
  %v3621 = vmul.f32 %v2990, %v3620
  %vm3622 = vcmp.eq.f32.partialorder %v2990, inf
  %v3623 = vsel %vm3622, %v2990, %v3621
  %vm3624 = vcmp.eq.f32.partialorder %v2990, 0.0
  %v3625 = vand.u32 %v2990, 2147483648
  %v3626 = vsel %vm3624, %v3625, %v3623
  %v3627 = vrsqrt.pop %v2991
  %v3628 = vmul.f32 %v2991, %v3627
  %vm3629 = vcmp.eq.f32.partialorder %v2991, inf
  %v3630 = vsel %vm3629, %v2991, %v3628
  %vm3631 = vcmp.eq.f32.partialorder %v2991, 0.0
  %v3632 = vand.u32 %v2991, 2147483648
  %v3633 = vsel %vm3631, %v3632, %v3630
  %v3634 = vrsqrt.pop %v2992
  %v3635 = vmul.f32 %v2992, %v3634
  %vm3636 = vcmp.eq.f32.partialorder %v2992, inf
  %v3637 = vsel %vm3636, %v2992, %v3635
  %vm3638 = vcmp.eq.f32.partialorder %v2992, 0.0
  %v3639 = vand.u32 %v2992, 2147483648
  %v3640 = vsel %vm3638, %v3639, %v3637
  %v3641 = vrsqrt.pop %v2993
  %v3642 = vmul.f32 %v2993, %v3641
  %vm3643 = vcmp.eq.f32.partialorder %v2993, inf
  %v3644 = vsel %vm3643, %v2993, %v3642
  %vm3645 = vcmp.eq.f32.partialorder %v2993, 0.0
  %v3646 = vand.u32 %v2993, 2147483648
  %v3647 = vsel %vm3645, %v3646, %v3644
  %v3648 = vrsqrt.pop %v2994
  %v3649 = vmul.f32 %v2994, %v3648
  %vm3650 = vcmp.eq.f32.partialorder %v2994, inf
  %v3651 = vsel %vm3650, %v2994, %v3649
  %vm3652 = vcmp.eq.f32.partialorder %v2994, 0.0
  %v3653 = vand.u32 %v2994, 2147483648
  %v3654 = vsel %vm3652, %v3653, %v3651
  %v3655 = vrsqrt.pop %v2995
  %v3656 = vmul.f32 %v2995, %v3655
  %vm3657 = vcmp.eq.f32.partialorder %v2995, inf
  %v3658 = vsel %vm3657, %v2995, %v3656
  %vm3659 = vcmp.eq.f32.partialorder %v2995, 0.0
  %v3660 = vand.u32 %v2995, 2147483648
  %v3661 = vsel %vm3659, %v3660, %v3658
  %v3662 = vrsqrt.pop %v2996
  %v3663 = vmul.f32 %v2996, %v3662
  %vm3664 = vcmp.eq.f32.partialorder %v2996, inf
  %v3665 = vsel %vm3664, %v2996, %v3663
  %vm3666 = vcmp.eq.f32.partialorder %v2996, 0.0
  %v3667 = vand.u32 %v2996, 2147483648
  %v3668 = vsel %vm3666, %v3667, %v3665
  %v3669 = vpack.c.bf16 %v3024, %v3003
  %v3670 = vpack.c.bf16 %v3031, %v3010
  %v3671 = vpack.c.bf16 %v3038, %v3017
  %v3672 = vpack.c.bf16 %v3066, %v3045
  %v3673 = vpack.c.bf16 %v3073, %v3052
  %v3674 = vpack.c.bf16 %v3080, %v3059
  %v3675 = vpack.c.bf16 %v3108, %v3087
  %v3676 = vpack.c.bf16 %v3115, %v3094
  %v3677 = vpack.c.bf16 %v3122, %v3101
  %v3678 = vpack.c.bf16 %v3150, %v3129
  %v3679 = vpack.c.bf16 %v3157, %v3136
  %v3680 = vpack.c.bf16 %v3164, %v3143
  %v3681 = vpack.c.bf16 %v3192, %v3171
  %v3682 = vpack.c.bf16 %v3199, %v3178
  %v3683 = vpack.c.bf16 %v3206, %v3185
  %v3684 = vpack.c.bf16 %v3234, %v3213
  %v3685 = vpack.c.bf16 %v3241, %v3220
  %v3686 = vpack.c.bf16 %v3248, %v3227
  %v3687 = vpack.c.bf16 %v3276, %v3255
  %v3688 = vpack.c.bf16 %v3283, %v3262
  %v3689 = vpack.c.bf16 %v3290, %v3269
  %v3690 = vpack.c.bf16 %v3318, %v3297
  %v3691 = vpack.c.bf16 %v3325, %v3304
  %v3692 = vpack.c.bf16 %v3332, %v3311
  %v3693 = vpack.c.bf16 %v3360, %v3339
  %v3694 = vpack.c.bf16 %v3367, %v3346
  %v3695 = vpack.c.bf16 %v3374, %v3353
  %v3696 = vpack.c.bf16 %v3402, %v3381
  %v3697 = vpack.c.bf16 %v3409, %v3388
  %v3698 = vpack.c.bf16 %v3416, %v3395
  %v3699 = vpack.c.bf16 %v3444, %v3423
  %v3700 = vpack.c.bf16 %v3451, %v3430
  %v3701 = vpack.c.bf16 %v3458, %v3437
  %v3702 = vpack.c.bf16 %v3486, %v3465
  %v3703 = vpack.c.bf16 %v3493, %v3472
  %v3704 = vpack.c.bf16 %v3500, %v3479
  %v3705 = vpack.c.bf16 %v3528, %v3507
  %v3706 = vpack.c.bf16 %v3535, %v3514
  %v3707 = vpack.c.bf16 %v3542, %v3521
  %v3708 = vpack.c.bf16 %v3570, %v3549
  %v3709 = vpack.c.bf16 %v3577, %v3556
  %v3710 = vpack.c.bf16 %v3584, %v3563
  %v3711 = vpack.c.bf16 %v3612, %v3591
  %v3712 = vpack.c.bf16 %v3619, %v3598
  %v3713 = vpack.c.bf16 %v3626, %v3605
  %v3714 = vpack.c.bf16 %v3654, %v3633
  %v3715 = vpack.c.bf16 %v3661, %v3640
  %v3716 = vpack.c.bf16 %v3668, %v3647
  %v3717 = vld [vmem:[%s2] sm:$0xf]
  %v3718 = vld [vmem:[%s2 + $0x4] sm:$0xf]
  %v3719 = vld [vmem:[%s2 + $0x8] sm:$0xf]
  %v3720 = vld [vmem:[%s2 + $0xc] sm:$0xf]
  %v3721 = vld [vmem:[%s2 + $0x10] sm:$0xf]
  %v3722 = vld [vmem:[%s2 + $0x14] sm:$0xf]
  %v3723 = vld [vmem:[%s2 + $0x18] sm:$0xf]
  %v3724 = vld [vmem:[%s2 + $0x1c] sm:$0xf]
  %v3725 = vld [vmem:[%s2 + $0x20] sm:$0xf]
  %v3726 = vld [vmem:[%s2 + $0x24] sm:$0xf]
  %v3727 = vld [vmem:[%s2 + $0x28] sm:$0xf]
  %v3728 = vld [vmem:[%s2 + $0x2c] sm:$0xf]
  %v3729 = vld [vmem:[%s2 + $0x30] sm:$0xf]
  %v3730 = vld [vmem:[%s2 + $0x34] sm:$0xf]
  %v3731 = vld [vmem:[%s2 + $0x38] sm:$0xf]
  %v3732 = vld [vmem:[%s2 + $0x3c] sm:$0xf]
  %v3733 = vld [vmem:[%s2 + $0x40] sm:$0xf]
  %v3734 = vld [vmem:[%s2 + $0x44] sm:$0xf]
  %v3735 = vld [vmem:[%s2 + $0x48] sm:$0xf]
  %v3736 = vld [vmem:[%s2 + $0x4c] sm:$0xf]
  %v3737 = vld [vmem:[%s2 + $0x50] sm:$0xf]
  %v3738 = vld [vmem:[%s2 + $0x54] sm:$0xf]
  %v3739 = vld [vmem:[%s2 + $0x58] sm:$0xf]
  %v3740 = vld [vmem:[%s2 + $0x5c] sm:$0xf]
  %v3741 = vld [vmem:[%s2 + $0x60] sm:$0xf]
  %v3742 = vld [vmem:[%s2 + $0x64] sm:$0xf]
  %v3743 = vld [vmem:[%s2 + $0x68] sm:$0xf]
  %v3744 = vld [vmem:[%s2 + $0x6c] sm:$0xf]
  %v3745 = vld [vmem:[%s2 + $0x70] sm:$0xf]
  %v3746 = vld [vmem:[%s2 + $0x74] sm:$0xf]
  %v3747 = vld [vmem:[%s2 + $0x78] sm:$0xf]
  %v3748 = vld [vmem:[%s2 + $0x7c] sm:$0xf]
  %v3749 = vld [vmem:[%s2 + $0x80] sm:$0xf]
  %v3750 = vld [vmem:[%s2 + $0x84] sm:$0xf]
  %v3751 = vld [vmem:[%s2 + $0x88] sm:$0xf]
  %v3752 = vld [vmem:[%s2 + $0x8c] sm:$0xf]
  %v3753 = vld [vmem:[%s2 + $0x90] sm:$0xf]
  %v3754 = vld [vmem:[%s2 + $0x94] sm:$0xf]
  %v3755 = vld [vmem:[%s2 + $0x98] sm:$0xf]
  %v3756 = vld [vmem:[%s2 + $0x9c] sm:$0xf]
  %v3757 = vld [vmem:[%s2 + $0xa0] sm:$0xf]
  %v3758 = vld [vmem:[%s2 + $0xa4] sm:$0xf]
  %v3759 = vld [vmem:[%s2 + $0xa8] sm:$0xf]
  %v3760 = vld [vmem:[%s2 + $0xac] sm:$0xf]
  %v3761 = vld [vmem:[%s2 + $0xb0] sm:$0xf]
  %v3762 = vld [vmem:[%s2 + $0xb4] sm:$0xf]
  %v3763 = vld [vmem:[%s2 + $0xb8] sm:$0xf]
  %v3764 = vld [vmem:[%s2 + $0xbc] sm:$0xf]
  %v3813 = vunpack.c.l.b16 %v3717
  %v3814 = vunpack.c.l.b16 %v3718
  %v3815 = vunpack.c.l.b16 %v3719
  %v3816 = vunpack.c.l.b16 %v3720
  %v3817 = vunpack.c.l.b16 %v3721
  %v3818 = vunpack.c.l.b16 %v3722
  %v3819 = vunpack.c.l.b16 %v3723
  %v3820 = vunpack.c.l.b16 %v3724
  %v3821 = vunpack.c.l.b16 %v3725
  %v3822 = vunpack.c.l.b16 %v3726
  %v3823 = vunpack.c.l.b16 %v3727
  %v3824 = vunpack.c.l.b16 %v3728
  %v3825 = vunpack.c.l.b16 %v3729
  %v3826 = vunpack.c.l.b16 %v3730
  %v3827 = vunpack.c.l.b16 %v3731
  %v3828 = vunpack.c.l.b16 %v3732
  %v3829 = vunpack.c.l.b16 %v3733
  %v3830 = vunpack.c.l.b16 %v3734
  %v3831 = vunpack.c.l.b16 %v3735
  %v3832 = vunpack.c.l.b16 %v3736
  %v3833 = vunpack.c.l.b16 %v3737
  %v3834 = vunpack.c.l.b16 %v3738
  %v3835 = vunpack.c.l.b16 %v3739
  %v3836 = vunpack.c.l.b16 %v3740
  %v3837 = vunpack.c.l.b16 %v3741
  %v3838 = vunpack.c.l.b16 %v3742
  %v3839 = vunpack.c.l.b16 %v3743
  %v3840 = vunpack.c.l.b16 %v3744
  %v3841 = vunpack.c.l.b16 %v3745
  %v3842 = vunpack.c.l.b16 %v3746
  %v3843 = vunpack.c.l.b16 %v3747
  %v3844 = vunpack.c.l.b16 %v3748
  %v3845 = vunpack.c.l.b16 %v3749
  %v3846 = vunpack.c.l.b16 %v3750
  %v3847 = vunpack.c.l.b16 %v3751
  %v3848 = vunpack.c.l.b16 %v3752
  %v3849 = vunpack.c.l.b16 %v3753
  %v3850 = vunpack.c.l.b16 %v3754
  %v3851 = vunpack.c.l.b16 %v3755
  %v3852 = vunpack.c.l.b16 %v3756
  %v3853 = vunpack.c.l.b16 %v3757
  %v3854 = vunpack.c.l.b16 %v3758
  %v3855 = vunpack.c.l.b16 %v3759
  %v3856 = vunpack.c.l.b16 %v3760
  %v3857 = vunpack.c.l.b16 %v3761
  %v3858 = vunpack.c.l.b16 %v3762
  %v3859 = vunpack.c.l.b16 %v3763
  %v3860 = vunpack.c.l.b16 %v3764
  %v3861 = vpack.c.b16 %v3814, %v3813
  %v3862 = vpack.c.b16 %v3816, %v3815
  %v3863 = vpack.c.b16 %v3818, %v3817
  %v3864 = vpack.c.b16 %v3820, %v3819
  %v3865 = vpack.c.b16 %v3822, %v3821
  %v3866 = vpack.c.b16 %v3824, %v3823
  %v3867 = vpack.c.b16 %v3826, %v3825
  %v3868 = vpack.c.b16 %v3828, %v3827
  %v3869 = vpack.c.b16 %v3830, %v3829
  %v3870 = vpack.c.b16 %v3832, %v3831
  %v3871 = vpack.c.b16 %v3834, %v3833
  %v3872 = vpack.c.b16 %v3836, %v3835
  %v3873 = vpack.c.b16 %v3838, %v3837
  %v3874 = vpack.c.b16 %v3840, %v3839
  %v3875 = vpack.c.b16 %v3842, %v3841
  %v3876 = vpack.c.b16 %v3844, %v3843
  %v3877 = vpack.c.b16 %v3846, %v3845
  %v3878 = vpack.c.b16 %v3848, %v3847
  %v3879 = vpack.c.b16 %v3850, %v3849
  %v3880 = vpack.c.b16 %v3852, %v3851
  %v3881 = vpack.c.b16 %v3854, %v3853
  %v3882 = vpack.c.b16 %v3856, %v3855
  %v3883 = vpack.c.b16 %v3858, %v3857
  %v3884 = vpack.c.b16 %v3860, %v3859
  %3909 = vmatprep.subr.bf16.mxu0 0
  %3910 = vmatpush1.bf16.msra.mxu0 %v3861
  %3911 = vmatprep.subr.bf16.mxu0 0
  %3912 = vmatpush1.bf16.msra.mxu0 %v3862
  %3913 = vmatprep.subr.bf16.mxu0 0
  %3914 = vmatpush1.bf16.msra.mxu0 %v3863
  %3915 = vmatprep.subr.bf16.mxu0 0
  %3916 = vmatpush1.bf16.msra.mxu0 %v3864
  %3917 = vmatprep.subr.bf16.mxu0 0
  %3918 = vmatpush1.bf16.msra.mxu0 %v3865
  %3919 = vmatprep.subr.bf16.mxu0 0
  %3920 = vmatpush1.bf16.msra.mxu0 %v3866
  %3921 = vmatprep.subr.bf16.mxu0 0
  %3922 = vmatpush1.bf16.msra.mxu0 %v3867
  %3923 = vmatprep.subr.bf16.mxu0 0
  %3924 = vmatpush1.bf16.msra.mxu0 %v3868
  %3925 = vmatprep.subr.bf16.mxu0 0
  %3926 = vmatpush1.bf16.msra.mxu0 %v3869
  %3927 = vmatprep.subr.bf16.mxu0 0
  %3928 = vmatpush1.bf16.msra.mxu0 %v3870
  %3929 = vmatprep.subr.bf16.mxu0 0
  %3930 = vmatpush1.bf16.msra.mxu0 %v3871
  %3931 = vmatprep.subr.bf16.mxu0 0
  %3932 = vmatpush1.bf16.msra.mxu0 %v3872
  %3933 = vmatprep.subr.bf16.mxu0 0
  %3934 = vmatpush1.bf16.msra.mxu0 %v3873
  %3935 = vmatprep.subr.bf16.mxu0 0
  %3936 = vmatpush1.bf16.msra.mxu0 %v3874
  %3937 = vmatprep.subr.bf16.mxu0 0
  %3938 = vmatpush1.bf16.msra.mxu0 %v3875
  %3939 = vmatprep.subr.bf16.mxu0 0
  %3940 = vmatpush1.bf16.msra.mxu0 %v3876
  %3941 = vmatprep.mubr.bf16.mxu0 %v3670
  %3942 = vmatmul.mubr.bf16.gmra.mrb[0].mxu0 %v3669
  %v3943 = vpop.f32.mrb[0].mxu0
  %v3944 = vadd.f32 0.0, %v3943
  %v3945 = vpop.f32.mrb[0].mxu0
  %v3946 = vpop.f32.mrb[0].mxu0
  %v3947 = vadd.f32 0.0, %v3946
  %v3948 = vpop.f32.mrb[0].mxu0
  %3949 = vmatprep.mubr.bf16.mxu0 %v3673
  %3950 = vmatmul.mubr.bf16.gmra.mrb[0].mxu0 %v3672
  %v3951 = vpop.f32.mrb[0].mxu0
  %v3952 = vadd.f32 0.0, %v3951
  %v3953 = vpop.f32.mrb[0].mxu0
  %v3954 = vpop.f32.mrb[0].mxu0
  %v3955 = vadd.f32 0.0, %v3954
  %v3956 = vpop.f32.mrb[0].mxu0
  %3957 = vmatprep.mubr.bf16.mxu0 %v3676
  %3958 = vmatmul.mubr.bf16.gmra.mrb[0].mxu0 %v3675
  %v3959 = vpop.f32.mrb[0].mxu0
  %v3960 = vadd.f32 0.0, %v3959
  %v3961 = vpop.f32.mrb[0].mxu0
  %v3962 = vpop.f32.mrb[0].mxu0
  %v3963 = vadd.f32 0.0, %v3962
  %v3964 = vpop.f32.mrb[0].mxu0
  %3965 = vmatprep.mubr.bf16.mxu0 %v3679
  %3966 = vmatmul.mubr.bf16.gmra.mrb[0].mxu0 %v3678
  %v3967 = vpop.f32.mrb[0].mxu0
  %v3968 = vadd.f32 0.0, %v3967
  %v3969 = vpop.f32.mrb[0].mxu0
  %v3970 = vpop.f32.mrb[0].mxu0
  %v3971 = vadd.f32 0.0, %v3970
  %v3972 = vpop.f32.mrb[0].mxu0
  %3973 = vmatprep.mubr.bf16.mxu0 %v3682
  %3974 = vmatmul.mubr.bf16.gmra.mrb[0].mxu0 %v3681
  %v3975 = vpop.f32.mrb[0].mxu0
  %v3976 = vadd.f32 0.0, %v3975
  %v3977 = vpop.f32.mrb[0].mxu0
  %v3978 = vpop.f32.mrb[0].mxu0
  %v3979 = vadd.f32 0.0, %v3978
  %v3980 = vpop.f32.mrb[0].mxu0
  %3981 = vmatprep.mubr.bf16.mxu0 %v3685
  %3982 = vmatmul.mubr.bf16.gmra.mrb[0].mxu0 %v3684
  %v3983 = vpop.f32.mrb[0].mxu0
  %v3984 = vadd.f32 0.0, %v3983
  %v3985 = vpop.f32.mrb[0].mxu0
  %v3986 = vpop.f32.mrb[0].mxu0
  %v3987 = vadd.f32 0.0, %v3986
  %v3988 = vpop.f32.mrb[0].mxu0
  %3989 = vmatprep.mubr.bf16.mxu0 %v3688
  %3990 = vmatmul.mubr.bf16.gmra.mrb[0].mxu0 %v3687
  %v3991 = vpop.f32.mrb[0].mxu0
  %v3992 = vadd.f32 0.0, %v3991
  %v3993 = vpop.f32.mrb[0].mxu0
  %v3994 = vpop.f32.mrb[0].mxu0
  %v3995 = vadd.f32 0.0, %v3994
  %v3996 = vpop.f32.mrb[0].mxu0
  %3997 = vmatprep.mubr.bf16.mxu0 %v3691
  %3998 = vmatmul.mubr.bf16.gmra.mrb[0].mxu0 %v3690
  %v3999 = vpop.f32.mrb[0].mxu0
  %v4000 = vadd.f32 0.0, %v3999
  %v4001 = vpop.f32.mrb[0].mxu0
  %v4002 = vpop.f32.mrb[0].mxu0
  %v4003 = vadd.f32 0.0, %v4002
  %v4004 = vpop.f32.mrb[0].mxu0
  %4005 = vmatprep.mubr.bf16.mxu0 %v3694
  %4006 = vmatmul.mubr.bf16.gmra.mrb[0].mxu0 %v3693
  %v4007 = vpop.f32.mrb[0].mxu0
  %v4008 = vadd.f32 0.0, %v4007
  %v4009 = vpop.f32.mrb[0].mxu0
  %v4010 = vpop.f32.mrb[0].mxu0
  %v4011 = vadd.f32 0.0, %v4010
  %v4012 = vpop.f32.mrb[0].mxu0
  %4013 = vmatprep.mubr.bf16.mxu0 %v3697
  %4014 = vmatmul.mubr.bf16.gmra.mrb[0].mxu0 %v3696
  %v4015 = vpop.f32.mrb[0].mxu0
  %v4016 = vadd.f32 0.0, %v4015
  %v4017 = vpop.f32.mrb[0].mxu0
  %v4018 = vpop.f32.mrb[0].mxu0
  %v4019 = vadd.f32 0.0, %v4018
  %v4020 = vpop.f32.mrb[0].mxu0
  %4021 = vmatprep.mubr.bf16.mxu0 %v3700
  %4022 = vmatmul.mubr.bf16.gmra.mrb[0].mxu0 %v3699
  %v4023 = vpop.f32.mrb[0].mxu0
  %v4024 = vadd.f32 0.0, %v4023
  %v4025 = vpop.f32.mrb[0].mxu0
  %v4026 = vpop.f32.mrb[0].mxu0
  %v4027 = vadd.f32 0.0, %v4026
  %v4028 = vpop.f32.mrb[0].mxu0
  %4029 = vmatprep.mubr.bf16.mxu0 %v3703
  %4030 = vmatmul.mubr.bf16.gmra.mrb[0].mxu0 %v3702
  %v4031 = vpop.f32.mrb[0].mxu0
  %v4032 = vadd.f32 0.0, %v4031
  %v4033 = vpop.f32.mrb[0].mxu0
  %v4034 = vpop.f32.mrb[0].mxu0
  %v4035 = vadd.f32 0.0, %v4034
  %v4036 = vpop.f32.mrb[0].mxu0
  %4037 = vmatprep.mubr.bf16.mxu0 %v3706
  %4038 = vmatmul.mubr.bf16.gmra.mrb[0].mxu0 %v3705
  %v4039 = vpop.f32.mrb[0].mxu0
  %v4040 = vadd.f32 0.0, %v4039
  %v4041 = vpop.f32.mrb[0].mxu0
  %v4042 = vpop.f32.mrb[0].mxu0
  %v4043 = vadd.f32 0.0, %v4042
  %v4044 = vpop.f32.mrb[0].mxu0
  %4045 = vmatprep.mubr.bf16.mxu0 %v3709
  %4046 = vmatmul.mubr.bf16.gmra.mrb[0].mxu0 %v3708
  %v4047 = vpop.f32.mrb[0].mxu0
  %v4048 = vadd.f32 0.0, %v4047
  %v4049 = vpop.f32.mrb[0].mxu0
  %v4050 = vpop.f32.mrb[0].mxu0
  %v4051 = vadd.f32 0.0, %v4050
  %v4052 = vpop.f32.mrb[0].mxu0
  %4053 = vmatprep.mubr.bf16.mxu0 %v3712
  %4054 = vmatmul.mubr.bf16.gmra.mrb[0].mxu0 %v3711
  %v4055 = vpop.f32.mrb[0].mxu0
  %v4056 = vadd.f32 0.0, %v4055
  %v4057 = vpop.f32.mrb[0].mxu0
  %v4058 = vpop.f32.mrb[0].mxu0
  %v4059 = vadd.f32 0.0, %v4058
  %v4060 = vpop.f32.mrb[0].mxu0
  %4061 = vmatprep.mubr.bf16.mxu0 %v3715
  %4062 = vmatmul.mubr.bf16.gmra.mrb[0].mxu0 %v3714
  %v4063 = vpop.f32.mrb[0].mxu0
  %v4064 = vadd.f32 0.0, %v4063
  %v4065 = vpop.f32.mrb[0].mxu0
  %v4066 = vpop.f32.mrb[0].mxu0
  %v4067 = vadd.f32 0.0, %v4066
  %v4068 = vpop.f32.mrb[0].mxu0
  %4069 = vdwg.mxu0
  %4070 = vmatprep.subr.bf16.mxu0 0
  %4071 = vmatpush1.bf16.msra.mxu0 %v3877
  %4072 = vmatprep.subr.bf16.mxu0 0
  %4073 = vmatpush1.bf16.msra.mxu0 %v3878
  %4074 = vmatprep.subr.bf16.mxu0 0
  %4075 = vmatpush1.bf16.msra.mxu0 %v3879
  %4076 = vmatprep.subr.bf16.mxu0 0
  %4077 = vmatpush1.bf16.msra.mxu0 %v3880
  %4078 = vmatprep.subr.bf16.mxu0 0
  %4079 = vmatpush1.bf16.msra.mxu0 %v3881
  %4080 = vmatprep.subr.bf16.mxu0 0
  %4081 = vmatpush1.bf16.msra.mxu0 %v3882
  %4082 = vmatprep.subr.bf16.mxu0 0
  %4083 = vmatpush1.bf16.msra.mxu0 %v3883
  %4084 = vmatprep.subr.bf16.mxu0 0
  %4085 = vmatpush1.bf16.msra.mxu0 %v3884
  %4086 = vmatprep.subr.bf16.mxu0 0
  %4087 = vmatpush1.bf16.msra.mxu0 0
  %4088 = vmatprep.subr.bf16.mxu0 0
  %4089 = vmatpush1.bf16.msra.mxu0 0
  %4090 = vmatprep.subr.bf16.mxu0 0
  %4091 = vmatpush1.bf16.msra.mxu0 0
  %4092 = vmatprep.subr.bf16.mxu0 0
  %4093 = vmatpush1.bf16.msra.mxu0 0
  %4094 = vmatprep.subr.bf16.mxu0 0
  %4095 = vmatpush1.bf16.msra.mxu0 0
  %4096 = vmatprep.subr.bf16.mxu0 0
  %4097 = vmatpush1.bf16.msra.mxu0 0
  %4098 = vmatprep.subr.bf16.mxu0 0
  %4099 = vmatpush1.bf16.msra.mxu0 0
  %4100 = vmatprep.subr.bf16.mxu0 0
  %4101 = vmatpush1.bf16.msra.mxu0 0
  %4102 = vmatprep.mubr.bf16.mxu0 0
  %4103 = vmatmul.mubr.bf16.gmra.mrb[0].mxu0 %v3671
  %v4104 = vpop.f32.mrb[0].mxu0
  %v4105 = vadd.f32 %v3944, %v4104
  %v4106 = vpop.f32.mrb[0].mxu0
  %v4107 = vpop.f32.mrb[0].mxu0
  %v4108 = vadd.f32 %v3947, %v4107
  %v4109 = vpop.f32.mrb[0].mxu0
  %4110 = vmatprep.mubr.bf16.mxu0 0
  %4111 = vmatmul.mubr.bf16.gmra.mrb[0].mxu0 %v3674
  %v4112 = vpop.f32.mrb[0].mxu0
  %v4113 = vadd.f32 %v3952, %v4112
  %v4114 = vpop.f32.mrb[0].mxu0
  %v4115 = vpop.f32.mrb[0].mxu0
  %v4116 = vadd.f32 %v3955, %v4115
  %v4117 = vpop.f32.mrb[0].mxu0
  %4118 = vmatprep.mubr.bf16.mxu0 0
  %4119 = vmatmul.mubr.bf16.gmra.mrb[0].mxu0 %v3677
  %v4120 = vpop.f32.mrb[0].mxu0
  %v4121 = vadd.f32 %v3960, %v4120
  %v4122 = vpop.f32.mrb[0].mxu0
  %v4123 = vpop.f32.mrb[0].mxu0
  %v4124 = vadd.f32 %v3963, %v4123
  %v4125 = vpop.f32.mrb[0].mxu0
  %4126 = vmatprep.mubr.bf16.mxu0 0
  %4127 = vmatmul.mubr.bf16.gmra.mrb[0].mxu0 %v3680
  %v4128 = vpop.f32.mrb[0].mxu0
  %v4129 = vadd.f32 %v3968, %v4128
  %v4130 = vpop.f32.mrb[0].mxu0
  %v4131 = vpop.f32.mrb[0].mxu0
  %v4132 = vadd.f32 %v3971, %v4131
  %v4133 = vpop.f32.mrb[0].mxu0
  %4134 = vmatprep.mubr.bf16.mxu0 0
  %4135 = vmatmul.mubr.bf16.gmra.mrb[0].mxu0 %v3683
  %v4136 = vpop.f32.mrb[0].mxu0
  %v4137 = vadd.f32 %v3976, %v4136
  %v4138 = vpop.f32.mrb[0].mxu0
  %v4139 = vpop.f32.mrb[0].mxu0
  %v4140 = vadd.f32 %v3979, %v4139
  %v4141 = vpop.f32.mrb[0].mxu0
  %4142 = vmatprep.mubr.bf16.mxu0 0
  %4143 = vmatmul.mubr.bf16.gmra.mrb[0].mxu0 %v3686
  %v4144 = vpop.f32.mrb[0].mxu0
  %v4145 = vadd.f32 %v3984, %v4144
  %v4146 = vpop.f32.mrb[0].mxu0
  %v4147 = vpop.f32.mrb[0].mxu0
  %v4148 = vadd.f32 %v3987, %v4147
  %v4149 = vpop.f32.mrb[0].mxu0
  %4150 = vmatprep.mubr.bf16.mxu0 0
  %4151 = vmatmul.mubr.bf16.gmra.mrb[0].mxu0 %v3689
  %v4152 = vpop.f32.mrb[0].mxu0
  %v4153 = vadd.f32 %v3992, %v4152
  %v4154 = vpop.f32.mrb[0].mxu0
  %v4155 = vpop.f32.mrb[0].mxu0
  %v4156 = vadd.f32 %v3995, %v4155
  %v4157 = vpop.f32.mrb[0].mxu0
  %4158 = vmatprep.mubr.bf16.mxu0 0
  %4159 = vmatmul.mubr.bf16.gmra.mrb[0].mxu0 %v3692
  %v4160 = vpop.f32.mrb[0].mxu0
  %v4161 = vadd.f32 %v4000, %v4160
  %v4162 = vpop.f32.mrb[0].mxu0
  %v4163 = vpop.f32.mrb[0].mxu0
  %v4164 = vadd.f32 %v4003, %v4163
  %v4165 = vpop.f32.mrb[0].mxu0
  %4166 = vmatprep.mubr.bf16.mxu0 0
  %4167 = vmatmul.mubr.bf16.gmra.mrb[0].mxu0 %v3695
  %v4168 = vpop.f32.mrb[0].mxu0
  %v4169 = vadd.f32 %v4008, %v4168
  %v4170 = vpop.f32.mrb[0].mxu0
  %v4171 = vpop.f32.mrb[0].mxu0
  %v4172 = vadd.f32 %v4011, %v4171
  %v4173 = vpop.f32.mrb[0].mxu0
  %4174 = vmatprep.mubr.bf16.mxu0 0
  %4175 = vmatmul.mubr.bf16.gmra.mrb[0].mxu0 %v3698
  %v4176 = vpop.f32.mrb[0].mxu0
  %v4177 = vadd.f32 %v4016, %v4176
  %v4178 = vpop.f32.mrb[0].mxu0
  %v4179 = vpop.f32.mrb[0].mxu0
  %v4180 = vadd.f32 %v4019, %v4179
  %v4181 = vpop.f32.mrb[0].mxu0
  %4182 = vmatprep.mubr.bf16.mxu0 0
  %4183 = vmatmul.mubr.bf16.gmra.mrb[0].mxu0 %v3701
  %v4184 = vpop.f32.mrb[0].mxu0
  %v4185 = vadd.f32 %v4024, %v4184
  %v4186 = vpop.f32.mrb[0].mxu0
  %v4187 = vpop.f32.mrb[0].mxu0
  %v4188 = vadd.f32 %v4027, %v4187
  %v4189 = vpop.f32.mrb[0].mxu0
  %4190 = vmatprep.mubr.bf16.mxu0 0
  %4191 = vmatmul.mubr.bf16.gmra.mrb[0].mxu0 %v3704
  %v4192 = vpop.f32.mrb[0].mxu0
  %v4193 = vadd.f32 %v4032, %v4192
  %v4194 = vpop.f32.mrb[0].mxu0
  %v4195 = vpop.f32.mrb[0].mxu0
  %v4196 = vadd.f32 %v4035, %v4195
  %v4197 = vpop.f32.mrb[0].mxu0
  %4198 = vmatprep.mubr.bf16.mxu0 0
  %4199 = vmatmul.mubr.bf16.gmra.mrb[0].mxu0 %v3707
  %v4200 = vpop.f32.mrb[0].mxu0
  %v4201 = vadd.f32 %v4040, %v4200
  %v4202 = vpop.f32.mrb[0].mxu0
  %v4203 = vpop.f32.mrb[0].mxu0
  %v4204 = vadd.f32 %v4043, %v4203
  %v4205 = vpop.f32.mrb[0].mxu0
  %4206 = vmatprep.mubr.bf16.mxu0 0
  %4207 = vmatmul.mubr.bf16.gmra.mrb[0].mxu0 %v3710
  %v4208 = vpop.f32.mrb[0].mxu0
  %v4209 = vadd.f32 %v4048, %v4208
  %v4210 = vpop.f32.mrb[0].mxu0
  %v4211 = vpop.f32.mrb[0].mxu0
  %v4212 = vadd.f32 %v4051, %v4211
  %v4213 = vpop.f32.mrb[0].mxu0
  %4214 = vmatprep.mubr.bf16.mxu0 0
  %4215 = vmatmul.mubr.bf16.gmra.mrb[0].mxu0 %v3713
  %v4216 = vpop.f32.mrb[0].mxu0
  %v4217 = vadd.f32 %v4056, %v4216
  %v4218 = vpop.f32.mrb[0].mxu0
  %v4219 = vpop.f32.mrb[0].mxu0
  %v4220 = vadd.f32 %v4059, %v4219
  %v4221 = vpop.f32.mrb[0].mxu0
  %4222 = vmatprep.mubr.bf16.mxu0 0
  %4223 = vmatmul.mubr.bf16.gmra.mrb[0].mxu0 %v3716
  %v4224 = vpop.f32.mrb[0].mxu0
  %v4225 = vadd.f32 %v4064, %v4224
  %v4226 = vpop.f32.mrb[0].mxu0
  %v4227 = vpop.f32.mrb[0].mxu0
  %v4228 = vadd.f32 %v4067, %v4227
  %v4229 = vpop.f32.mrb[0].mxu0
  %4230 = vdwg.mxu0
  %v4231 = vmax.f32 %v4105, 0.0
  %v4232 = vmax.f32 %v4108, 0.0
  %v4233 = vmax.f32 %v4113, 0.0
  %v4234 = vmax.f32 %v4116, 0.0
  %v4235 = vmax.f32 %v4121, 0.0
  %v4236 = vmax.f32 %v4124, 0.0
  %v4237 = vmax.f32 %v4129, 0.0
  %v4238 = vmax.f32 %v4132, 0.0
  %v4239 = vmax.f32 %v4137, 0.0
  %v4240 = vmax.f32 %v4140, 0.0
  %v4241 = vmax.f32 %v4145, 0.0
  %v4242 = vmax.f32 %v4148, 0.0
  %v4243 = vmax.f32 %v4153, 0.0
  %v4244 = vmax.f32 %v4156, 0.0
  %v4245 = vmax.f32 %v4161, 0.0
  %v4246 = vmax.f32 %v4164, 0.0
  %v4247 = vmax.f32 %v4169, 0.0
  %v4248 = vmax.f32 %v4172, 0.0
  %v4249 = vmax.f32 %v4177, 0.0
  %v4250 = vmax.f32 %v4180, 0.0
  %v4251 = vmax.f32 %v4185, 0.0
  %v4252 = vmax.f32 %v4188, 0.0
  %v4253 = vmax.f32 %v4193, 0.0
  %v4254 = vmax.f32 %v4196, 0.0
  %v4255 = vmax.f32 %v4201, 0.0
  %v4256 = vmax.f32 %v4204, 0.0
  %v4257 = vmax.f32 %v4209, 0.0
  %v4258 = vmax.f32 %v4212, 0.0
  %v4259 = vmax.f32 %v4217, 0.0
  %v4260 = vmax.f32 %v4220, 0.0
  %v4261 = vmax.f32 %v4225, 0.0
  %v4262 = vmax.f32 %v4228, 0.0
  %vm4263 = vcmp.gt.f32.partialorder %v4231, 0.0
  %vm4264 = vcmp.gt.f32.partialorder %v4232, 0.0
  %vm4265 = vcmp.gt.f32.partialorder %v4233, 0.0
  %vm4266 = vcmp.gt.f32.partialorder %v4234, 0.0
  %vm4267 = vcmp.gt.f32.partialorder %v4235, 0.0
  %vm4268 = vcmp.gt.f32.partialorder %v4236, 0.0
  %vm4269 = vcmp.gt.f32.partialorder %v4237, 0.0
  %vm4270 = vcmp.gt.f32.partialorder %v4238, 0.0
  %vm4271 = vcmp.gt.f32.partialorder %v4239, 0.0
  %vm4272 = vcmp.gt.f32.partialorder %v4240, 0.0
  %vm4273 = vcmp.gt.f32.partialorder %v4241, 0.0
  %vm4274 = vcmp.gt.f32.partialorder %v4242, 0.0
  %vm4275 = vcmp.gt.f32.partialorder %v4243, 0.0
  %vm4276 = vcmp.gt.f32.partialorder %v4244, 0.0
  %vm4277 = vcmp.gt.f32.partialorder %v4245, 0.0
  %vm4278 = vcmp.gt.f32.partialorder %v4246, 0.0
  %vm4279 = vcmp.gt.f32.partialorder %v4247, 0.0
  %vm4280 = vcmp.gt.f32.partialorder %v4248, 0.0
  %vm4281 = vcmp.gt.f32.partialorder %v4249, 0.0
  %vm4282 = vcmp.gt.f32.partialorder %v4250, 0.0
  %vm4283 = vcmp.gt.f32.partialorder %v4251, 0.0
  %vm4284 = vcmp.gt.f32.partialorder %v4252, 0.0
  %vm4285 = vcmp.gt.f32.partialorder %v4253, 0.0
  %vm4286 = vcmp.gt.f32.partialorder %v4254, 0.0
  %vm4287 = vcmp.gt.f32.partialorder %v4255, 0.0
  %vm4288 = vcmp.gt.f32.partialorder %v4256, 0.0
  %vm4289 = vcmp.gt.f32.partialorder %v4257, 0.0
  %vm4290 = vcmp.gt.f32.partialorder %v4258, 0.0
  %vm4291 = vcmp.gt.f32.partialorder %v4259, 0.0
  %vm4292 = vcmp.gt.f32.partialorder %v4260, 0.0
  %vm4293 = vcmp.gt.f32.partialorder %v4261, 0.0
  %vm4294 = vcmp.gt.f32.partialorder %v4262, 0.0
  %v4295 = vmax.f32 %v4231, 1e-30
  %v4296 = vmax.f32 %v4232, 1e-30
  %v4297 = vmax.f32 %v4233, 1e-30
  %v4298 = vmax.f32 %v4234, 1e-30
  %v4299 = vmax.f32 %v4235, 1e-30
  %v4300 = vmax.f32 %v4236, 1e-30
  %v4301 = vmax.f32 %v4237, 1e-30
  %v4302 = vmax.f32 %v4238, 1e-30
  %v4303 = vmax.f32 %v4239, 1e-30
  %v4304 = vmax.f32 %v4240, 1e-30
  %v4305 = vmax.f32 %v4241, 1e-30
  %v4306 = vmax.f32 %v4242, 1e-30
  %v4307 = vmax.f32 %v4243, 1e-30
  %v4308 = vmax.f32 %v4244, 1e-30
  %v4309 = vmax.f32 %v4245, 1e-30
  %v4310 = vmax.f32 %v4246, 1e-30
  %v4311 = vmax.f32 %v4247, 1e-30
  %v4312 = vmax.f32 %v4248, 1e-30
  %v4313 = vmax.f32 %v4249, 1e-30
  %v4314 = vmax.f32 %v4250, 1e-30
  %v4315 = vmax.f32 %v4251, 1e-30
  %v4316 = vmax.f32 %v4252, 1e-30
  %v4317 = vmax.f32 %v4253, 1e-30
  %v4318 = vmax.f32 %v4254, 1e-30
  %v4319 = vmax.f32 %v4255, 1e-30
  %v4320 = vmax.f32 %v4256, 1e-30
  %v4321 = vmax.f32 %v4257, 1e-30
  %v4322 = vmax.f32 %v4258, 1e-30
  %v4323 = vmax.f32 %v4259, 1e-30
  %v4324 = vmax.f32 %v4260, 1e-30
  %v4325 = vmax.f32 %v4261, 1e-30
  %v4326 = vmax.f32 %v4262, 1e-30
  %v4327 = vlog2.pop %v4295
  %v4328 = vmul.f32 %v4327, 0.6931472
  %v4329 = vlog2.pop %v4296
  %v4330 = vmul.f32 %v4329, 0.6931472
  %v4331 = vlog2.pop %v4297
  %v4332 = vmul.f32 %v4331, 0.6931472
  %v4333 = vlog2.pop %v4298
  %v4334 = vmul.f32 %v4333, 0.6931472
  %v4335 = vlog2.pop %v4299
  %v4336 = vmul.f32 %v4335, 0.6931472
  %v4337 = vlog2.pop %v4300
  %v4338 = vmul.f32 %v4337, 0.6931472
  %v4339 = vlog2.pop %v4301
  %v4340 = vmul.f32 %v4339, 0.6931472
  %v4341 = vlog2.pop %v4302
  %v4342 = vmul.f32 %v4341, 0.6931472
  %v4343 = vlog2.pop %v4303
  %v4344 = vmul.f32 %v4343, 0.6931472
  %v4345 = vlog2.pop %v4304
  %v4346 = vmul.f32 %v4345, 0.6931472
  %v4347 = vlog2.pop %v4305
  %v4348 = vmul.f32 %v4347, 0.6931472
  %v4349 = vlog2.pop %v4306
  %v4350 = vmul.f32 %v4349, 0.6931472
  %v4351 = vlog2.pop %v4307
  %v4352 = vmul.f32 %v4351, 0.6931472
  %v4353 = vlog2.pop %v4308
  %v4354 = vmul.f32 %v4353, 0.6931472
  %v4355 = vlog2.pop %v4309
  %v4356 = vmul.f32 %v4355, 0.6931472
  %v4357 = vlog2.pop %v4310
  %v4358 = vmul.f32 %v4357, 0.6931472
  %v4359 = vlog2.pop %v4311
  %v4360 = vmul.f32 %v4359, 0.6931472
  %v4361 = vlog2.pop %v4312
  %v4362 = vmul.f32 %v4361, 0.6931472
  %v4363 = vlog2.pop %v4313
  %v4364 = vmul.f32 %v4363, 0.6931472
  %v4365 = vlog2.pop %v4314
  %v4366 = vmul.f32 %v4365, 0.6931472
  %v4367 = vlog2.pop %v4315
  %v4368 = vmul.f32 %v4367, 0.6931472
  %v4369 = vlog2.pop %v4316
  %v4370 = vmul.f32 %v4369, 0.6931472
  %v4371 = vlog2.pop %v4317
  %v4372 = vmul.f32 %v4371, 0.6931472
  %v4373 = vlog2.pop %v4318
  %v4374 = vmul.f32 %v4373, 0.6931472
  %v4375 = vlog2.pop %v4319
  %v4376 = vmul.f32 %v4375, 0.6931472
  %v4377 = vlog2.pop %v4320
  %v4378 = vmul.f32 %v4377, 0.6931472
  %v4379 = vlog2.pop %v4321
  %v4380 = vmul.f32 %v4379, 0.6931472
  %v4381 = vlog2.pop %v4322
  %v4382 = vmul.f32 %v4381, 0.6931472
  %v4383 = vlog2.pop %v4323
  %v4384 = vmul.f32 %v4383, 0.6931472
  %v4385 = vlog2.pop %v4324
  %v4386 = vmul.f32 %v4385, 0.6931472
  %v4387 = vlog2.pop %v4325
  %v4388 = vmul.f32 %v4387, 0.6931472
  %v4389 = vlog2.pop %v4326
  %v4390 = vmul.f32 %v4389, 0.6931472
  %v4391 = vmul.f32 %v4328, 0.33333334
  %v4392 = vmul.f32 %v4330, 0.33333334
  %v4393 = vmul.f32 %v4332, 0.33333334
  %v4394 = vmul.f32 %v4334, 0.33333334
  %v4395 = vmul.f32 %v4336, 0.33333334
  %v4396 = vmul.f32 %v4338, 0.33333334
  %v4397 = vmul.f32 %v4340, 0.33333334
  %v4398 = vmul.f32 %v4342, 0.33333334
  %v4399 = vmul.f32 %v4344, 0.33333334
  %v4400 = vmul.f32 %v4346, 0.33333334
  %v4401 = vmul.f32 %v4348, 0.33333334
  %v4402 = vmul.f32 %v4350, 0.33333334
  %v4403 = vmul.f32 %v4352, 0.33333334
  %v4404 = vmul.f32 %v4354, 0.33333334
  %v4405 = vmul.f32 %v4356, 0.33333334
  %v4406 = vmul.f32 %v4358, 0.33333334
  %v4407 = vmul.f32 %v4360, 0.33333334
  %v4408 = vmul.f32 %v4362, 0.33333334
  %v4409 = vmul.f32 %v4364, 0.33333334
  %v4410 = vmul.f32 %v4366, 0.33333334
  %v4411 = vmul.f32 %v4368, 0.33333334
  %v4412 = vmul.f32 %v4370, 0.33333334
  %v4413 = vmul.f32 %v4372, 0.33333334
  %v4414 = vmul.f32 %v4374, 0.33333334
  %v4415 = vmul.f32 %v4376, 0.33333334
  %v4416 = vmul.f32 %v4378, 0.33333334
  %v4417 = vmul.f32 %v4380, 0.33333334
  %v4418 = vmul.f32 %v4382, 0.33333334
  %v4419 = vmul.f32 %v4384, 0.33333334
  %v4420 = vmul.f32 %v4386, 0.33333334
  %v4421 = vmul.f32 %v4388, 0.33333334
  %v4422 = vmul.f32 %v4390, 0.33333334
  %v4423 = vmul.f32 %v4391, 1.442695
  %v4424 = vpow.pop %v4423
  %v4425 = vmul.f32 %v4392, 1.442695
  %v4426 = vpow.pop %v4425
  %v4427 = vmul.f32 %v4393, 1.442695
  %v4428 = vpow.pop %v4427
  %v4429 = vmul.f32 %v4394, 1.442695
  %v4430 = vpow.pop %v4429
  %v4431 = vmul.f32 %v4395, 1.442695
  %v4432 = vpow.pop %v4431
  %v4433 = vmul.f32 %v4396, 1.442695
  %v4434 = vpow.pop %v4433
  %v4435 = vmul.f32 %v4397, 1.442695
  %v4436 = vpow.pop %v4435
  %v4437 = vmul.f32 %v4398, 1.442695
  %v4438 = vpow.pop %v4437
  %v4439 = vmul.f32 %v4399, 1.442695
  %v4440 = vpow.pop %v4439
  %v4441 = vmul.f32 %v4400, 1.442695
  %v4442 = vpow.pop %v4441
  %v4443 = vmul.f32 %v4401, 1.442695
  %v4444 = vpow.pop %v4443
  %v4445 = vmul.f32 %v4402, 1.442695
  %v4446 = vpow.pop %v4445
  %v4447 = vmul.f32 %v4403, 1.442695
  %v4448 = vpow.pop %v4447
  %v4449 = vmul.f32 %v4404, 1.442695
  %v4450 = vpow.pop %v4449
  %v4451 = vmul.f32 %v4405, 1.442695
  %v4452 = vpow.pop %v4451
  %v4453 = vmul.f32 %v4406, 1.442695
  %v4454 = vpow.pop %v4453
  %v4455 = vmul.f32 %v4407, 1.442695
  %v4456 = vpow.pop %v4455
  %v4457 = vmul.f32 %v4408, 1.442695
  %v4458 = vpow.pop %v4457
  %v4459 = vmul.f32 %v4409, 1.442695
  %v4460 = vpow.pop %v4459
  %v4461 = vmul.f32 %v4410, 1.442695
  %v4462 = vpow.pop %v4461
  %v4463 = vmul.f32 %v4411, 1.442695
  %v4464 = vpow.pop %v4463
  %v4465 = vmul.f32 %v4412, 1.442695
  %v4466 = vpow.pop %v4465
  %v4467 = vmul.f32 %v4413, 1.442695
  %v4468 = vpow.pop %v4467
  %v4469 = vmul.f32 %v4414, 1.442695
  %v4470 = vpow.pop %v4469
  %v4471 = vmul.f32 %v4415, 1.442695
  %v4472 = vpow.pop %v4471
  %v4473 = vmul.f32 %v4416, 1.442695
  %v4474 = vpow.pop %v4473
  %v4475 = vmul.f32 %v4417, 1.442695
  %v4476 = vpow.pop %v4475
  %v4477 = vmul.f32 %v4418, 1.442695
  %v4478 = vpow.pop %v4477
  %v4479 = vmul.f32 %v4419, 1.442695
  %v4480 = vpow.pop %v4479
  %v4481 = vmul.f32 %v4420, 1.442695
  %v4482 = vpow.pop %v4481
  %v4483 = vmul.f32 %v4421, 1.442695
  %v4484 = vpow.pop %v4483
  %v4485 = vmul.f32 %v4422, 1.442695
  %v4486 = vpow.pop %v4485
  %v4487 = vsel %vm4263, %v4424, 0.0
  %v4488 = vsel %vm4264, %v4426, 0.0
  %v4489 = vsel %vm4265, %v4428, 0.0
  %v4490 = vsel %vm4266, %v4430, 0.0
  %v4491 = vsel %vm4267, %v4432, 0.0
  %v4492 = vsel %vm4268, %v4434, 0.0
  %v4493 = vsel %vm4269, %v4436, 0.0
  %v4494 = vsel %vm4270, %v4438, 0.0
  %v4495 = vsel %vm4271, %v4440, 0.0
  %v4496 = vsel %vm4272, %v4442, 0.0
  %v4497 = vsel %vm4273, %v4444, 0.0
  %v4498 = vsel %vm4274, %v4446, 0.0
  %v4499 = vsel %vm4275, %v4448, 0.0
  %v4500 = vsel %vm4276, %v4450, 0.0
  %v4501 = vsel %vm4277, %v4452, 0.0
  %v4502 = vsel %vm4278, %v4454, 0.0
  %v4503 = vsel %vm4279, %v4456, 0.0
  %v4504 = vsel %vm4280, %v4458, 0.0
  %v4505 = vsel %vm4281, %v4460, 0.0
  %v4506 = vsel %vm4282, %v4462, 0.0
  %v4507 = vsel %vm4283, %v4464, 0.0
  %v4508 = vsel %vm4284, %v4466, 0.0
  %v4509 = vsel %vm4285, %v4468, 0.0
  %v4510 = vsel %vm4286, %v4470, 0.0
  %v4511 = vsel %vm4287, %v4472, 0.0
  %v4512 = vsel %vm4288, %v4474, 0.0
  %v4513 = vsel %vm4289, %v4476, 0.0
  %v4514 = vsel %vm4290, %v4478, 0.0
  %v4515 = vsel %vm4291, %v4480, 0.0
  %v4516 = vsel %vm4292, %v4482, 0.0
  %v4517 = vsel %vm4293, %v4484, 0.0
  %v4518 = vsel %vm4294, %v4486, 0.0
  %4519 = vst [vmem:[%s3] sm:$0xff] %v4487
  %4520 = vst [vmem:[%s3 + $0x8] sm:$0xff] %v4488
  %4521 = vst [vmem:[%s3 + $0x10] sm:$0xff] %v4489
  %4522 = vst [vmem:[%s3 + $0x18] sm:$0xff] %v4490
  %4523 = vst [vmem:[%s3 + $0x20] sm:$0xff] %v4491
  %4524 = vst [vmem:[%s3 + $0x28] sm:$0xff] %v4492
  %4525 = vst [vmem:[%s3 + $0x30] sm:$0xff] %v4493
  %4526 = vst [vmem:[%s3 + $0x38] sm:$0xff] %v4494
  %4527 = vst [vmem:[%s3 + $0x40] sm:$0xff] %v4495
  %4528 = vst [vmem:[%s3 + $0x48] sm:$0xff] %v4496
  %4529 = vst [vmem:[%s3 + $0x50] sm:$0xff] %v4497
  %4530 = vst [vmem:[%s3 + $0x58] sm:$0xff] %v4498
  %4531 = vst [vmem:[%s3 + $0x60] sm:$0xff] %v4499
  %4532 = vst [vmem:[%s3 + $0x68] sm:$0xff] %v4500
  %4533 = vst [vmem:[%s3 + $0x70] sm:$0xff] %v4501
  %4534 = vst [vmem:[%s3 + $0x78] sm:$0xff] %v4502
  %4535 = vst [vmem:[%s3 + $0x80] sm:$0xff] %v4503
  %4536 = vst [vmem:[%s3 + $0x88] sm:$0xff] %v4504
  %4537 = vst [vmem:[%s3 + $0x90] sm:$0xff] %v4505
  %4538 = vst [vmem:[%s3 + $0x98] sm:$0xff] %v4506
  %4539 = vst [vmem:[%s3 + $0xa0] sm:$0xff] %v4507
  %4540 = vst [vmem:[%s3 + $0xa8] sm:$0xff] %v4508
  %4541 = vst [vmem:[%s3 + $0xb0] sm:$0xff] %v4509
  %4542 = vst [vmem:[%s3 + $0xb8] sm:$0xff] %v4510
  %4543 = vst [vmem:[%s3 + $0xc0] sm:$0xff] %v4511
  %4544 = vst [vmem:[%s3 + $0xc8] sm:$0xff] %v4512
  %4545 = vst [vmem:[%s3 + $0xd0] sm:$0xff] %v4513
  %4546 = vst [vmem:[%s3 + $0xd8] sm:$0xff] %v4514
  %4547 = vst [vmem:[%s3 + $0xe0] sm:$0xff] %v4515
  %4548 = vst [vmem:[%s3 + $0xe8] sm:$0xff] %v4516
  %4549 = vst [vmem:[%s3 + $0xf0] sm:$0xff] %v4517
  %4550 = vst [vmem:[%s3 + $0xf8] sm:$0xff] %v4518
  // Predicated region
  $region14: #{nda_loss.2} parent=0 // pred_check
    _
  $region15: #{nda_loss.2} parent=0 // pred_check_branch
    %4552 = sbr.rel (0) target = $region17
  $region16: #{nda_loss.2} parent=0 // pred_region
    _
  $region17: #{nda_loss.2} parent=0 // pred_fallthru
    _
  // Predicated region
  $region18: #{nda_loss.2} parent=0 // pred_check
    _
  $region19: #{nda_loss.2} parent=0 // pred_check_branch
    %4554 = sbr.rel (0) target = $region21
  $region20: #{nda_loss.2} parent=0 // pred_region
    _
  $region21: #{nda_loss.2} parent=0 // pred_fallthru
    _

</llo_original>
